<compile_context>
chip_gen: v7x
topology: tpu7x:2x2x1
jax: 0.10.0
libtpu: 0.0.40
codegen_flags: <defaults>
</compile_context>

<pallas_src>
import functools

import jax
import jax.numpy as jnp
from jax.experimental import pallas as pl
from jax.experimental.pallas import tpu as pltpu

D_IN, D_HID, D_OUT = 22, 10, 2
LANES = 128

# Packed-parameter layout, a single (168, 128) f32 buffer:
ROW_W1 = 0     # rows   0..21  : W1.T  (22 input features on sublanes, 10 hidden on lanes 0..9)
ROW_B1 = 24    # row   24      : b1    (lanes 0..9)
ROW_W2 = 32    # rows  32..159 : antisymmetric W2: hidden j -> row 32+j,
               #                 lane0 = w2[0,j]-w2[1,j], lane1 = -(lane0); rows j>=10 are zero
ROW_BD = 160   # row  160      : lane0 = b2[0]-b2[1], lane1 = b2[1]-b2[0]
P_ROWS = 168   # multiple of 8; everything else zero


def fifa_kernel(x_ref, p_ref, o_ref):
    # x_ref: (TB, 22)   raw (possibly non-integer) features
    # p_ref: (168, 128) packed params (resident across grid steps: index_map -> (0, 0))
    # o_ref: (TB, 2)    softmax probabilities
    x = jnp.trunc(x_ref[...])                              # int(i) truncation toward zero (VPU)

    w1 = p_ref[ROW_W1:ROW_W1 + D_IN, :]                    # (22, 128): lanes 0..9 = W1.T, rest 0
    b1 = p_ref[ROW_B1:ROW_B1 + 1, :]                       # (1, 128):  lanes 0..9 = b1, rest 0
    w2 = p_ref[ROW_W2:ROW_W2 + LANES, :]                   # (128,128): antisym W2, rows >=10 zero
    bd = p_ref[ROW_BD:ROW_BD + 1, :]                       # (1, 128):  lanes 0..1 = +-(b2[0]-b2[1])

    # Layer 1 + bias + ReLU.  Lanes >= 10 of h are exactly 0 (zero weight columns / zero bias).
    h = jnp.maximum(jnp.dot(x, w1, preferred_element_type=jnp.float32) + b1, 0.0)   # (TB, 128)

    # Layer 2 produces the logit DIFFERENCES directly (antisymmetric packing):
    #   lane0 = l0 - l1, lane1 = l1 - l0;  softmax([l0, l1]) == sigmoid([l0-l1, l1-l0]).
    z = jnp.dot(h, w2, preferred_element_type=jnp.float32) + bd                      # (TB, 128)

    # Exact sigmoid (approx reciprocal would eat into the 1e-5 tolerance budget).
    probs = pl.reciprocal(1.0 + jnp.exp(-z), approx=False)
    o_ref[...] = probs[:, :D_OUT]                          # narrow (TB, 2) store


def pack_params(params):
    """Pack (w1, b1, w2, b2) into one (168, 128) f32 buffer. Done ONCE, outside the call path."""
    w1, b1, w2, b2 = params  # torch shapes: w1 (10,22), b1 (10,), w2 (2,10), b2 (2,)
    p = jnp.zeros((P_ROWS, LANES), jnp.float32)
    p = p.at[ROW_W1:ROW_W1 + D_IN, :D_HID].set(w1.T)       # W1.T  (22, 10)
    p = p.at[ROW_B1, :D_HID].set(b1)                       # b1
    wd = w2[0] - w2[1]                                     # (10,)  antisymmetric layer-2 weights
    p = p.at[ROW_W2:ROW_W2 + D_HID, 0].set(wd)
    p = p.at[ROW_W2:ROW_W2 + D_HID, 1].set(-wd)
    p = p.at[ROW_BD, 0].set(b2[0] - b2[1])
    p = p.at[ROW_BD, 1].set(b2[1] - b2[0])
    return p


def _cdiv(a, b):
    return (a + b - 1) // b


def _round_up(n, m):
    return ((n + m - 1) // m) * m


def _choose_tiling(B, block_m):
    """Rows per grid step (multiple of 8) and step count (last block may be partial)."""
    n_steps = _cdiv(B, block_m)
    # Keep >= 2 grid steps when there are enough rows so the "parallel" batch axis can shard
    # across both TensorCores on v7x (harmless on 1-TC v5e/v6e).
    if B >= 1024:
        n_steps = max(n_steps, 2)
    tb = _round_up(_cdiv(B, n_steps), 8)
    n_steps = _cdiv(B, tb)
    return tb, n_steps


@functools.partial(jax.jit, static_argnames=("block_m",))
def _fifa_pallas(x, packed, *, block_m):
    B = x.shape[0]
    tb, n_steps = _choose_tiling(B, block_m)
    return pl.pallas_call(
        fifa_kernel,
        out_shape=jax.ShapeDtypeStruct((B, D_OUT), jnp.float32),
        grid=(n_steps,),
        in_specs=[
            pl.BlockSpec((tb, D_IN), lambda i: (i, 0)),          # x tile (last dim == full dim)
            pl.BlockSpec((P_ROWS, LANES), lambda i: (0, 0)),     # packed weights stay resident
        ],
        out_specs=pl.BlockSpec((tb, D_OUT), lambda i: (i, 0)),   # narrow 2-lane output tile
        compiler_params=pltpu.CompilerParams(
            dimension_semantics=("parallel",),
            vmem_limit_bytes=32 * 1024 * 1024,                   # headroom for big tiles on v5e
        ),
    )(x, packed)


@jax.jit
def _fifa_xla(x, packed):
    """Plain-XLA path for small batches (a pallas_call launch isn't worth ~500 FLOP/row)."""
    xf = jnp.trunc(x.astype(jnp.float32))
    w1 = packed[ROW_W1:ROW_W1 + D_IN, :D_HID]                   # (22, 10)
    b1 = packed[ROW_B1, :D_HID]
    wd = packed[ROW_W2:ROW_W2 + D_HID, :D_OUT]                  # (10, 2) antisymmetric
    bd = packed[ROW_BD, :D_OUT]
    h = jnp.maximum(xf @ w1 + b1, 0.0)
    return jax.nn.sigmoid(h @ wd + bd)                          # == softmax of the real logits


def fifa_net_forward_batch(x_batch, packed_params, *, block_m=4096, min_pallas_batch=1024):
    """Batched forward: x_batch (B, 22) -> (B, 2) softmax probabilities."""
    x = jnp.asarray(x_batch).astype(jnp.float32)
    B = x.shape[0]
    if B < min_pallas_batch:
        return _fifa_xla(x, packed_params)
    return _fifa_pallas(x, packed_params, block_m=block_m)


def fifa_net_forward(x_vals, packed_params):
    """Single sample matching FIFA_Net.forward: 22 scalars (as a (22,) array) -> (2,)."""
    return fifa_net_forward_batch(jnp.asarray(x_vals).reshape(1, D_IN), packed_params)[0]


def init_params(key):
    """Deterministic init matching nn.Linear default (U(-1/sqrt(fan_in), 1/sqrt(fan_in)))."""
    k1, k2, k3, k4 = jax.random.split(key, 4)
    lim1 = 1.0 / jnp.sqrt(jnp.float32(D_IN))
    lim2 = 1.0 / jnp.sqrt(jnp.float32(D_HID))
    w1 = jax.random.uniform(k1, (D_HID, D_IN), jnp.float32, -lim1, lim1)
    b1 = jax.random.uniform(k2, (D_HID,), jnp.float32, -lim1, lim1)
    w2 = jax.random.uniform(k3, (D_OUT, D_HID), jnp.float32, -lim2, lim2)
    b2 = jax.random.uniform(k4, (D_OUT,), jnp.float32, -lim2, lim2)
    return (w1, b1, w2, b2)


if __name__ == "__main__":
    key = jax.random.PRNGKey(0)
    pkey, xkey = jax.random.split(key)
    params = init_params(pkey)
    packed = pack_params(params)          # pack once, hoisted out of the per-call path

    # Integer "features", as the module's per-scalar int(i) implies.
    B = 2048
    raw = jax.random.randint(xkey, (B, D_IN), 0, 100).astype(jnp.float32)

    # Pure-JAX reference of the module math (Linear -> ReLU -> Linear -> Softmax).
    w1, b1, w2, b2 = params
    ref = jax.nn.softmax(jnp.maximum(raw @ w1.T + b1, 0.0) @ w2.T + b2, axis=-1)

    # 1) Batched path through the Pallas kernel (two 1024-row grid steps).
    out_batch = jax.block_until_ready(fifa_net_forward_batch(raw, packed))

    # 2) Ragged batch with fractional inputs, forced through the kernel with a small tile:
    #    exercises the partial final block and the in-kernel int() truncation.
    out_ragged = jax.block_until_ready(
        fifa_net_forward_batch(raw[:1000] + 0.25, packed, block_m=256, min_pallas_batch=0))

    # 3) Small batch / single sample: dispatched to the plain-XLA fallback.
    out_small = jax.block_until_ready(fifa_net_forward_batch(raw[:8], packed))
    out_single = jax.block_until_ready(fifa_net_forward(raw[0], packed))

    assert out_batch.shape == (B, D_OUT)
    assert out_ragged.shape == (1000, D_OUT)
    assert out_small.shape == (8, D_OUT)
    assert out_single.shape == (D_OUT,)
    assert jnp.allclose(out_batch, ref, atol=1e-5), "batched Pallas path mismatch"
    assert jnp.allclose(out_ragged, ref[:1000], atol=1e-5), "ragged Pallas path mismatch"
    assert jnp.allclose(out_small, ref[:8], atol=1e-5), "small-batch fallback mismatch"
    assert jnp.allclose(out_single, ref[0], atol=1e-5), "single-sample mismatch"
    assert jnp.allclose(jnp.sum(out_batch, axis=-1), 1.0, atol=1e-5)

    print("KERNEL_OK")
</pallas_src>

<mosaic_0001>
module attributes {stable_mosaic.version = 11 : i64} {
  func.func @fifa_kernel(%arg0: i32, %arg1: memref<1024x22xf32, #tpu.memory_space<vmem>>, %arg2: memref<168x128xf32, #tpu.memory_space<vmem>>, %arg3: memref<1024x2xf32, #tpu.memory_space<vmem>>) attributes {dimension_semantics = [#tpu.dimension_semantics<parallel>], iteration_bounds = array<i64: 2>, scalar_prefetch = 0 : i64, scratch_operands = 0 : i64, tpu.core_type = #tpu.core_type<tc>, window_params = [{transform_indices = @transform_0, window_bounds = array<i64: 1024, 22>}, {pipeline_mode = #tpu.pipeline_mode<synchronous>, transform_indices = @transform_1, window_bounds = array<i64: 168, 128>}, {transform_indices = @transform_2, window_bounds = array<i64: 1024, 2>}]} {
    %c0 = arith.constant 0 : index
    %c0_0 = arith.constant 0 : index
    %0 = vector.load %arg1[%c0, %c0_0] : memref<1024x22xf32, #tpu.memory_space<vmem>>, vector<1024x22xf32>
    %cst = arith.constant 0.000000e+00 : f32
    %1 = vector.broadcast %cst : f32 to vector<1024x22xf32>
    %2 = arith.cmpf olt, %0, %1 : vector<1024x22xf32>
    %3 = math.ceil %0 : vector<1024x22xf32>
    %4 = math.floor %0 : vector<1024x22xf32>
    %5 = arith.select %2, %3, %4 : vector<1024x22xi1>, vector<1024x22xf32>
    %c0_1 = arith.constant 0 : index
    %c0_2 = arith.constant 0 : index
    %6 = vector.load %arg2[%c0_1, %c0_2] : memref<168x128xf32, #tpu.memory_space<vmem>>, vector<22x128xf32>
    %c24 = arith.constant 24 : index
    %c0_3 = arith.constant 0 : index
    %7 = vector.load %arg2[%c24, %c0_3] : memref<168x128xf32, #tpu.memory_space<vmem>>, vector<1x128xf32>
    %c32 = arith.constant 32 : index
    %c0_4 = arith.constant 0 : index
    %8 = vector.load %arg2[%c32, %c0_4] : memref<168x128xf32, #tpu.memory_space<vmem>>, vector<128x128xf32>
    %c160 = arith.constant 160 : index
    %c0_5 = arith.constant 0 : index
    %9 = vector.load %arg2[%c160, %c0_5] : memref<168x128xf32, #tpu.memory_space<vmem>>, vector<1x128xf32>
    %cst_6 = arith.constant dense<0.000000e+00> : vector<1024x128xf32>
    %10 = tpu.matmul %5, %6, %cst_6 {dimension_numbers = #tpu.dot_dimension_numbers<[1], [0], [0], [1], [0, 0, 1, 1], [], []>} : vector<1024x22xf32>, vector<22x128xf32>, vector<1024x128xf32> -> vector<1024x128xf32>
    %11 = vector.broadcast %7 : vector<1x128xf32> to vector<1024x128xf32>
    %12 = arith.addf %10, %11 : vector<1024x128xf32>
    %cst_7 = arith.constant 0.000000e+00 : f32
    %13 = vector.broadcast %cst_7 : f32 to vector<1024x128xf32>
    %14 = arith.maximumf %12, %13 : vector<1024x128xf32>
    %cst_8 = arith.constant dense<0.000000e+00> : vector<1024x128xf32>
    %15 = tpu.matmul %14, %8, %cst_8 {dimension_numbers = #tpu.dot_dimension_numbers<[1], [0], [0], [1], [0, 0, 1, 1], [], []>} : vector<1024x128xf32>, vector<128x128xf32>, vector<1024x128xf32> -> vector<1024x128xf32>
    %16 = vector.broadcast %9 : vector<1x128xf32> to vector<1024x128xf32>
    %17 = arith.addf %15, %16 : vector<1024x128xf32>
    %cst_9 = arith.constant 0.000000e+00 : f32
    %18 = vector.broadcast %cst_9 : f32 to vector<1024x128xf32>
    %19 = arith.subf %18, %17 : vector<1024x128xf32>
    %20 = math.exp %19 : vector<1024x128xf32>
    %cst_10 = arith.constant 1.000000e+00 : f32
    %21 = vector.broadcast %cst_10 : f32 to vector<1024x128xf32>
    %22 = arith.addf %21, %20 : vector<1024x128xf32>
    %23 = tpu.reciprocal %22 : vector<1024x128xf32> -> vector<1024x128xf32>
    %24 = vector.extract_strided_slice %23 {offsets = [0, 0], sizes = [1024, 2], strides = [1, 1]} : vector<1024x128xf32> to vector<1024x2xf32>
    %c0_11 = arith.constant 0 : index
    %c0_12 = arith.constant 0 : index
    %25 = vector.load %arg3[%c0_11, %c0_12] : memref<1024x2xf32, #tpu.memory_space<vmem>>, vector<1024x2xf32>
    tpu.vector_store %arg3[%c0_11, %c0_12], %24 {strides = array<i32>} : memref<1024x2xf32, #tpu.memory_space<vmem>>, vector<1024x2xf32>,
    return
  }
  func.func @transform_0(%arg0: i32) -> (i32, i32) {
    %c0_i32 = arith.constant 0 : i32
    %c0_i32_0 = arith.constant 0 : i32
    return %arg0, %c0_i32 : i32, i32
  }
  func.func @transform_1(%arg0: i32) -> (i32, i32) {
    %c0_i32 = arith.constant 0 : i32
    %c0_i32_0 = arith.constant 0 : i32
    %c0_i32_1 = arith.constant 0 : i32
    return %c0_i32, %c0_i32_0 : i32, i32
  }
  func.func @transform_2(%arg0: i32) -> (i32, i32) {
    %c0_i32 = arith.constant 0 : i32
    %c0_i32_0 = arith.constant 0 : i32
    return %arg0, %c0_i32 : i32, i32
  }
}

</mosaic_0001>

<llo_original>
// kernel: _fifa_pallas.1
$region0: #{_fifa_pallas.1}
  #allocation0 [shape = 'u32[]', space=smem, size = 0x4, offset = 0x4, fixed_abs, tag = 'smem constant byte address 0x4 - core index']
  #allocation1 [shape = 'u32[144,128]{1,0:T(1,128)}', space=vmem, size = 0x12000, scoped, tag = 'internal scratch']
  %s0 = inlined_call_operand.vmem [shape: f32[2048,22], index: 0, kind: input, shape index: {}]
  %s1 = inlined_call_operand.vmem [shape: f32[168,128], index: 1, kind: input, shape index: {}]
  %s2 = inlined_call_operand.vmem [shape: f32[2048,2], index: 2, kind: output, shape index: {}]
  %s3 = sld [smem:[#allocation0]]
  $region41: #{_fifa_pallas.1} parent=0
    _
  %s5 = ssub.s32 1, %s3
  %s6 = scalar_select 0, %s5, %s3
  loop: start=0, step=1, limit=4
  $region2: #{_fifa_pallas.1} parent=0 // loop_pre_header
    _
  $region3: #{_fifa_pallas.1} parent=0 // loop_header
    %s8 = sphi 0, %s12
    %p9 = scmp.ge.s32.totalorder %s8, 4
    %s18 = sphi 0, %s20
    %s21 = sphi 0, %s18
    %s22 = sphi 0, %s21
    %s38 = sphi 0, %s22
    %s42 = sphi 0, %s42
    %s44 = sphi 0, %s42
    %s45 = sphi 0, %s44
    %s59 = sphi 0, %s45
    %s65 = sphi 0, %s67
    %s68 = sphi 0, %s65
    %s69 = sphi 0, %s68
    %s85 = sphi 0, %s69
  $region4: #{_fifa_pallas.1} parent=0 // loop_header_branch
    %11 = sbr.rel (%p9) target = $region8
  $region5: #{_fifa_pallas.1} parent=0 // loop_body
    %s13 = ssub.s32 %s8, 1
    %s14 = ssub.s32 %s8, 2
    %s15 = sadd.s32 %s8, 1
    %s16 = ssub.s32 %s8, %s15
    %p17 = scmp.eq.s32.totalorder %s16, 0
    %s19 = sadd.s32 %s18, 1
    %s20 = scalar_select %p17, %s18, %s19
    %p23 = pneg %p17
    %p24 = scmp.eq.s32.totalorder %s8, 1
    %p25 = por %p23, %p24
    %p26 = scmp.ne.s32.totalorder %s18, %s21
    %p27 = scmp.eq.s32.totalorder %s8, 0
    %p28 = por %p26, %p27
    %p29 = scmp.ne.s32.totalorder %s18, %s21
    %p30 = scmp.eq.s32.totalorder %s13, 1
    %p31 = por %p29, %p30
    %p32 = scmp.ne.s32.totalorder %s21, %s22
    %p33 = scmp.eq.s32.totalorder %s13, 0
    %p34 = por %p32, %p33
    %p35 = scmp.ne.s32.totalorder %s21, %s22
    %p36 = scmp.eq.s32.totalorder %s14, 1
    %p37 = por %p35, %p36
    %p39 = scmp.ne.s32.totalorder %s22, %s38
    %p40 = scmp.eq.s32.totalorder %s14, 0
    %p41 = por %p39, %p40
    %s43 = sadd.s32 %s42, 1
    %p46 = scmp.eq.s32.totalorder %s8, 1
    %p47 = scmp.ne.s32.totalorder %s42, %s44
    %p48 = scmp.eq.s32.totalorder %s8, 0
    %p49 = por %p47, %p48
    %p50 = scmp.ne.s32.totalorder %s42, %s44
    %p51 = scmp.eq.s32.totalorder %s13, 1
    %p52 = por %p50, %p51
    %p53 = scmp.ne.s32.totalorder %s44, %s45
    %p54 = scmp.eq.s32.totalorder %s13, 0
    %p55 = por %p53, %p54
    %p56 = scmp.ne.s32.totalorder %s44, %s45
    %p57 = scmp.eq.s32.totalorder %s14, 1
    %p58 = por %p56, %p57
    %p60 = scmp.ne.s32.totalorder %s45, %s59
    %p61 = scmp.eq.s32.totalorder %s14, 0
    %p62 = por %p60, %p61
    %s63 = ssub.s32 %s8, %s15
    %p64 = scmp.eq.s32.totalorder %s63, 0
    %s66 = sadd.s32 %s65, 1
    %s67 = scalar_select %p64, %s65, %s66
    %p70 = pneg %p64
    %p71 = scmp.eq.s32.totalorder %s8, 1
    %p72 = por %p70, %p71
    %p73 = scmp.ne.s32.totalorder %s65, %s68
    %p74 = scmp.eq.s32.totalorder %s8, 0
    %p75 = por %p73, %p74
    %p76 = scmp.ne.s32.totalorder %s65, %s68
    %p77 = scmp.eq.s32.totalorder %s13, 1
    %p78 = por %p76, %p77
    %p79 = scmp.ne.s32.totalorder %s68, %s69
    %p80 = scmp.eq.s32.totalorder %s13, 0
    %p81 = por %p79, %p80
    %p82 = scmp.ne.s32.totalorder %s68, %s69
    %p83 = scmp.eq.s32.totalorder %s14, 1
    %p84 = por %p82, %p83
    %p86 = scmp.ne.s32.totalorder %s69, %s85
    %p87 = scmp.eq.s32.totalorder %s14, 0
    %p88 = por %p86, %p87
    %p89 = scmp.le.s32.totalorder 1, %s8
    %p90 = scmp.lt.s32.totalorder %s8, 3
    %p91 = pnand %p89, %p90
    %p92 = pneg %p91
    // Predicated region
    $region9: #{_fifa_pallas.1} parent=5 // pred_check
      _
    $region10: #{_fifa_pallas.1} parent=5 // pred_check_branch
      %94 = sbr.rel (%p91) target = $region12
    $region11: #{_fifa_pallas.1} parent=5 // pred_region
      %s95 = ssub.s32 %s8, 1
      // Predicated region
      $region13: #{_fifa_pallas.1} parent=11 // pred_check
        %p96 = pneg %p55
      $region14: #{_fifa_pallas.1} parent=11 // pred_check_branch
        %98 = sbr.rel (%p96) target = $region16
      $region15: #{_fifa_pallas.1} parent=11 // pred_region
        _
      $region16: #{_fifa_pallas.1} parent=11 // pred_fallthru
        _
    $region12: #{_fifa_pallas.1} parent=5 // pred_fallthru
      _
    %p99 = scmp.lt.s32.totalorder %s8, 2
    // Predicated region
    $region17: #{_fifa_pallas.1} parent=5 // pred_check
      %p100 = pneg %p99
    $region18: #{_fifa_pallas.1} parent=5 // pred_check_branch
      %102 = sbr.rel (%p100) target = $region20
    $region19: #{_fifa_pallas.1} parent=5 // pred_region
      // Predicated region
      $region21: #{_fifa_pallas.1} parent=19 // pred_check
        %p103 = pneg %p28
      $region22: #{_fifa_pallas.1} parent=19 // pred_check_branch
        %105 = sbr.rel (%p103) target = $region24
      $region23: #{_fifa_pallas.1} parent=19 // pred_region
        %s106 = smul.u32 128, %s8
        %p107 = scmp.lt.s32.totalorder %s106, 255
        %s108 = scalar_select %p107, %s106, 255
        %s109 = smul.addr %s108, 8
        %s110 = scalar_lea.vmem %s0, %s109
        %s111 = smul.u32 128, %s8
      $region24: #{_fifa_pallas.1} parent=19 // pred_fallthru
        _
    $region20: #{_fifa_pallas.1} parent=5 // pred_fallthru
      _
    %p112 = scmp.le.s32.totalorder 1, %s8
    %p113 = scmp.lt.s32.totalorder %s8, 3
    %p114 = pnand %p112, %p113
    %p115 = pneg %p114
    // Predicated region
    $region25: #{_fifa_pallas.1} parent=5 // pred_check
      _
    $region26: #{_fifa_pallas.1} parent=5 // pred_check_branch
      %117 = sbr.rel (%p114) target = $region28
    $region27: #{_fifa_pallas.1} parent=5 // pred_region
      %s118 = ssub.s32 %s8, 1
      %s119 = smul.u32 128, %s13
      %p120 = scmp.lt.s32.totalorder %s119, 255
      %s121 = scalar_select %p120, %s119, 255
      %s122 = smul.addr %s121, 8
      %s123 = scalar_lea.vmem %s0, %s122
      %p124 = pneg %p34
      %p125 = pneg %p31
      %p126 = pneg %p55
      %p127 = pneg %p52
      %p128 = pneg %p81
      %p129 = pneg %p78
      %s130 = smul.u32 128, %s13
      %p131 = scmp.lt.s32.totalorder %s130, 255
      %s132 = scalar_select %p131, %s130, 255
      %s133 = smul.addr %s132, 8
      %s134 = scalar_lea.vmem %s2, %s133
      %s135 = smul.u32 128, %s13
      %p136 = scmp.lt.s32.totalorder %s135, 255
      %s137 = scalar_select %p136, %s135, 255
      %s138 = smul.addr %s137, 8
      %s139 = scalar_lea.vmem %s0, %s138
      %s140 = smul.u32 128, %s13
      %s141 = smul.u32 128, %s13
      %p142 = scmp.lt.s32.totalorder %s141, 255
      %s143 = scalar_select %p142, %s141, 255
      %s144 = smul.addr %s143, 8
      %s145 = scalar_lea.vmem %s2, %s144
      %s146 = smul.u32 128, %s13
      %v147 = vld [vmem:[%s139] sm:$0xff]
      %v148 = vld [vmem:[%s139 + $0x8] sm:$0xff]
      %v149 = vld [vmem:[%s139 + $0x10] sm:$0xff]
      %v150 = vld [vmem:[%s139 + $0x18] sm:$0xff]
      %v151 = vld [vmem:[%s139 + $0x20] sm:$0xff]
      %v152 = vld [vmem:[%s139 + $0x28] sm:$0xff]
      %v153 = vld [vmem:[%s139 + $0x30] sm:$0xff]
      %v154 = vld [vmem:[%s139 + $0x38] sm:$0xff]
      %v155 = vld [vmem:[%s139 + $0x40] sm:$0xff]
      %v156 = vld [vmem:[%s139 + $0x48] sm:$0xff]
      %v157 = vld [vmem:[%s139 + $0x50] sm:$0xff]
      %v158 = vld [vmem:[%s139 + $0x58] sm:$0xff]
      %v159 = vld [vmem:[%s139 + $0x60] sm:$0xff]
      %v160 = vld [vmem:[%s139 + $0x68] sm:$0xff]
      %v161 = vld [vmem:[%s139 + $0x70] sm:$0xff]
      %v162 = vld [vmem:[%s139 + $0x78] sm:$0xff]
      %v163 = vld [vmem:[%s139 + $0x80] sm:$0xff]
      %v164 = vld [vmem:[%s139 + $0x88] sm:$0xff]
      %v165 = vld [vmem:[%s139 + $0x90] sm:$0xff]
      %v166 = vld [vmem:[%s139 + $0x98] sm:$0xff]
      %v167 = vld [vmem:[%s139 + $0xa0] sm:$0xff]
      %v168 = vld [vmem:[%s139 + $0xa8] sm:$0xff]
      %v169 = vld [vmem:[%s139 + $0xb0] sm:$0xff]
      %v170 = vld [vmem:[%s139 + $0xb8] sm:$0xff]
      %v171 = vld [vmem:[%s139 + $0xc0] sm:$0xff]
      %v172 = vld [vmem:[%s139 + $0xc8] sm:$0xff]
      %v173 = vld [vmem:[%s139 + $0xd0] sm:$0xff]
      %v174 = vld [vmem:[%s139 + $0xd8] sm:$0xff]
      %v175 = vld [vmem:[%s139 + $0xe0] sm:$0xff]
      %v176 = vld [vmem:[%s139 + $0xe8] sm:$0xff]
      %v177 = vld [vmem:[%s139 + $0xf0] sm:$0xff]
      %v178 = vld [vmem:[%s139 + $0xf8] sm:$0xff]
      %v179 = vld [vmem:[%s139 + $0x100] sm:$0xff]
      %v180 = vld [vmem:[%s139 + $0x108] sm:$0xff]
      %v181 = vld [vmem:[%s139 + $0x110] sm:$0xff]
      %v182 = vld [vmem:[%s139 + $0x118] sm:$0xff]
      %v183 = vld [vmem:[%s139 + $0x120] sm:$0xff]
      %v184 = vld [vmem:[%s139 + $0x128] sm:$0xff]
      %v185 = vld [vmem:[%s139 + $0x130] sm:$0xff]
      %v186 = vld [vmem:[%s139 + $0x138] sm:$0xff]
      %v187 = vld [vmem:[%s139 + $0x140] sm:$0xff]
      %v188 = vld [vmem:[%s139 + $0x148] sm:$0xff]
      %v189 = vld [vmem:[%s139 + $0x150] sm:$0xff]
      %v190 = vld [vmem:[%s139 + $0x158] sm:$0xff]
      %v191 = vld [vmem:[%s139 + $0x160] sm:$0xff]
      %v192 = vld [vmem:[%s139 + $0x168] sm:$0xff]
      %v193 = vld [vmem:[%s139 + $0x170] sm:$0xff]
      %v194 = vld [vmem:[%s139 + $0x178] sm:$0xff]
      %v195 = vld [vmem:[%s139 + $0x180] sm:$0xff]
      %v196 = vld [vmem:[%s139 + $0x188] sm:$0xff]
      %v197 = vld [vmem:[%s139 + $0x190] sm:$0xff]
      %v198 = vld [vmem:[%s139 + $0x198] sm:$0xff]
      %v199 = vld [vmem:[%s139 + $0x1a0] sm:$0xff]
      %v200 = vld [vmem:[%s139 + $0x1a8] sm:$0xff]
      %v201 = vld [vmem:[%s139 + $0x1b0] sm:$0xff]
      %v202 = vld [vmem:[%s139 + $0x1b8] sm:$0xff]
      %v203 = vld [vmem:[%s139 + $0x1c0] sm:$0xff]
      %v204 = vld [vmem:[%s139 + $0x1c8] sm:$0xff]
      %v205 = vld [vmem:[%s139 + $0x1d0] sm:$0xff]
      %v206 = vld [vmem:[%s139 + $0x1d8] sm:$0xff]
      %v207 = vld [vmem:[%s139 + $0x1e0] sm:$0xff]
      %v208 = vld [vmem:[%s139 + $0x1e8] sm:$0xff]
      %v209 = vld [vmem:[%s139 + $0x1f0] sm:$0xff]
      %v210 = vld [vmem:[%s139 + $0x1f8] sm:$0xff]
      %v211 = vld [vmem:[%s139 + $0x200] sm:$0xff]
      %v212 = vld [vmem:[%s139 + $0x208] sm:$0xff]
      %v213 = vld [vmem:[%s139 + $0x210] sm:$0xff]
      %v214 = vld [vmem:[%s139 + $0x218] sm:$0xff]
      %v215 = vld [vmem:[%s139 + $0x220] sm:$0xff]
      %v216 = vld [vmem:[%s139 + $0x228] sm:$0xff]
      %v217 = vld [vmem:[%s139 + $0x230] sm:$0xff]
      %v218 = vld [vmem:[%s139 + $0x238] sm:$0xff]
      %v219 = vld [vmem:[%s139 + $0x240] sm:$0xff]
      %v220 = vld [vmem:[%s139 + $0x248] sm:$0xff]
      %v221 = vld [vmem:[%s139 + $0x250] sm:$0xff]
      %v222 = vld [vmem:[%s139 + $0x258] sm:$0xff]
      %v223 = vld [vmem:[%s139 + $0x260] sm:$0xff]
      %v224 = vld [vmem:[%s139 + $0x268] sm:$0xff]
      %v225 = vld [vmem:[%s139 + $0x270] sm:$0xff]
      %v226 = vld [vmem:[%s139 + $0x278] sm:$0xff]
      %v227 = vld [vmem:[%s139 + $0x280] sm:$0xff]
      %v228 = vld [vmem:[%s139 + $0x288] sm:$0xff]
      %v229 = vld [vmem:[%s139 + $0x290] sm:$0xff]
      %v230 = vld [vmem:[%s139 + $0x298] sm:$0xff]
      %v231 = vld [vmem:[%s139 + $0x2a0] sm:$0xff]
      %v232 = vld [vmem:[%s139 + $0x2a8] sm:$0xff]
      %v233 = vld [vmem:[%s139 + $0x2b0] sm:$0xff]
      %v234 = vld [vmem:[%s139 + $0x2b8] sm:$0xff]
      %v235 = vld [vmem:[%s139 + $0x2c0] sm:$0xff]
      %v236 = vld [vmem:[%s139 + $0x2c8] sm:$0xff]
      %v237 = vld [vmem:[%s139 + $0x2d0] sm:$0xff]
      %v238 = vld [vmem:[%s139 + $0x2d8] sm:$0xff]
      %v239 = vld [vmem:[%s139 + $0x2e0] sm:$0xff]
      %v240 = vld [vmem:[%s139 + $0x2e8] sm:$0xff]
      %v241 = vld [vmem:[%s139 + $0x2f0] sm:$0xff]
      %v242 = vld [vmem:[%s139 + $0x2f8] sm:$0xff]
      %v243 = vld [vmem:[%s139 + $0x300] sm:$0xff]
      %v244 = vld [vmem:[%s139 + $0x308] sm:$0xff]
      %v245 = vld [vmem:[%s139 + $0x310] sm:$0xff]
      %v246 = vld [vmem:[%s139 + $0x318] sm:$0xff]
      %v247 = vld [vmem:[%s139 + $0x320] sm:$0xff]
      %v248 = vld [vmem:[%s139 + $0x328] sm:$0xff]
      %v249 = vld [vmem:[%s139 + $0x330] sm:$0xff]
      %v250 = vld [vmem:[%s139 + $0x338] sm:$0xff]
      %v251 = vld [vmem:[%s139 + $0x340] sm:$0xff]
      %v252 = vld [vmem:[%s139 + $0x348] sm:$0xff]
      %v253 = vld [vmem:[%s139 + $0x350] sm:$0xff]
      %v254 = vld [vmem:[%s139 + $0x358] sm:$0xff]
      %v255 = vld [vmem:[%s139 + $0x360] sm:$0xff]
      %v256 = vld [vmem:[%s139 + $0x368] sm:$0xff]
      %v257 = vld [vmem:[%s139 + $0x370] sm:$0xff]
      %v258 = vld [vmem:[%s139 + $0x378] sm:$0xff]
      %v259 = vld [vmem:[%s139 + $0x380] sm:$0xff]
      %v260 = vld [vmem:[%s139 + $0x388] sm:$0xff]
      %v261 = vld [vmem:[%s139 + $0x390] sm:$0xff]
      %v262 = vld [vmem:[%s139 + $0x398] sm:$0xff]
      %v263 = vld [vmem:[%s139 + $0x3a0] sm:$0xff]
      %v264 = vld [vmem:[%s139 + $0x3a8] sm:$0xff]
      %v265 = vld [vmem:[%s139 + $0x3b0] sm:$0xff]
      %v266 = vld [vmem:[%s139 + $0x3b8] sm:$0xff]
      %v267 = vld [vmem:[%s139 + $0x3c0] sm:$0xff]
      %v268 = vld [vmem:[%s139 + $0x3c8] sm:$0xff]
      %v269 = vld [vmem:[%s139 + $0x3d0] sm:$0xff]
      %v270 = vld [vmem:[%s139 + $0x3d8] sm:$0xff]
      %v271 = vld [vmem:[%s139 + $0x3e0] sm:$0xff]
      %v272 = vld [vmem:[%s139 + $0x3e8] sm:$0xff]
      %v273 = vld [vmem:[%s139 + $0x3f0] sm:$0xff]
      %v274 = vld [vmem:[%s139 + $0x3f8] sm:$0xff]
      %vm275 = vcmp.lt.f32.partialorder %v147, 0.0
      %vm276 = vcmp.lt.f32.partialorder %v148, 0.0
      %vm277 = vcmp.lt.f32.partialorder %v149, 0.0
      %vm278 = vcmp.lt.f32.partialorder %v150, 0.0
      %vm279 = vcmp.lt.f32.partialorder %v151, 0.0
      %vm280 = vcmp.lt.f32.partialorder %v152, 0.0
      %vm281 = vcmp.lt.f32.partialorder %v153, 0.0
      %vm282 = vcmp.lt.f32.partialorder %v154, 0.0
      %vm283 = vcmp.lt.f32.partialorder %v155, 0.0
      %vm284 = vcmp.lt.f32.partialorder %v156, 0.0
      %vm285 = vcmp.lt.f32.partialorder %v157, 0.0
      %vm286 = vcmp.lt.f32.partialorder %v158, 0.0
      %vm287 = vcmp.lt.f32.partialorder %v159, 0.0
      %vm288 = vcmp.lt.f32.partialorder %v160, 0.0
      %vm289 = vcmp.lt.f32.partialorder %v161, 0.0
      %vm290 = vcmp.lt.f32.partialorder %v162, 0.0
      %vm291 = vcmp.lt.f32.partialorder %v163, 0.0
      %vm292 = vcmp.lt.f32.partialorder %v164, 0.0
      %vm293 = vcmp.lt.f32.partialorder %v165, 0.0
      %vm294 = vcmp.lt.f32.partialorder %v166, 0.0
      %vm295 = vcmp.lt.f32.partialorder %v167, 0.0
      %vm296 = vcmp.lt.f32.partialorder %v168, 0.0
      %vm297 = vcmp.lt.f32.partialorder %v169, 0.0
      %vm298 = vcmp.lt.f32.partialorder %v170, 0.0
      %vm299 = vcmp.lt.f32.partialorder %v171, 0.0
      %vm300 = vcmp.lt.f32.partialorder %v172, 0.0
      %vm301 = vcmp.lt.f32.partialorder %v173, 0.0
      %vm302 = vcmp.lt.f32.partialorder %v174, 0.0
      %vm303 = vcmp.lt.f32.partialorder %v175, 0.0
      %vm304 = vcmp.lt.f32.partialorder %v176, 0.0
      %vm305 = vcmp.lt.f32.partialorder %v177, 0.0
      %vm306 = vcmp.lt.f32.partialorder %v178, 0.0
      %vm307 = vcmp.lt.f32.partialorder %v179, 0.0
      %vm308 = vcmp.lt.f32.partialorder %v180, 0.0
      %vm309 = vcmp.lt.f32.partialorder %v181, 0.0
      %vm310 = vcmp.lt.f32.partialorder %v182, 0.0
      %vm311 = vcmp.lt.f32.partialorder %v183, 0.0
      %vm312 = vcmp.lt.f32.partialorder %v184, 0.0
      %vm313 = vcmp.lt.f32.partialorder %v185, 0.0
      %vm314 = vcmp.lt.f32.partialorder %v186, 0.0
      %vm315 = vcmp.lt.f32.partialorder %v187, 0.0
      %vm316 = vcmp.lt.f32.partialorder %v188, 0.0
      %vm317 = vcmp.lt.f32.partialorder %v189, 0.0
      %vm318 = vcmp.lt.f32.partialorder %v190, 0.0
      %vm319 = vcmp.lt.f32.partialorder %v191, 0.0
      %vm320 = vcmp.lt.f32.partialorder %v192, 0.0
      %vm321 = vcmp.lt.f32.partialorder %v193, 0.0
      %vm322 = vcmp.lt.f32.partialorder %v194, 0.0
      %vm323 = vcmp.lt.f32.partialorder %v195, 0.0
      %vm324 = vcmp.lt.f32.partialorder %v196, 0.0
      %vm325 = vcmp.lt.f32.partialorder %v197, 0.0
      %vm326 = vcmp.lt.f32.partialorder %v198, 0.0
      %vm327 = vcmp.lt.f32.partialorder %v199, 0.0
      %vm328 = vcmp.lt.f32.partialorder %v200, 0.0
      %vm329 = vcmp.lt.f32.partialorder %v201, 0.0
      %vm330 = vcmp.lt.f32.partialorder %v202, 0.0
      %vm331 = vcmp.lt.f32.partialorder %v203, 0.0
      %vm332 = vcmp.lt.f32.partialorder %v204, 0.0
      %vm333 = vcmp.lt.f32.partialorder %v205, 0.0
      %vm334 = vcmp.lt.f32.partialorder %v206, 0.0
      %vm335 = vcmp.lt.f32.partialorder %v207, 0.0
      %vm336 = vcmp.lt.f32.partialorder %v208, 0.0
      %vm337 = vcmp.lt.f32.partialorder %v209, 0.0
      %vm338 = vcmp.lt.f32.partialorder %v210, 0.0
      %vm339 = vcmp.lt.f32.partialorder %v211, 0.0
      %vm340 = vcmp.lt.f32.partialorder %v212, 0.0
      %vm341 = vcmp.lt.f32.partialorder %v213, 0.0
      %vm342 = vcmp.lt.f32.partialorder %v214, 0.0
      %vm343 = vcmp.lt.f32.partialorder %v215, 0.0
      %vm344 = vcmp.lt.f32.partialorder %v216, 0.0
      %vm345 = vcmp.lt.f32.partialorder %v217, 0.0
      %vm346 = vcmp.lt.f32.partialorder %v218, 0.0
      %vm347 = vcmp.lt.f32.partialorder %v219, 0.0
      %vm348 = vcmp.lt.f32.partialorder %v220, 0.0
      %vm349 = vcmp.lt.f32.partialorder %v221, 0.0
      %vm350 = vcmp.lt.f32.partialorder %v222, 0.0
      %vm351 = vcmp.lt.f32.partialorder %v223, 0.0
      %vm352 = vcmp.lt.f32.partialorder %v224, 0.0
      %vm353 = vcmp.lt.f32.partialorder %v225, 0.0
      %vm354 = vcmp.lt.f32.partialorder %v226, 0.0
      %vm355 = vcmp.lt.f32.partialorder %v227, 0.0
      %vm356 = vcmp.lt.f32.partialorder %v228, 0.0
      %vm357 = vcmp.lt.f32.partialorder %v229, 0.0
      %vm358 = vcmp.lt.f32.partialorder %v230, 0.0
      %vm359 = vcmp.lt.f32.partialorder %v231, 0.0
      %vm360 = vcmp.lt.f32.partialorder %v232, 0.0
      %vm361 = vcmp.lt.f32.partialorder %v233, 0.0
      %vm362 = vcmp.lt.f32.partialorder %v234, 0.0
      %vm363 = vcmp.lt.f32.partialorder %v235, 0.0
      %vm364 = vcmp.lt.f32.partialorder %v236, 0.0
      %vm365 = vcmp.lt.f32.partialorder %v237, 0.0
      %vm366 = vcmp.lt.f32.partialorder %v238, 0.0
      %vm367 = vcmp.lt.f32.partialorder %v239, 0.0
      %vm368 = vcmp.lt.f32.partialorder %v240, 0.0
      %vm369 = vcmp.lt.f32.partialorder %v241, 0.0
      %vm370 = vcmp.lt.f32.partialorder %v242, 0.0
      %vm371 = vcmp.lt.f32.partialorder %v243, 0.0
      %vm372 = vcmp.lt.f32.partialorder %v244, 0.0
      %vm373 = vcmp.lt.f32.partialorder %v245, 0.0
      %vm374 = vcmp.lt.f32.partialorder %v246, 0.0
      %vm375 = vcmp.lt.f32.partialorder %v247, 0.0
      %vm376 = vcmp.lt.f32.partialorder %v248, 0.0
      %vm377 = vcmp.lt.f32.partialorder %v249, 0.0
      %vm378 = vcmp.lt.f32.partialorder %v250, 0.0
      %vm379 = vcmp.lt.f32.partialorder %v251, 0.0
      %vm380 = vcmp.lt.f32.partialorder %v252, 0.0
      %vm381 = vcmp.lt.f32.partialorder %v253, 0.0
      %vm382 = vcmp.lt.f32.partialorder %v254, 0.0
      %vm383 = vcmp.lt.f32.partialorder %v255, 0.0
      %vm384 = vcmp.lt.f32.partialorder %v256, 0.0
      %vm385 = vcmp.lt.f32.partialorder %v257, 0.0
      %vm386 = vcmp.lt.f32.partialorder %v258, 0.0
      %vm387 = vcmp.lt.f32.partialorder %v259, 0.0
      %vm388 = vcmp.lt.f32.partialorder %v260, 0.0
      %vm389 = vcmp.lt.f32.partialorder %v261, 0.0
      %vm390 = vcmp.lt.f32.partialorder %v262, 0.0
      %vm391 = vcmp.lt.f32.partialorder %v263, 0.0
      %vm392 = vcmp.lt.f32.partialorder %v264, 0.0
      %vm393 = vcmp.lt.f32.partialorder %v265, 0.0
      %vm394 = vcmp.lt.f32.partialorder %v266, 0.0
      %vm395 = vcmp.lt.f32.partialorder %v267, 0.0
      %vm396 = vcmp.lt.f32.partialorder %v268, 0.0
      %vm397 = vcmp.lt.f32.partialorder %v269, 0.0
      %vm398 = vcmp.lt.f32.partialorder %v270, 0.0
      %vm399 = vcmp.lt.f32.partialorder %v271, 0.0
      %vm400 = vcmp.lt.f32.partialorder %v272, 0.0
      %vm401 = vcmp.lt.f32.partialorder %v273, 0.0
      %vm402 = vcmp.lt.f32.partialorder %v274, 0.0
      %v403 = vceil.f32 %v147
      %v404 = vceil.f32 %v148
      %v405 = vceil.f32 %v149
      %v406 = vceil.f32 %v150
      %v407 = vceil.f32 %v151
      %v408 = vceil.f32 %v152
      %v409 = vceil.f32 %v153
      %v410 = vceil.f32 %v154
      %v411 = vceil.f32 %v155
      %v412 = vceil.f32 %v156
      %v413 = vceil.f32 %v157
      %v414 = vceil.f32 %v158
      %v415 = vceil.f32 %v159
      %v416 = vceil.f32 %v160
      %v417 = vceil.f32 %v161
      %v418 = vceil.f32 %v162
      %v419 = vceil.f32 %v163
      %v420 = vceil.f32 %v164
      %v421 = vceil.f32 %v165
      %v422 = vceil.f32 %v166
      %v423 = vceil.f32 %v167
      %v424 = vceil.f32 %v168
      %v425 = vceil.f32 %v169
      %v426 = vceil.f32 %v170
      %v427 = vceil.f32 %v171
      %v428 = vceil.f32 %v172
      %v429 = vceil.f32 %v173
      %v430 = vceil.f32 %v174
      %v431 = vceil.f32 %v175
      %v432 = vceil.f32 %v176
      %v433 = vceil.f32 %v177
      %v434 = vceil.f32 %v178
      %v435 = vceil.f32 %v179
      %v436 = vceil.f32 %v180
      %v437 = vceil.f32 %v181
      %v438 = vceil.f32 %v182
      %v439 = vceil.f32 %v183
      %v440 = vceil.f32 %v184
      %v441 = vceil.f32 %v185
      %v442 = vceil.f32 %v186
      %v443 = vceil.f32 %v187
      %v444 = vceil.f32 %v188
      %v445 = vceil.f32 %v189
      %v446 = vceil.f32 %v190
      %v447 = vceil.f32 %v191
      %v448 = vceil.f32 %v192
      %v449 = vceil.f32 %v193
      %v450 = vceil.f32 %v194
      %v451 = vceil.f32 %v195
      %v452 = vceil.f32 %v196
      %v453 = vceil.f32 %v197
      %v454 = vceil.f32 %v198
      %v455 = vceil.f32 %v199
      %v456 = vceil.f32 %v200
      %v457 = vceil.f32 %v201
      %v458 = vceil.f32 %v202
      %v459 = vceil.f32 %v203
      %v460 = vceil.f32 %v204
      %v461 = vceil.f32 %v205
      %v462 = vceil.f32 %v206
      %v463 = vceil.f32 %v207
      %v464 = vceil.f32 %v208
      %v465 = vceil.f32 %v209
      %v466 = vceil.f32 %v210
      %v467 = vceil.f32 %v211
      %v468 = vceil.f32 %v212
      %v469 = vceil.f32 %v213
      %v470 = vceil.f32 %v214
      %v471 = vceil.f32 %v215
      %v472 = vceil.f32 %v216
      %v473 = vceil.f32 %v217
      %v474 = vceil.f32 %v218
      %v475 = vceil.f32 %v219
      %v476 = vceil.f32 %v220
      %v477 = vceil.f32 %v221
      %v478 = vceil.f32 %v222
      %v479 = vceil.f32 %v223
      %v480 = vceil.f32 %v224
      %v481 = vceil.f32 %v225
      %v482 = vceil.f32 %v226
      %v483 = vceil.f32 %v227
      %v484 = vceil.f32 %v228
      %v485 = vceil.f32 %v229
      %v486 = vceil.f32 %v230
      %v487 = vceil.f32 %v231
      %v488 = vceil.f32 %v232
      %v489 = vceil.f32 %v233
      %v490 = vceil.f32 %v234
      %v491 = vceil.f32 %v235
      %v492 = vceil.f32 %v236
      %v493 = vceil.f32 %v237
      %v494 = vceil.f32 %v238
      %v495 = vceil.f32 %v239
      %v496 = vceil.f32 %v240
      %v497 = vceil.f32 %v241
      %v498 = vceil.f32 %v242
      %v499 = vceil.f32 %v243
      %v500 = vceil.f32 %v244
      %v501 = vceil.f32 %v245
      %v502 = vceil.f32 %v246
      %v503 = vceil.f32 %v247
      %v504 = vceil.f32 %v248
      %v505 = vceil.f32 %v249
      %v506 = vceil.f32 %v250
      %v507 = vceil.f32 %v251
      %v508 = vceil.f32 %v252
      %v509 = vceil.f32 %v253
      %v510 = vceil.f32 %v254
      %v511 = vceil.f32 %v255
      %v512 = vceil.f32 %v256
      %v513 = vceil.f32 %v257
      %v514 = vceil.f32 %v258
      %v515 = vceil.f32 %v259
      %v516 = vceil.f32 %v260
      %v517 = vceil.f32 %v261
      %v518 = vceil.f32 %v262
      %v519 = vceil.f32 %v263
      %v520 = vceil.f32 %v264
      %v521 = vceil.f32 %v265
      %v522 = vceil.f32 %v266
      %v523 = vceil.f32 %v267
      %v524 = vceil.f32 %v268
      %v525 = vceil.f32 %v269
      %v526 = vceil.f32 %v270
      %v527 = vceil.f32 %v271
      %v528 = vceil.f32 %v272
      %v529 = vceil.f32 %v273
      %v530 = vceil.f32 %v274
      %v531 = vfloor.f32 %v147
      %v532 = vfloor.f32 %v148
      %v533 = vfloor.f32 %v149
      %v534 = vfloor.f32 %v150
      %v535 = vfloor.f32 %v151
      %v536 = vfloor.f32 %v152
      %v537 = vfloor.f32 %v153
      %v538 = vfloor.f32 %v154
      %v539 = vfloor.f32 %v155
      %v540 = vfloor.f32 %v156
      %v541 = vfloor.f32 %v157
      %v542 = vfloor.f32 %v158
      %v543 = vfloor.f32 %v159
      %v544 = vfloor.f32 %v160
      %v545 = vfloor.f32 %v161
      %v546 = vfloor.f32 %v162
      %v547 = vfloor.f32 %v163
      %v548 = vfloor.f32 %v164
      %v549 = vfloor.f32 %v165
      %v550 = vfloor.f32 %v166
      %v551 = vfloor.f32 %v167
      %v552 = vfloor.f32 %v168
      %v553 = vfloor.f32 %v169
      %v554 = vfloor.f32 %v170
      %v555 = vfloor.f32 %v171
      %v556 = vfloor.f32 %v172
      %v557 = vfloor.f32 %v173
      %v558 = vfloor.f32 %v174
      %v559 = vfloor.f32 %v175
      %v560 = vfloor.f32 %v176
      %v561 = vfloor.f32 %v177
      %v562 = vfloor.f32 %v178
      %v563 = vfloor.f32 %v179
      %v564 = vfloor.f32 %v180
      %v565 = vfloor.f32 %v181
      %v566 = vfloor.f32 %v182
      %v567 = vfloor.f32 %v183
      %v568 = vfloor.f32 %v184
      %v569 = vfloor.f32 %v185
      %v570 = vfloor.f32 %v186
      %v571 = vfloor.f32 %v187
      %v572 = vfloor.f32 %v188
      %v573 = vfloor.f32 %v189
      %v574 = vfloor.f32 %v190
      %v575 = vfloor.f32 %v191
      %v576 = vfloor.f32 %v192
      %v577 = vfloor.f32 %v193
      %v578 = vfloor.f32 %v194
      %v579 = vfloor.f32 %v195
      %v580 = vfloor.f32 %v196
      %v581 = vfloor.f32 %v197
      %v582 = vfloor.f32 %v198
      %v583 = vfloor.f32 %v199
      %v584 = vfloor.f32 %v200
      %v585 = vfloor.f32 %v201
      %v586 = vfloor.f32 %v202
      %v587 = vfloor.f32 %v203
      %v588 = vfloor.f32 %v204
      %v589 = vfloor.f32 %v205
      %v590 = vfloor.f32 %v206
      %v591 = vfloor.f32 %v207
      %v592 = vfloor.f32 %v208
      %v593 = vfloor.f32 %v209
      %v594 = vfloor.f32 %v210
      %v595 = vfloor.f32 %v211
      %v596 = vfloor.f32 %v212
      %v597 = vfloor.f32 %v213
      %v598 = vfloor.f32 %v214
      %v599 = vfloor.f32 %v215
      %v600 = vfloor.f32 %v216
      %v601 = vfloor.f32 %v217
      %v602 = vfloor.f32 %v218
      %v603 = vfloor.f32 %v219
      %v604 = vfloor.f32 %v220
      %v605 = vfloor.f32 %v221
      %v606 = vfloor.f32 %v222
      %v607 = vfloor.f32 %v223
      %v608 = vfloor.f32 %v224
      %v609 = vfloor.f32 %v225
      %v610 = vfloor.f32 %v226
      %v611 = vfloor.f32 %v227
      %v612 = vfloor.f32 %v228
      %v613 = vfloor.f32 %v229
      %v614 = vfloor.f32 %v230
      %v615 = vfloor.f32 %v231
      %v616 = vfloor.f32 %v232
      %v617 = vfloor.f32 %v233
      %v618 = vfloor.f32 %v234
      %v619 = vfloor.f32 %v235
      %v620 = vfloor.f32 %v236
      %v621 = vfloor.f32 %v237
      %v622 = vfloor.f32 %v238
      %v623 = vfloor.f32 %v239
      %v624 = vfloor.f32 %v240
      %v625 = vfloor.f32 %v241
      %v626 = vfloor.f32 %v242
      %v627 = vfloor.f32 %v243
      %v628 = vfloor.f32 %v244
      %v629 = vfloor.f32 %v245
      %v630 = vfloor.f32 %v246
      %v631 = vfloor.f32 %v247
      %v632 = vfloor.f32 %v248
      %v633 = vfloor.f32 %v249
      %v634 = vfloor.f32 %v250
      %v635 = vfloor.f32 %v251
      %v636 = vfloor.f32 %v252
      %v637 = vfloor.f32 %v253
      %v638 = vfloor.f32 %v254
      %v639 = vfloor.f32 %v255
      %v640 = vfloor.f32 %v256
      %v641 = vfloor.f32 %v257
      %v642 = vfloor.f32 %v258
      %v643 = vfloor.f32 %v259
      %v644 = vfloor.f32 %v260
      %v645 = vfloor.f32 %v261
      %v646 = vfloor.f32 %v262
      %v647 = vfloor.f32 %v263
      %v648 = vfloor.f32 %v264
      %v649 = vfloor.f32 %v265
      %v650 = vfloor.f32 %v266
      %v651 = vfloor.f32 %v267
      %v652 = vfloor.f32 %v268
      %v653 = vfloor.f32 %v269
      %v654 = vfloor.f32 %v270
      %v655 = vfloor.f32 %v271
      %v656 = vfloor.f32 %v272
      %v657 = vfloor.f32 %v273
      %v658 = vfloor.f32 %v274
      %v659 = vsel %vm275, %v403, %v531
      %v660 = vsel %vm276, %v404, %v532
      %v661 = vsel %vm277, %v405, %v533
      %v662 = vsel %vm278, %v406, %v534
      %v663 = vsel %vm279, %v407, %v535
      %v664 = vsel %vm280, %v408, %v536
      %v665 = vsel %vm281, %v409, %v537
      %v666 = vsel %vm282, %v410, %v538
      %v667 = vsel %vm283, %v411, %v539
      %v668 = vsel %vm284, %v412, %v540
      %v669 = vsel %vm285, %v413, %v541
      %v670 = vsel %vm286, %v414, %v542
      %v671 = vsel %vm287, %v415, %v543
      %v672 = vsel %vm288, %v416, %v544
      %v673 = vsel %vm289, %v417, %v545
      %v674 = vsel %vm290, %v418, %v546
      %v675 = vsel %vm291, %v419, %v547
      %v676 = vsel %vm292, %v420, %v548
      %v677 = vsel %vm293, %v421, %v549
      %v678 = vsel %vm294, %v422, %v550
      %v679 = vsel %vm295, %v423, %v551
      %v680 = vsel %vm296, %v424, %v552
      %v681 = vsel %vm297, %v425, %v553
      %v682 = vsel %vm298, %v426, %v554
      %v683 = vsel %vm299, %v427, %v555
      %v684 = vsel %vm300, %v428, %v556
      %v685 = vsel %vm301, %v429, %v557
      %v686 = vsel %vm302, %v430, %v558
      %v687 = vsel %vm303, %v431, %v559
      %v688 = vsel %vm304, %v432, %v560
      %v689 = vsel %vm305, %v433, %v561
      %v690 = vsel %vm306, %v434, %v562
      %v691 = vsel %vm307, %v435, %v563
      %v692 = vsel %vm308, %v436, %v564
      %v693 = vsel %vm309, %v437, %v565
      %v694 = vsel %vm310, %v438, %v566
      %v695 = vsel %vm311, %v439, %v567
      %v696 = vsel %vm312, %v440, %v568
      %v697 = vsel %vm313, %v441, %v569
      %v698 = vsel %vm314, %v442, %v570
      %v699 = vsel %vm315, %v443, %v571
      %v700 = vsel %vm316, %v444, %v572
      %v701 = vsel %vm317, %v445, %v573
      %v702 = vsel %vm318, %v446, %v574
      %v703 = vsel %vm319, %v447, %v575
      %v704 = vsel %vm320, %v448, %v576
      %v705 = vsel %vm321, %v449, %v577
      %v706 = vsel %vm322, %v450, %v578
      %v707 = vsel %vm323, %v451, %v579
      %v708 = vsel %vm324, %v452, %v580
      %v709 = vsel %vm325, %v453, %v581
      %v710 = vsel %vm326, %v454, %v582
      %v711 = vsel %vm327, %v455, %v583
      %v712 = vsel %vm328, %v456, %v584
      %v713 = vsel %vm329, %v457, %v585
      %v714 = vsel %vm330, %v458, %v586
      %v715 = vsel %vm331, %v459, %v587
      %v716 = vsel %vm332, %v460, %v588
      %v717 = vsel %vm333, %v461, %v589
      %v718 = vsel %vm334, %v462, %v590
      %v719 = vsel %vm335, %v463, %v591
      %v720 = vsel %vm336, %v464, %v592
      %v721 = vsel %vm337, %v465, %v593
      %v722 = vsel %vm338, %v466, %v594
      %v723 = vsel %vm339, %v467, %v595
      %v724 = vsel %vm340, %v468, %v596
      %v725 = vsel %vm341, %v469, %v597
      %v726 = vsel %vm342, %v470, %v598
      %v727 = vsel %vm343, %v471, %v599
      %v728 = vsel %vm344, %v472, %v600
      %v729 = vsel %vm345, %v473, %v601
      %v730 = vsel %vm346, %v474, %v602
      %v731 = vsel %vm347, %v475, %v603
      %v732 = vsel %vm348, %v476, %v604
      %v733 = vsel %vm349, %v477, %v605
      %v734 = vsel %vm350, %v478, %v606
      %v735 = vsel %vm351, %v479, %v607
      %v736 = vsel %vm352, %v480, %v608
      %v737 = vsel %vm353, %v481, %v609
      %v738 = vsel %vm354, %v482, %v610
      %v739 = vsel %vm355, %v483, %v611
      %v740 = vsel %vm356, %v484, %v612
      %v741 = vsel %vm357, %v485, %v613
      %v742 = vsel %vm358, %v486, %v614
      %v743 = vsel %vm359, %v487, %v615
      %v744 = vsel %vm360, %v488, %v616
      %v745 = vsel %vm361, %v489, %v617
      %v746 = vsel %vm362, %v490, %v618
      %v747 = vsel %vm363, %v491, %v619
      %v748 = vsel %vm364, %v492, %v620
      %v749 = vsel %vm365, %v493, %v621
      %v750 = vsel %vm366, %v494, %v622
      %v751 = vsel %vm367, %v495, %v623
      %v752 = vsel %vm368, %v496, %v624
      %v753 = vsel %vm369, %v497, %v625
      %v754 = vsel %vm370, %v498, %v626
      %v755 = vsel %vm371, %v499, %v627
      %v756 = vsel %vm372, %v500, %v628
      %v757 = vsel %vm373, %v501, %v629
      %v758 = vsel %vm374, %v502, %v630
      %v759 = vsel %vm375, %v503, %v631
      %v760 = vsel %vm376, %v504, %v632
      %v761 = vsel %vm377, %v505, %v633
      %v762 = vsel %vm378, %v506, %v634
      %v763 = vsel %vm379, %v507, %v635
      %v764 = vsel %vm380, %v508, %v636
      %v765 = vsel %vm381, %v509, %v637
      %v766 = vsel %vm382, %v510, %v638
      %v767 = vsel %vm383, %v511, %v639
      %v768 = vsel %vm384, %v512, %v640
      %v769 = vsel %vm385, %v513, %v641
      %v770 = vsel %vm386, %v514, %v642
      %v771 = vsel %vm387, %v515, %v643
      %v772 = vsel %vm388, %v516, %v644
      %v773 = vsel %vm389, %v517, %v645
      %v774 = vsel %vm390, %v518, %v646
      %v775 = vsel %vm391, %v519, %v647
      %v776 = vsel %vm392, %v520, %v648
      %v777 = vsel %vm393, %v521, %v649
      %v778 = vsel %vm394, %v522, %v650
      %v779 = vsel %vm395, %v523, %v651
      %v780 = vsel %vm396, %v524, %v652
      %v781 = vsel %vm397, %v525, %v653
      %v782 = vsel %vm398, %v526, %v654
      %v783 = vsel %vm399, %v527, %v655
      %v784 = vsel %vm400, %v528, %v656
      %v785 = vsel %vm401, %v529, %v657
      %v786 = vsel %vm402, %v530, %v658
      %v787 = vld [vmem:[%s1] sm:$0xff]
      %v788 = vld [vmem:[%s1 + $0x8] sm:$0xff]
      %v789 = vld [vmem:[%s1 + $0x10] sm:$0x3f]
      %v790 = vld [vmem:[%s1 + $0x18] sm:$0x1]
      %v791 = vld [vmem:[%s1 + $0x20] sm:$0xff]
      %v792 = vld [vmem:[%s1 + $0x28] sm:$0xff]
      %v793 = vld [vmem:[%s1 + $0x30] sm:$0xff]
      %v794 = vld [vmem:[%s1 + $0x38] sm:$0xff]
      %v795 = vld [vmem:[%s1 + $0x40] sm:$0xff]
      %v796 = vld [vmem:[%s1 + $0x48] sm:$0xff]
      %v797 = vld [vmem:[%s1 + $0x50] sm:$0xff]
      %v798 = vld [vmem:[%s1 + $0x58] sm:$0xff]
      %v799 = vld [vmem:[%s1 + $0x60] sm:$0xff]
      %v800 = vld [vmem:[%s1 + $0x68] sm:$0xff]
      %v801 = vld [vmem:[%s1 + $0x70] sm:$0xff]
      %v802 = vld [vmem:[%s1 + $0x78] sm:$0xff]
      %v803 = vld [vmem:[%s1 + $0x80] sm:$0xff]
      %v804 = vld [vmem:[%s1 + $0x88] sm:$0xff]
      %v805 = vld [vmem:[%s1 + $0x90] sm:$0xff]
      %v806 = vld [vmem:[%s1 + $0x98] sm:$0xff]
      %v807 = vld [vmem:[%s1 + $0xa0] sm:$0x1]
      %v808 = vlaneseq
      %v809 = vshrl.u32 %v808, 7
      %v810 = vsub.s32 0, %v809
      %v811 = vrot.slane %v790, %v810
      %vm812 = vcmask 179200
      %v814 = vsel %vm812, %v659, 0
      %v817 = vsel %vm812, %v660, 0
      %v820 = vsel %vm812, %v661, 0
      %v823 = vsel %vm812, %v662, 0
      %v826 = vsel %vm812, %v663, 0
      %v829 = vsel %vm812, %v664, 0
      %v832 = vsel %vm812, %v665, 0
      %v835 = vsel %vm812, %v666, 0
      %v838 = vsel %vm812, %v667, 0
      %v841 = vsel %vm812, %v668, 0
      %v844 = vsel %vm812, %v669, 0
      %v847 = vsel %vm812, %v670, 0
      %v850 = vsel %vm812, %v671, 0
      %v853 = vsel %vm812, %v672, 0
      %v856 = vsel %vm812, %v673, 0
      %v859 = vsel %vm812, %v674, 0
      %v862 = vsel %vm812, %v675, 0
      %v865 = vsel %vm812, %v676, 0
      %v868 = vsel %vm812, %v677, 0
      %v871 = vsel %vm812, %v678, 0
      %v874 = vsel %vm812, %v679, 0
      %v877 = vsel %vm812, %v680, 0
      %v880 = vsel %vm812, %v681, 0
      %v883 = vsel %vm812, %v682, 0
      %v886 = vsel %vm812, %v683, 0
      %v889 = vsel %vm812, %v684, 0
      %v892 = vsel %vm812, %v685, 0
      %v895 = vsel %vm812, %v686, 0
      %v898 = vsel %vm812, %v687, 0
      %v901 = vsel %vm812, %v688, 0
      %v904 = vsel %vm812, %v689, 0
      %v907 = vsel %vm812, %v690, 0
      %v910 = vsel %vm812, %v691, 0
      %v913 = vsel %vm812, %v692, 0
      %v916 = vsel %vm812, %v693, 0
      %v919 = vsel %vm812, %v694, 0
      %v922 = vsel %vm812, %v695, 0
      %v925 = vsel %vm812, %v696, 0
      %v928 = vsel %vm812, %v697, 0
      %v931 = vsel %vm812, %v698, 0
      %v934 = vsel %vm812, %v699, 0
      %v937 = vsel %vm812, %v700, 0
      %v940 = vsel %vm812, %v701, 0
      %v943 = vsel %vm812, %v702, 0
      %v946 = vsel %vm812, %v703, 0
      %v949 = vsel %vm812, %v704, 0
      %v952 = vsel %vm812, %v705, 0
      %v955 = vsel %vm812, %v706, 0
      %v958 = vsel %vm812, %v707, 0
      %v961 = vsel %vm812, %v708, 0
      %v964 = vsel %vm812, %v709, 0
      %v967 = vsel %vm812, %v710, 0
      %v970 = vsel %vm812, %v711, 0
      %v973 = vsel %vm812, %v712, 0
      %v976 = vsel %vm812, %v713, 0
      %v979 = vsel %vm812, %v714, 0
      %v982 = vsel %vm812, %v715, 0
      %v985 = vsel %vm812, %v716, 0
      %v988 = vsel %vm812, %v717, 0
      %v991 = vsel %vm812, %v718, 0
      %v994 = vsel %vm812, %v719, 0
      %v997 = vsel %vm812, %v720, 0
      %v1000 = vsel %vm812, %v721, 0
      %v1003 = vsel %vm812, %v722, 0
      %v1006 = vsel %vm812, %v723, 0
      %v1009 = vsel %vm812, %v724, 0
      %v1012 = vsel %vm812, %v725, 0
      %v1015 = vsel %vm812, %v726, 0
      %v1018 = vsel %vm812, %v727, 0
      %v1021 = vsel %vm812, %v728, 0
      %v1024 = vsel %vm812, %v729, 0
      %v1027 = vsel %vm812, %v730, 0
      %v1030 = vsel %vm812, %v731, 0
      %v1033 = vsel %vm812, %v732, 0
      %v1036 = vsel %vm812, %v733, 0
      %v1039 = vsel %vm812, %v734, 0
      %v1042 = vsel %vm812, %v735, 0
      %v1045 = vsel %vm812, %v736, 0
      %v1048 = vsel %vm812, %v737, 0
      %v1051 = vsel %vm812, %v738, 0
      %v1054 = vsel %vm812, %v739, 0
      %v1057 = vsel %vm812, %v740, 0
      %v1060 = vsel %vm812, %v741, 0
      %v1063 = vsel %vm812, %v742, 0
      %v1066 = vsel %vm812, %v743, 0
      %v1069 = vsel %vm812, %v744, 0
      %v1072 = vsel %vm812, %v745, 0
      %v1075 = vsel %vm812, %v746, 0
      %v1078 = vsel %vm812, %v747, 0
      %v1081 = vsel %vm812, %v748, 0
      %v1084 = vsel %vm812, %v749, 0
      %v1087 = vsel %vm812, %v750, 0
      %v1090 = vsel %vm812, %v751, 0
      %v1093 = vsel %vm812, %v752, 0
      %v1096 = vsel %vm812, %v753, 0
      %v1099 = vsel %vm812, %v754, 0
      %v1102 = vsel %vm812, %v755, 0
      %v1105 = vsel %vm812, %v756, 0
      %v1108 = vsel %vm812, %v757, 0
      %v1111 = vsel %vm812, %v758, 0
      %v1114 = vsel %vm812, %v759, 0
      %v1117 = vsel %vm812, %v760, 0
      %v1120 = vsel %vm812, %v761, 0
      %v1123 = vsel %vm812, %v762, 0
      %v1126 = vsel %vm812, %v763, 0
      %v1129 = vsel %vm812, %v764, 0
      %v1132 = vsel %vm812, %v765, 0
      %v1135 = vsel %vm812, %v766, 0
      %v1138 = vsel %vm812, %v767, 0
      %v1141 = vsel %vm812, %v768, 0
      %v1144 = vsel %vm812, %v769, 0
      %v1147 = vsel %vm812, %v770, 0
      %v1150 = vsel %vm812, %v771, 0
      %v1153 = vsel %vm812, %v772, 0
      %v1156 = vsel %vm812, %v773, 0
      %v1159 = vsel %vm812, %v774, 0
      %v1162 = vsel %vm812, %v775, 0
      %v1165 = vsel %vm812, %v776, 0
      %v1168 = vsel %vm812, %v777, 0
      %v1171 = vsel %vm812, %v778, 0
      %v1174 = vsel %vm812, %v779, 0
      %v1177 = vsel %vm812, %v780, 0
      %v1180 = vsel %vm812, %v781, 0
      %v1183 = vsel %vm812, %v782, 0
      %v1186 = vsel %vm812, %v783, 0
      %v1189 = vsel %vm812, %v784, 0
      %v1192 = vsel %vm812, %v785, 0
      %v1195 = vsel %vm812, %v786, 0
      %vm1197 = vcmask 1045504
      %v1199 = vsel %vm1197, %v789, 0
      %1201 = vmatprep.subr.mxu0 0.0
      %1202 = vmatpush1.msra.mxu0 %v787
      %1203 = vmatprep.subr.mxu0 0.0
      %1204 = vmatpush1.msra.mxu0 %v788
      %1205 = vmatprep.subr.mxu0 0.0
      %1206 = vmatpush1.msra.mxu0 %v1199
      %1207 = vmatprep.subr.mxu0 0.0
      %1208 = vmatpush1.msra.mxu0 0.0
      %1209 = vmatprep.subr.mxu0 0.0
      %1210 = vmatpush1.msra.mxu0 0.0
      %1211 = vmatprep.subr.mxu0 0.0
      %1212 = vmatpush1.msra.mxu0 0.0
      %1213 = vmatprep.subr.mxu0 0.0
      %1214 = vmatpush1.msra.mxu0 0.0
      %1215 = vmatprep.subr.mxu0 0.0
      %1216 = vmatpush1.msra.mxu0 0.0
      %1217 = vmatprep.subr.mxu0 0.0
      %1218 = vmatpush1.msra.mxu0 0.0
      %1219 = vmatprep.subr.mxu0 0.0
      %1220 = vmatpush1.msra.mxu0 0.0
      %1221 = vmatprep.subr.mxu0 0.0
      %1222 = vmatpush1.msra.mxu0 0.0
      %1223 = vmatprep.subr.mxu0 0.0
      %1224 = vmatpush1.msra.mxu0 0.0
      %1225 = vmatprep.subr.mxu0 0.0
      %1226 = vmatpush1.msra.mxu0 0.0
      %1227 = vmatprep.subr.mxu0 0.0
      %1228 = vmatpush1.msra.mxu0 0.0
      %1229 = vmatprep.subr.mxu0 0.0
      %1230 = vmatpush1.msra.mxu0 0.0
      %1231 = vmatprep.subr.mxu0 0.0
      %1232 = vmatpush1.msra.mxu0 0.0
      %1233 = vmatprep.subr.mxu0 0.0
      %1234 = vmatpush1.msra.mxu0 0.0
      %1235 = vmatprep.subr.mxu0 0.0
      %1236 = vmatpush1.msra.mxu0 0.0
      %1237 = vmatprep.subr.mxu0 0.0
      %1238 = vmatpush1.msra.mxu0 0.0
      %1239 = vmatprep.subr.mxu0 0.0
      %1240 = vmatpush1.msra.mxu0 0.0
      %1241 = vmatprep.subr.mxu0 0.0
      %1242 = vmatpush1.msra.mxu0 0.0
      %1243 = vmatprep.subr.mxu0 0.0
      %1244 = vmatpush1.msra.mxu0 0.0
      %1245 = vmatprep.subr.mxu0 0.0
      %1246 = vmatpush1.msra.mxu0 0.0
      %1247 = vmatprep.subr.mxu0 0.0
      %1248 = vmatpush1.msra.mxu0 0.0
      %1249 = vmatprep.subr.mxu0 0.0
      %1250 = vmatpush1.msra.mxu0 0.0
      %1251 = vmatprep.subr.mxu0 0.0
      %1252 = vmatpush1.msra.mxu0 0.0
      %1253 = vmatprep.subr.mxu0 0.0
      %1254 = vmatpush1.msra.mxu0 0.0
      %1255 = vmatprep.subr.mxu0 0.0
      %1256 = vmatpush1.msra.mxu0 0.0
      %1257 = vmatprep.subr.mxu0 0.0
      %1258 = vmatpush1.msra.mxu0 0.0
      %1259 = vmatprep.subr.mxu0 0.0
      %1260 = vmatpush1.msra.mxu0 0.0
      %1261 = vmatprep.subr.mxu0 0.0
      %1262 = vmatpush1.msra.mxu0 0.0
      %1263 = vmatprep.subr.mxu0 0.0
      %1264 = vmatpush1.msra.mxu0 0.0
      %1265 = vmatprep.mubr.f32.mxu0 0.0
      %1266 = vmatmul.mubr.f32.gmra.mrb[0].mxu0 %v814
      %v1267 = vpop.f32.mrb[0].mxu0
      %v1268 = vadd.f32 %v811, %v1267
      %v1269 = vpop.f32.mrb[0].mxu0
      %1270 = vmatprep.mubr.f32.mxu0 0.0
      %1271 = vmatmul.mubr.f32.gmra.mrb[0].mxu0 %v817
      %v1272 = vpop.f32.mrb[0].mxu0
      %v1273 = vadd.f32 %v811, %v1272
      %v1274 = vpop.f32.mrb[0].mxu0
      %1275 = vmatprep.mubr.f32.mxu0 0.0
      %1276 = vmatmul.mubr.f32.gmra.mrb[0].mxu0 %v820
      %v1277 = vpop.f32.mrb[0].mxu0
      %v1278 = vadd.f32 %v811, %v1277
      %v1279 = vpop.f32.mrb[0].mxu0
      %1280 = vmatprep.mubr.f32.mxu0 0.0
      %1281 = vmatmul.mubr.f32.gmra.mrb[0].mxu0 %v823
      %v1282 = vpop.f32.mrb[0].mxu0
      %v1283 = vadd.f32 %v811, %v1282
      %v1284 = vpop.f32.mrb[0].mxu0
      %1285 = vmatprep.mubr.f32.mxu0 0.0
      %1286 = vmatmul.mubr.f32.gmra.mrb[0].mxu0 %v826
      %v1287 = vpop.f32.mrb[0].mxu0
      %v1288 = vadd.f32 %v811, %v1287
      %v1289 = vpop.f32.mrb[0].mxu0
      %1290 = vmatprep.mubr.f32.mxu0 0.0
      %1291 = vmatmul.mubr.f32.gmra.mrb[0].mxu0 %v829
      %v1292 = vpop.f32.mrb[0].mxu0
      %v1293 = vadd.f32 %v811, %v1292
      %v1294 = vpop.f32.mrb[0].mxu0
      %1295 = vmatprep.mubr.f32.mxu0 0.0
      %1296 = vmatmul.mubr.f32.gmra.mrb[0].mxu0 %v832
      %v1297 = vpop.f32.mrb[0].mxu0
      %v1298 = vadd.f32 %v811, %v1297
      %v1299 = vpop.f32.mrb[0].mxu0
      %1300 = vmatprep.mubr.f32.mxu0 0.0
      %1301 = vmatmul.mubr.f32.gmra.mrb[0].mxu0 %v835
      %v1302 = vpop.f32.mrb[0].mxu0
      %v1303 = vadd.f32 %v811, %v1302
      %v1304 = vpop.f32.mrb[0].mxu0
      %1305 = vmatprep.mubr.f32.mxu0 0.0
      %1306 = vmatmul.mubr.f32.gmra.mrb[0].mxu0 %v838
      %v1307 = vpop.f32.mrb[0].mxu0
      %v1308 = vadd.f32 %v811, %v1307
      %v1309 = vpop.f32.mrb[0].mxu0
      %1310 = vmatprep.mubr.f32.mxu0 0.0
      %1311 = vmatmul.mubr.f32.gmra.mrb[0].mxu0 %v841
      %v1312 = vpop.f32.mrb[0].mxu0
      %v1313 = vadd.f32 %v811, %v1312
      %v1314 = vpop.f32.mrb[0].mxu0
      %1315 = vmatprep.mubr.f32.mxu0 0.0
      %1316 = vmatmul.mubr.f32.gmra.mrb[0].mxu0 %v844
      %v1317 = vpop.f32.mrb[0].mxu0
      %v1318 = vadd.f32 %v811, %v1317
      %v1319 = vpop.f32.mrb[0].mxu0
      %1320 = vmatprep.mubr.f32.mxu0 0.0
      %1321 = vmatmul.mubr.f32.gmra.mrb[0].mxu0 %v847
      %v1322 = vpop.f32.mrb[0].mxu0
      %v1323 = vadd.f32 %v811, %v1322
      %v1324 = vpop.f32.mrb[0].mxu0
      %1325 = vmatprep.mubr.f32.mxu0 0.0
      %1326 = vmatmul.mubr.f32.gmra.mrb[0].mxu0 %v850
      %v1327 = vpop.f32.mrb[0].mxu0
      %v1328 = vadd.f32 %v811, %v1327
      %v1329 = vpop.f32.mrb[0].mxu0
      %1330 = vmatprep.mubr.f32.mxu0 0.0
      %1331 = vmatmul.mubr.f32.gmra.mrb[0].mxu0 %v853
      %v1332 = vpop.f32.mrb[0].mxu0
      %v1333 = vadd.f32 %v811, %v1332
      %v1334 = vpop.f32.mrb[0].mxu0
      %1335 = vmatprep.mubr.f32.mxu0 0.0
      %1336 = vmatmul.mubr.f32.gmra.mrb[0].mxu0 %v856
      %v1337 = vpop.f32.mrb[0].mxu0
      %v1338 = vadd.f32 %v811, %v1337
      %v1339 = vpop.f32.mrb[0].mxu0
      %1340 = vmatprep.mubr.f32.mxu0 0.0
      %1341 = vmatmul.mubr.f32.gmra.mrb[0].mxu0 %v859
      %v1342 = vpop.f32.mrb[0].mxu0
      %v1343 = vadd.f32 %v811, %v1342
      %v1344 = vpop.f32.mrb[0].mxu0
      %1345 = vmatprep.mubr.f32.mxu0 0.0
      %1346 = vmatmul.mubr.f32.gmra.mrb[0].mxu0 %v862
      %v1347 = vpop.f32.mrb[0].mxu0
      %v1348 = vadd.f32 %v811, %v1347
      %v1349 = vpop.f32.mrb[0].mxu0
      %1350 = vmatprep.mubr.f32.mxu0 0.0
      %1351 = vmatmul.mubr.f32.gmra.mrb[0].mxu0 %v865
      %v1352 = vpop.f32.mrb[0].mxu0
      %v1353 = vadd.f32 %v811, %v1352
      %v1354 = vpop.f32.mrb[0].mxu0
      %1355 = vmatprep.mubr.f32.mxu0 0.0
      %1356 = vmatmul.mubr.f32.gmra.mrb[0].mxu0 %v868
      %v1357 = vpop.f32.mrb[0].mxu0
      %v1358 = vadd.f32 %v811, %v1357
      %v1359 = vpop.f32.mrb[0].mxu0
      %1360 = vmatprep.mubr.f32.mxu0 0.0
      %1361 = vmatmul.mubr.f32.gmra.mrb[0].mxu0 %v871
      %v1362 = vpop.f32.mrb[0].mxu0
      %v1363 = vadd.f32 %v811, %v1362
      %v1364 = vpop.f32.mrb[0].mxu0
      %1365 = vmatprep.mubr.f32.mxu0 0.0
      %1366 = vmatmul.mubr.f32.gmra.mrb[0].mxu0 %v874
      %v1367 = vpop.f32.mrb[0].mxu0
      %v1368 = vadd.f32 %v811, %v1367
      %v1369 = vpop.f32.mrb[0].mxu0
      %1370 = vmatprep.mubr.f32.mxu0 0.0
      %1371 = vmatmul.mubr.f32.gmra.mrb[0].mxu0 %v877
      %v1372 = vpop.f32.mrb[0].mxu0
      %v1373 = vadd.f32 %v811, %v1372
      %v1374 = vpop.f32.mrb[0].mxu0
      %1375 = vmatprep.mubr.f32.mxu0 0.0
      %1376 = vmatmul.mubr.f32.gmra.mrb[0].mxu0 %v880
      %v1377 = vpop.f32.mrb[0].mxu0
      %v1378 = vadd.f32 %v811, %v1377
      %v1379 = vpop.f32.mrb[0].mxu0
      %1380 = vmatprep.mubr.f32.mxu0 0.0
      %1381 = vmatmul.mubr.f32.gmra.mrb[0].mxu0 %v883
      %v1382 = vpop.f32.mrb[0].mxu0
      %v1383 = vadd.f32 %v811, %v1382
      %v1384 = vpop.f32.mrb[0].mxu0
      %1385 = vmatprep.mubr.f32.mxu0 0.0
      %1386 = vmatmul.mubr.f32.gmra.mrb[0].mxu0 %v886
      %v1387 = vpop.f32.mrb[0].mxu0
      %v1388 = vadd.f32 %v811, %v1387
      %v1389 = vpop.f32.mrb[0].mxu0
      %1390 = vmatprep.mubr.f32.mxu0 0.0
      %1391 = vmatmul.mubr.f32.gmra.mrb[0].mxu0 %v889
      %v1392 = vpop.f32.mrb[0].mxu0
      %v1393 = vadd.f32 %v811, %v1392
      %v1394 = vpop.f32.mrb[0].mxu0
      %1395 = vmatprep.mubr.f32.mxu0 0.0
      %1396 = vmatmul.mubr.f32.gmra.mrb[0].mxu0 %v892
      %v1397 = vpop.f32.mrb[0].mxu0
      %v1398 = vadd.f32 %v811, %v1397
      %v1399 = vpop.f32.mrb[0].mxu0
      %1400 = vmatprep.mubr.f32.mxu0 0.0
      %1401 = vmatmul.mubr.f32.gmra.mrb[0].mxu0 %v895
      %v1402 = vpop.f32.mrb[0].mxu0
      %v1403 = vadd.f32 %v811, %v1402
      %v1404 = vpop.f32.mrb[0].mxu0
      %1405 = vmatprep.mubr.f32.mxu0 0.0
      %1406 = vmatmul.mubr.f32.gmra.mrb[0].mxu0 %v898
      %v1407 = vpop.f32.mrb[0].mxu0
      %v1408 = vadd.f32 %v811, %v1407
      %v1409 = vpop.f32.mrb[0].mxu0
      %1410 = vmatprep.mubr.f32.mxu0 0.0
      %1411 = vmatmul.mubr.f32.gmra.mrb[0].mxu0 %v901
      %v1412 = vpop.f32.mrb[0].mxu0
      %v1413 = vadd.f32 %v811, %v1412
      %v1414 = vpop.f32.mrb[0].mxu0
      %1415 = vmatprep.mubr.f32.mxu0 0.0
      %1416 = vmatmul.mubr.f32.gmra.mrb[0].mxu0 %v904
      %v1417 = vpop.f32.mrb[0].mxu0
      %v1418 = vadd.f32 %v811, %v1417
      %v1419 = vpop.f32.mrb[0].mxu0
      %1420 = vmatprep.mubr.f32.mxu0 0.0
      %1421 = vmatmul.mubr.f32.gmra.mrb[0].mxu0 %v907
      %v1422 = vpop.f32.mrb[0].mxu0
      %v1423 = vadd.f32 %v811, %v1422
      %v1424 = vpop.f32.mrb[0].mxu0
      %1425 = vmatprep.mubr.f32.mxu0 0.0
      %1426 = vmatmul.mubr.f32.gmra.mrb[0].mxu0 %v910
      %v1427 = vpop.f32.mrb[0].mxu0
      %v1428 = vadd.f32 %v811, %v1427
      %v1429 = vpop.f32.mrb[0].mxu0
      %1430 = vmatprep.mubr.f32.mxu0 0.0
      %1431 = vmatmul.mubr.f32.gmra.mrb[0].mxu0 %v913
      %v1432 = vpop.f32.mrb[0].mxu0
      %v1433 = vadd.f32 %v811, %v1432
      %v1434 = vpop.f32.mrb[0].mxu0
      %1435 = vmatprep.mubr.f32.mxu0 0.0
      %1436 = vmatmul.mubr.f32.gmra.mrb[0].mxu0 %v916
      %v1437 = vpop.f32.mrb[0].mxu0
      %v1438 = vadd.f32 %v811, %v1437
      %v1439 = vpop.f32.mrb[0].mxu0
      %1440 = vmatprep.mubr.f32.mxu0 0.0
      %1441 = vmatmul.mubr.f32.gmra.mrb[0].mxu0 %v919
      %v1442 = vpop.f32.mrb[0].mxu0
      %v1443 = vadd.f32 %v811, %v1442
      %v1444 = vpop.f32.mrb[0].mxu0
      %1445 = vmatprep.mubr.f32.mxu0 0.0
      %1446 = vmatmul.mubr.f32.gmra.mrb[0].mxu0 %v922
      %v1447 = vpop.f32.mrb[0].mxu0
      %v1448 = vadd.f32 %v811, %v1447
      %v1449 = vpop.f32.mrb[0].mxu0
      %1450 = vmatprep.mubr.f32.mxu0 0.0
      %1451 = vmatmul.mubr.f32.gmra.mrb[0].mxu0 %v925
      %v1452 = vpop.f32.mrb[0].mxu0
      %v1453 = vadd.f32 %v811, %v1452
      %v1454 = vpop.f32.mrb[0].mxu0
      %1455 = vmatprep.mubr.f32.mxu0 0.0
      %1456 = vmatmul.mubr.f32.gmra.mrb[0].mxu0 %v928
      %v1457 = vpop.f32.mrb[0].mxu0
      %v1458 = vadd.f32 %v811, %v1457
      %v1459 = vpop.f32.mrb[0].mxu0
      %1460 = vmatprep.mubr.f32.mxu0 0.0
      %1461 = vmatmul.mubr.f32.gmra.mrb[0].mxu0 %v931
      %v1462 = vpop.f32.mrb[0].mxu0
      %v1463 = vadd.f32 %v811, %v1462
      %v1464 = vpop.f32.mrb[0].mxu0
      %1465 = vmatprep.mubr.f32.mxu0 0.0
      %1466 = vmatmul.mubr.f32.gmra.mrb[0].mxu0 %v934
      %v1467 = vpop.f32.mrb[0].mxu0
      %v1468 = vadd.f32 %v811, %v1467
      %v1469 = vpop.f32.mrb[0].mxu0
      %1470 = vmatprep.mubr.f32.mxu0 0.0
      %1471 = vmatmul.mubr.f32.gmra.mrb[0].mxu0 %v937
      %v1472 = vpop.f32.mrb[0].mxu0
      %v1473 = vadd.f32 %v811, %v1472
      %v1474 = vpop.f32.mrb[0].mxu0
      %1475 = vmatprep.mubr.f32.mxu0 0.0
      %1476 = vmatmul.mubr.f32.gmra.mrb[0].mxu0 %v940
      %v1477 = vpop.f32.mrb[0].mxu0
      %v1478 = vadd.f32 %v811, %v1477
      %v1479 = vpop.f32.mrb[0].mxu0
      %1480 = vmatprep.mubr.f32.mxu0 0.0
      %1481 = vmatmul.mubr.f32.gmra.mrb[0].mxu0 %v943
      %v1482 = vpop.f32.mrb[0].mxu0
      %v1483 = vadd.f32 %v811, %v1482
      %v1484 = vpop.f32.mrb[0].mxu0
      %1485 = vmatprep.mubr.f32.mxu0 0.0
      %1486 = vmatmul.mubr.f32.gmra.mrb[0].mxu0 %v946
      %v1487 = vpop.f32.mrb[0].mxu0
      %v1488 = vadd.f32 %v811, %v1487
      %v1489 = vpop.f32.mrb[0].mxu0
      %1490 = vmatprep.mubr.f32.mxu0 0.0
      %1491 = vmatmul.mubr.f32.gmra.mrb[0].mxu0 %v949
      %v1492 = vpop.f32.mrb[0].mxu0
      %v1493 = vadd.f32 %v811, %v1492
      %v1494 = vpop.f32.mrb[0].mxu0
      %1495 = vmatprep.mubr.f32.mxu0 0.0
      %1496 = vmatmul.mubr.f32.gmra.mrb[0].mxu0 %v952
      %v1497 = vpop.f32.mrb[0].mxu0
      %v1498 = vadd.f32 %v811, %v1497
      %v1499 = vpop.f32.mrb[0].mxu0
      %1500 = vmatprep.mubr.f32.mxu0 0.0
      %1501 = vmatmul.mubr.f32.gmra.mrb[0].mxu0 %v955
      %v1502 = vpop.f32.mrb[0].mxu0
      %v1503 = vadd.f32 %v811, %v1502
      %v1504 = vpop.f32.mrb[0].mxu0
      %1505 = vmatprep.mubr.f32.mxu0 0.0
      %1506 = vmatmul.mubr.f32.gmra.mrb[0].mxu0 %v958
      %v1507 = vpop.f32.mrb[0].mxu0
      %v1508 = vadd.f32 %v811, %v1507
      %v1509 = vpop.f32.mrb[0].mxu0
      %1510 = vmatprep.mubr.f32.mxu0 0.0
      %1511 = vmatmul.mubr.f32.gmra.mrb[0].mxu0 %v961
      %v1512 = vpop.f32.mrb[0].mxu0
      %v1513 = vadd.f32 %v811, %v1512
      %v1514 = vpop.f32.mrb[0].mxu0
      %1515 = vmatprep.mubr.f32.mxu0 0.0
      %1516 = vmatmul.mubr.f32.gmra.mrb[0].mxu0 %v964
      %v1517 = vpop.f32.mrb[0].mxu0
      %v1518 = vadd.f32 %v811, %v1517
      %v1519 = vpop.f32.mrb[0].mxu0
      %1520 = vmatprep.mubr.f32.mxu0 0.0
      %1521 = vmatmul.mubr.f32.gmra.mrb[0].mxu0 %v967
      %v1522 = vpop.f32.mrb[0].mxu0
      %v1523 = vadd.f32 %v811, %v1522
      %v1524 = vpop.f32.mrb[0].mxu0
      %1525 = vmatprep.mubr.f32.mxu0 0.0
      %1526 = vmatmul.mubr.f32.gmra.mrb[0].mxu0 %v970
      %v1527 = vpop.f32.mrb[0].mxu0
      %v1528 = vadd.f32 %v811, %v1527
      %v1529 = vpop.f32.mrb[0].mxu0
      %1530 = vmatprep.mubr.f32.mxu0 0.0
      %1531 = vmatmul.mubr.f32.gmra.mrb[0].mxu0 %v973
      %v1532 = vpop.f32.mrb[0].mxu0
      %v1533 = vadd.f32 %v811, %v1532
      %v1534 = vpop.f32.mrb[0].mxu0
      %1535 = vmatprep.mubr.f32.mxu0 0.0
      %1536 = vmatmul.mubr.f32.gmra.mrb[0].mxu0 %v976
      %v1537 = vpop.f32.mrb[0].mxu0
      %v1538 = vadd.f32 %v811, %v1537
      %v1539 = vpop.f32.mrb[0].mxu0
      %1540 = vmatprep.mubr.f32.mxu0 0.0
      %1541 = vmatmul.mubr.f32.gmra.mrb[0].mxu0 %v979
      %v1542 = vpop.f32.mrb[0].mxu0
      %v1543 = vadd.f32 %v811, %v1542
      %v1544 = vpop.f32.mrb[0].mxu0
      %1545 = vmatprep.mubr.f32.mxu0 0.0
      %1546 = vmatmul.mubr.f32.gmra.mrb[0].mxu0 %v982
      %v1547 = vpop.f32.mrb[0].mxu0
      %v1548 = vadd.f32 %v811, %v1547
      %v1549 = vpop.f32.mrb[0].mxu0
      %1550 = vmatprep.mubr.f32.mxu0 0.0
      %1551 = vmatmul.mubr.f32.gmra.mrb[0].mxu0 %v985
      %v1552 = vpop.f32.mrb[0].mxu0
      %v1553 = vadd.f32 %v811, %v1552
      %v1554 = vpop.f32.mrb[0].mxu0
      %1555 = vmatprep.mubr.f32.mxu0 0.0
      %1556 = vmatmul.mubr.f32.gmra.mrb[0].mxu0 %v988
      %v1557 = vpop.f32.mrb[0].mxu0
      %v1558 = vadd.f32 %v811, %v1557
      %v1559 = vpop.f32.mrb[0].mxu0
      %1560 = vmatprep.mubr.f32.mxu0 0.0
      %1561 = vmatmul.mubr.f32.gmra.mrb[0].mxu0 %v991
      %v1562 = vpop.f32.mrb[0].mxu0
      %v1563 = vadd.f32 %v811, %v1562
      %v1564 = vpop.f32.mrb[0].mxu0
      %1565 = vmatprep.mubr.f32.mxu0 0.0
      %1566 = vmatmul.mubr.f32.gmra.mrb[0].mxu0 %v994
      %v1567 = vpop.f32.mrb[0].mxu0
      %v1568 = vadd.f32 %v811, %v1567
      %v1569 = vpop.f32.mrb[0].mxu0
      %1570 = vmatprep.mubr.f32.mxu0 0.0
      %1571 = vmatmul.mubr.f32.gmra.mrb[0].mxu0 %v997
      %v1572 = vpop.f32.mrb[0].mxu0
      %v1573 = vadd.f32 %v811, %v1572
      %v1574 = vpop.f32.mrb[0].mxu0
      %1575 = vmatprep.mubr.f32.mxu0 0.0
      %1576 = vmatmul.mubr.f32.gmra.mrb[0].mxu0 %v1000
      %v1577 = vpop.f32.mrb[0].mxu0
      %v1578 = vadd.f32 %v811, %v1577
      %v1579 = vpop.f32.mrb[0].mxu0
      %1580 = vmatprep.mubr.f32.mxu0 0.0
      %1581 = vmatmul.mubr.f32.gmra.mrb[0].mxu0 %v1003
      %v1582 = vpop.f32.mrb[0].mxu0
      %v1583 = vadd.f32 %v811, %v1582
      %v1584 = vpop.f32.mrb[0].mxu0
      %1585 = vmatprep.mubr.f32.mxu0 0.0
      %1586 = vmatmul.mubr.f32.gmra.mrb[0].mxu0 %v1006
      %v1587 = vpop.f32.mrb[0].mxu0
      %v1588 = vadd.f32 %v811, %v1587
      %v1589 = vpop.f32.mrb[0].mxu0
      %1590 = vmatprep.mubr.f32.mxu0 0.0
      %1591 = vmatmul.mubr.f32.gmra.mrb[0].mxu0 %v1009
      %v1592 = vpop.f32.mrb[0].mxu0
      %v1593 = vadd.f32 %v811, %v1592
      %v1594 = vpop.f32.mrb[0].mxu0
      %1595 = vmatprep.mubr.f32.mxu0 0.0
      %1596 = vmatmul.mubr.f32.gmra.mrb[0].mxu0 %v1012
      %v1597 = vpop.f32.mrb[0].mxu0
      %v1598 = vadd.f32 %v811, %v1597
      %v1599 = vpop.f32.mrb[0].mxu0
      %1600 = vmatprep.mubr.f32.mxu0 0.0
      %1601 = vmatmul.mubr.f32.gmra.mrb[0].mxu0 %v1015
      %v1602 = vpop.f32.mrb[0].mxu0
      %v1603 = vadd.f32 %v811, %v1602
      %v1604 = vpop.f32.mrb[0].mxu0
      %1605 = vmatprep.mubr.f32.mxu0 0.0
      %1606 = vmatmul.mubr.f32.gmra.mrb[0].mxu0 %v1018
      %v1607 = vpop.f32.mrb[0].mxu0
      %v1608 = vadd.f32 %v811, %v1607
      %v1609 = vpop.f32.mrb[0].mxu0
      %1610 = vmatprep.mubr.f32.mxu0 0.0
      %1611 = vmatmul.mubr.f32.gmra.mrb[0].mxu0 %v1021
      %v1612 = vpop.f32.mrb[0].mxu0
      %v1613 = vadd.f32 %v811, %v1612
      %v1614 = vpop.f32.mrb[0].mxu0
      %1615 = vmatprep.mubr.f32.mxu0 0.0
      %1616 = vmatmul.mubr.f32.gmra.mrb[0].mxu0 %v1024
      %v1617 = vpop.f32.mrb[0].mxu0
      %v1618 = vadd.f32 %v811, %v1617
      %v1619 = vpop.f32.mrb[0].mxu0
      %1620 = vmatprep.mubr.f32.mxu0 0.0
      %1621 = vmatmul.mubr.f32.gmra.mrb[0].mxu0 %v1027
      %v1622 = vpop.f32.mrb[0].mxu0
      %v1623 = vadd.f32 %v811, %v1622
      %v1624 = vpop.f32.mrb[0].mxu0
      %1625 = vmatprep.mubr.f32.mxu0 0.0
      %1626 = vmatmul.mubr.f32.gmra.mrb[0].mxu0 %v1030
      %v1627 = vpop.f32.mrb[0].mxu0
      %v1628 = vadd.f32 %v811, %v1627
      %v1629 = vpop.f32.mrb[0].mxu0
      %1630 = vmatprep.mubr.f32.mxu0 0.0
      %1631 = vmatmul.mubr.f32.gmra.mrb[0].mxu0 %v1033
      %v1632 = vpop.f32.mrb[0].mxu0
      %v1633 = vadd.f32 %v811, %v1632
      %v1634 = vpop.f32.mrb[0].mxu0
      %1635 = vmatprep.mubr.f32.mxu0 0.0
      %1636 = vmatmul.mubr.f32.gmra.mrb[0].mxu0 %v1036
      %v1637 = vpop.f32.mrb[0].mxu0
      %v1638 = vadd.f32 %v811, %v1637
      %v1639 = vpop.f32.mrb[0].mxu0
      %1640 = vmatprep.mubr.f32.mxu0 0.0
      %1641 = vmatmul.mubr.f32.gmra.mrb[0].mxu0 %v1039
      %v1642 = vpop.f32.mrb[0].mxu0
      %v1643 = vadd.f32 %v811, %v1642
      %v1644 = vpop.f32.mrb[0].mxu0
      %1645 = vmatprep.mubr.f32.mxu0 0.0
      %1646 = vmatmul.mubr.f32.gmra.mrb[0].mxu0 %v1042
      %v1647 = vpop.f32.mrb[0].mxu0
      %v1648 = vadd.f32 %v811, %v1647
      %v1649 = vpop.f32.mrb[0].mxu0
      %1650 = vmatprep.mubr.f32.mxu0 0.0
      %1651 = vmatmul.mubr.f32.gmra.mrb[0].mxu0 %v1045
      %v1652 = vpop.f32.mrb[0].mxu0
      %v1653 = vadd.f32 %v811, %v1652
      %v1654 = vpop.f32.mrb[0].mxu0
      %1655 = vmatprep.mubr.f32.mxu0 0.0
      %1656 = vmatmul.mubr.f32.gmra.mrb[0].mxu0 %v1048
      %v1657 = vpop.f32.mrb[0].mxu0
      %v1658 = vadd.f32 %v811, %v1657
      %v1659 = vpop.f32.mrb[0].mxu0
      %1660 = vmatprep.mubr.f32.mxu0 0.0
      %1661 = vmatmul.mubr.f32.gmra.mrb[0].mxu0 %v1051
      %v1662 = vpop.f32.mrb[0].mxu0
      %v1663 = vadd.f32 %v811, %v1662
      %v1664 = vpop.f32.mrb[0].mxu0
      %1665 = vmatprep.mubr.f32.mxu0 0.0
      %1666 = vmatmul.mubr.f32.gmra.mrb[0].mxu0 %v1054
      %v1667 = vpop.f32.mrb[0].mxu0
      %v1668 = vadd.f32 %v811, %v1667
      %v1669 = vpop.f32.mrb[0].mxu0
      %1670 = vmatprep.mubr.f32.mxu0 0.0
      %1671 = vmatmul.mubr.f32.gmra.mrb[0].mxu0 %v1057
      %v1672 = vpop.f32.mrb[0].mxu0
      %v1673 = vadd.f32 %v811, %v1672
      %v1674 = vpop.f32.mrb[0].mxu0
      %1675 = vmatprep.mubr.f32.mxu0 0.0
      %1676 = vmatmul.mubr.f32.gmra.mrb[0].mxu0 %v1060
      %v1677 = vpop.f32.mrb[0].mxu0
      %v1678 = vadd.f32 %v811, %v1677
      %v1679 = vpop.f32.mrb[0].mxu0
      %1680 = vmatprep.mubr.f32.mxu0 0.0
      %1681 = vmatmul.mubr.f32.gmra.mrb[0].mxu0 %v1063
      %v1682 = vpop.f32.mrb[0].mxu0
      %v1683 = vadd.f32 %v811, %v1682
      %v1684 = vpop.f32.mrb[0].mxu0
      %1685 = vmatprep.mubr.f32.mxu0 0.0
      %1686 = vmatmul.mubr.f32.gmra.mrb[0].mxu0 %v1066
      %v1687 = vpop.f32.mrb[0].mxu0
      %v1688 = vadd.f32 %v811, %v1687
      %v1689 = vpop.f32.mrb[0].mxu0
      %1690 = vmatprep.mubr.f32.mxu0 0.0
      %1691 = vmatmul.mubr.f32.gmra.mrb[0].mxu0 %v1069
      %v1692 = vpop.f32.mrb[0].mxu0
      %v1693 = vadd.f32 %v811, %v1692
      %v1694 = vpop.f32.mrb[0].mxu0
      %1695 = vmatprep.mubr.f32.mxu0 0.0
      %1696 = vmatmul.mubr.f32.gmra.mrb[0].mxu0 %v1072
      %v1697 = vpop.f32.mrb[0].mxu0
      %v1698 = vadd.f32 %v811, %v1697
      %v1699 = vpop.f32.mrb[0].mxu0
      %1700 = vmatprep.mubr.f32.mxu0 0.0
      %1701 = vmatmul.mubr.f32.gmra.mrb[0].mxu0 %v1075
      %v1702 = vpop.f32.mrb[0].mxu0
      %v1703 = vadd.f32 %v811, %v1702
      %v1704 = vpop.f32.mrb[0].mxu0
      %1705 = vmatprep.mubr.f32.mxu0 0.0
      %1706 = vmatmul.mubr.f32.gmra.mrb[0].mxu0 %v1078
      %v1707 = vpop.f32.mrb[0].mxu0
      %v1708 = vadd.f32 %v811, %v1707
      %v1709 = vpop.f32.mrb[0].mxu0
      %1710 = vmatprep.mubr.f32.mxu0 0.0
      %1711 = vmatmul.mubr.f32.gmra.mrb[0].mxu0 %v1081
      %v1712 = vpop.f32.mrb[0].mxu0
      %v1713 = vadd.f32 %v811, %v1712
      %v1714 = vpop.f32.mrb[0].mxu0
      %1715 = vmatprep.mubr.f32.mxu0 0.0
      %1716 = vmatmul.mubr.f32.gmra.mrb[0].mxu0 %v1084
      %v1717 = vpop.f32.mrb[0].mxu0
      %v1718 = vadd.f32 %v811, %v1717
      %v1719 = vpop.f32.mrb[0].mxu0
      %1720 = vmatprep.mubr.f32.mxu0 0.0
      %1721 = vmatmul.mubr.f32.gmra.mrb[0].mxu0 %v1087
      %v1722 = vpop.f32.mrb[0].mxu0
      %v1723 = vadd.f32 %v811, %v1722
      %v1724 = vpop.f32.mrb[0].mxu0
      %1725 = vmatprep.mubr.f32.mxu0 0.0
      %1726 = vmatmul.mubr.f32.gmra.mrb[0].mxu0 %v1090
      %v1727 = vpop.f32.mrb[0].mxu0
      %v1728 = vadd.f32 %v811, %v1727
      %v1729 = vpop.f32.mrb[0].mxu0
      %1730 = vmatprep.mubr.f32.mxu0 0.0
      %1731 = vmatmul.mubr.f32.gmra.mrb[0].mxu0 %v1093
      %v1732 = vpop.f32.mrb[0].mxu0
      %v1733 = vadd.f32 %v811, %v1732
      %v1734 = vpop.f32.mrb[0].mxu0
      %1735 = vmatprep.mubr.f32.mxu0 0.0
      %1736 = vmatmul.mubr.f32.gmra.mrb[0].mxu0 %v1096
      %v1737 = vpop.f32.mrb[0].mxu0
      %v1738 = vadd.f32 %v811, %v1737
      %v1739 = vpop.f32.mrb[0].mxu0
      %1740 = vmatprep.mubr.f32.mxu0 0.0
      %1741 = vmatmul.mubr.f32.gmra.mrb[0].mxu0 %v1099
      %v1742 = vpop.f32.mrb[0].mxu0
      %v1743 = vadd.f32 %v811, %v1742
      %v1744 = vpop.f32.mrb[0].mxu0
      %1745 = vmatprep.mubr.f32.mxu0 0.0
      %1746 = vmatmul.mubr.f32.gmra.mrb[0].mxu0 %v1102
      %v1747 = vpop.f32.mrb[0].mxu0
      %v1748 = vadd.f32 %v811, %v1747
      %v1749 = vpop.f32.mrb[0].mxu0
      %1750 = vmatprep.mubr.f32.mxu0 0.0
      %1751 = vmatmul.mubr.f32.gmra.mrb[0].mxu0 %v1105
      %v1752 = vpop.f32.mrb[0].mxu0
      %v1753 = vadd.f32 %v811, %v1752
      %v1754 = vpop.f32.mrb[0].mxu0
      %1755 = vmatprep.mubr.f32.mxu0 0.0
      %1756 = vmatmul.mubr.f32.gmra.mrb[0].mxu0 %v1108
      %v1757 = vpop.f32.mrb[0].mxu0
      %v1758 = vadd.f32 %v811, %v1757
      %v1759 = vpop.f32.mrb[0].mxu0
      %1760 = vmatprep.mubr.f32.mxu0 0.0
      %1761 = vmatmul.mubr.f32.gmra.mrb[0].mxu0 %v1111
      %v1762 = vpop.f32.mrb[0].mxu0
      %v1763 = vadd.f32 %v811, %v1762
      %v1764 = vpop.f32.mrb[0].mxu0
      %1765 = vmatprep.mubr.f32.mxu0 0.0
      %1766 = vmatmul.mubr.f32.gmra.mrb[0].mxu0 %v1114
      %v1767 = vpop.f32.mrb[0].mxu0
      %v1768 = vadd.f32 %v811, %v1767
      %v1769 = vpop.f32.mrb[0].mxu0
      %1770 = vmatprep.mubr.f32.mxu0 0.0
      %1771 = vmatmul.mubr.f32.gmra.mrb[0].mxu0 %v1117
      %v1772 = vpop.f32.mrb[0].mxu0
      %v1773 = vadd.f32 %v811, %v1772
      %v1774 = vpop.f32.mrb[0].mxu0
      %1775 = vmatprep.mubr.f32.mxu0 0.0
      %1776 = vmatmul.mubr.f32.gmra.mrb[0].mxu0 %v1120
      %v1777 = vpop.f32.mrb[0].mxu0
      %v1778 = vadd.f32 %v811, %v1777
      %v1779 = vpop.f32.mrb[0].mxu0
      %1780 = vmatprep.mubr.f32.mxu0 0.0
      %1781 = vmatmul.mubr.f32.gmra.mrb[0].mxu0 %v1123
      %v1782 = vpop.f32.mrb[0].mxu0
      %v1783 = vadd.f32 %v811, %v1782
      %v1784 = vpop.f32.mrb[0].mxu0
      %1785 = vmatprep.mubr.f32.mxu0 0.0
      %1786 = vmatmul.mubr.f32.gmra.mrb[0].mxu0 %v1126
      %v1787 = vpop.f32.mrb[0].mxu0
      %v1788 = vadd.f32 %v811, %v1787
      %v1789 = vpop.f32.mrb[0].mxu0
      %1790 = vmatprep.mubr.f32.mxu0 0.0
      %1791 = vmatmul.mubr.f32.gmra.mrb[0].mxu0 %v1129
      %v1792 = vpop.f32.mrb[0].mxu0
      %v1793 = vadd.f32 %v811, %v1792
      %v1794 = vpop.f32.mrb[0].mxu0
      %1795 = vmatprep.mubr.f32.mxu0 0.0
      %1796 = vmatmul.mubr.f32.gmra.mrb[0].mxu0 %v1132
      %v1797 = vpop.f32.mrb[0].mxu0
      %v1798 = vadd.f32 %v811, %v1797
      %v1799 = vpop.f32.mrb[0].mxu0
      %1800 = vmatprep.mubr.f32.mxu0 0.0
      %1801 = vmatmul.mubr.f32.gmra.mrb[0].mxu0 %v1135
      %v1802 = vpop.f32.mrb[0].mxu0
      %v1803 = vadd.f32 %v811, %v1802
      %v1804 = vpop.f32.mrb[0].mxu0
      %1805 = vmatprep.mubr.f32.mxu0 0.0
      %1806 = vmatmul.mubr.f32.gmra.mrb[0].mxu0 %v1138
      %v1807 = vpop.f32.mrb[0].mxu0
      %v1808 = vadd.f32 %v811, %v1807
      %v1809 = vpop.f32.mrb[0].mxu0
      %1810 = vmatprep.mubr.f32.mxu0 0.0
      %1811 = vmatmul.mubr.f32.gmra.mrb[0].mxu0 %v1141
      %v1812 = vpop.f32.mrb[0].mxu0
      %v1813 = vadd.f32 %v811, %v1812
      %v1814 = vpop.f32.mrb[0].mxu0
      %1815 = vmatprep.mubr.f32.mxu0 0.0
      %1816 = vmatmul.mubr.f32.gmra.mrb[0].mxu0 %v1144
      %v1817 = vpop.f32.mrb[0].mxu0
      %v1818 = vadd.f32 %v811, %v1817
      %v1819 = vpop.f32.mrb[0].mxu0
      %1820 = vmatprep.mubr.f32.mxu0 0.0
      %1821 = vmatmul.mubr.f32.gmra.mrb[0].mxu0 %v1147
      %v1822 = vpop.f32.mrb[0].mxu0
      %v1823 = vadd.f32 %v811, %v1822
      %v1824 = vpop.f32.mrb[0].mxu0
      %1825 = vmatprep.mubr.f32.mxu0 0.0
      %1826 = vmatmul.mubr.f32.gmra.mrb[0].mxu0 %v1150
      %v1827 = vpop.f32.mrb[0].mxu0
      %v1828 = vadd.f32 %v811, %v1827
      %v1829 = vpop.f32.mrb[0].mxu0
      %1830 = vmatprep.mubr.f32.mxu0 0.0
      %1831 = vmatmul.mubr.f32.gmra.mrb[0].mxu0 %v1153
      %v1832 = vpop.f32.mrb[0].mxu0
      %v1833 = vadd.f32 %v811, %v1832
      %v1834 = vpop.f32.mrb[0].mxu0
      %1835 = vmatprep.mubr.f32.mxu0 0.0
      %1836 = vmatmul.mubr.f32.gmra.mrb[0].mxu0 %v1156
      %v1837 = vpop.f32.mrb[0].mxu0
      %v1838 = vadd.f32 %v811, %v1837
      %v1839 = vpop.f32.mrb[0].mxu0
      %1840 = vmatprep.mubr.f32.mxu0 0.0
      %1841 = vmatmul.mubr.f32.gmra.mrb[0].mxu0 %v1159
      %v1842 = vpop.f32.mrb[0].mxu0
      %v1843 = vadd.f32 %v811, %v1842
      %v1844 = vpop.f32.mrb[0].mxu0
      %1845 = vmatprep.mubr.f32.mxu0 0.0
      %1846 = vmatmul.mubr.f32.gmra.mrb[0].mxu0 %v1162
      %v1847 = vpop.f32.mrb[0].mxu0
      %v1848 = vadd.f32 %v811, %v1847
      %v1849 = vpop.f32.mrb[0].mxu0
      %1850 = vmatprep.mubr.f32.mxu0 0.0
      %1851 = vmatmul.mubr.f32.gmra.mrb[0].mxu0 %v1165
      %v1852 = vpop.f32.mrb[0].mxu0
      %v1853 = vadd.f32 %v811, %v1852
      %v1854 = vpop.f32.mrb[0].mxu0
      %1855 = vmatprep.mubr.f32.mxu0 0.0
      %1856 = vmatmul.mubr.f32.gmra.mrb[0].mxu0 %v1168
      %v1857 = vpop.f32.mrb[0].mxu0
      %v1858 = vadd.f32 %v811, %v1857
      %v1859 = vpop.f32.mrb[0].mxu0
      %1860 = vmatprep.mubr.f32.mxu0 0.0
      %1861 = vmatmul.mubr.f32.gmra.mrb[0].mxu0 %v1171
      %v1862 = vpop.f32.mrb[0].mxu0
      %v1863 = vadd.f32 %v811, %v1862
      %v1864 = vpop.f32.mrb[0].mxu0
      %1865 = vmatprep.mubr.f32.mxu0 0.0
      %1866 = vmatmul.mubr.f32.gmra.mrb[0].mxu0 %v1174
      %v1867 = vpop.f32.mrb[0].mxu0
      %v1868 = vadd.f32 %v811, %v1867
      %v1869 = vpop.f32.mrb[0].mxu0
      %1870 = vmatprep.mubr.f32.mxu0 0.0
      %1871 = vmatmul.mubr.f32.gmra.mrb[0].mxu0 %v1177
      %v1872 = vpop.f32.mrb[0].mxu0
      %v1873 = vadd.f32 %v811, %v1872
      %v1874 = vpop.f32.mrb[0].mxu0
      %1875 = vmatprep.mubr.f32.mxu0 0.0
      %1876 = vmatmul.mubr.f32.gmra.mrb[0].mxu0 %v1180
      %v1877 = vpop.f32.mrb[0].mxu0
      %v1878 = vadd.f32 %v811, %v1877
      %v1879 = vpop.f32.mrb[0].mxu0
      %1880 = vmatprep.mubr.f32.mxu0 0.0
      %1881 = vmatmul.mubr.f32.gmra.mrb[0].mxu0 %v1183
      %v1882 = vpop.f32.mrb[0].mxu0
      %v1883 = vadd.f32 %v811, %v1882
      %v1884 = vpop.f32.mrb[0].mxu0
      %1885 = vmatprep.mubr.f32.mxu0 0.0
      %1886 = vmatmul.mubr.f32.gmra.mrb[0].mxu0 %v1186
      %v1887 = vpop.f32.mrb[0].mxu0
      %v1888 = vadd.f32 %v811, %v1887
      %v1889 = vpop.f32.mrb[0].mxu0
      %1890 = vmatprep.mubr.f32.mxu0 0.0
      %1891 = vmatmul.mubr.f32.gmra.mrb[0].mxu0 %v1189
      %v1892 = vpop.f32.mrb[0].mxu0
      %v1893 = vadd.f32 %v811, %v1892
      %v1894 = vpop.f32.mrb[0].mxu0
      %1895 = vmatprep.mubr.f32.mxu0 0.0
      %1896 = vmatmul.mubr.f32.gmra.mrb[0].mxu0 %v1192
      %v1897 = vpop.f32.mrb[0].mxu0
      %v1898 = vadd.f32 %v811, %v1897
      %v1899 = vpop.f32.mrb[0].mxu0
      %1900 = vmatprep.mubr.f32.mxu0 0.0
      %1901 = vmatmul.mubr.f32.gmra.mrb[0].mxu0 %v1195
      %v1902 = vpop.f32.mrb[0].mxu0
      %v1903 = vadd.f32 %v811, %v1902
      %v1904 = vpop.f32.mrb[0].mxu0
      %1905 = vdwg.mxu0
      %v1906 = vmax.f32 %v1268, 0.0
      %v1907 = vmax.f32 %v1273, 0.0
      %v1908 = vmax.f32 %v1278, 0.0
      %v1909 = vmax.f32 %v1283, 0.0
      %v1910 = vmax.f32 %v1288, 0.0
      %v1911 = vmax.f32 %v1293, 0.0
      %v1912 = vmax.f32 %v1298, 0.0
      %v1913 = vmax.f32 %v1303, 0.0
      %v1914 = vmax.f32 %v1308, 0.0
      %v1915 = vmax.f32 %v1313, 0.0
      %v1916 = vmax.f32 %v1318, 0.0
      %v1917 = vmax.f32 %v1323, 0.0
      %v1918 = vmax.f32 %v1328, 0.0
      %v1919 = vmax.f32 %v1333, 0.0
      %v1920 = vmax.f32 %v1338, 0.0
      %v1921 = vmax.f32 %v1343, 0.0
      %v1922 = vmax.f32 %v1348, 0.0
      %v1923 = vmax.f32 %v1353, 0.0
      %v1924 = vmax.f32 %v1358, 0.0
      %v1925 = vmax.f32 %v1363, 0.0
      %v1926 = vmax.f32 %v1368, 0.0
      %v1927 = vmax.f32 %v1373, 0.0
      %v1928 = vmax.f32 %v1378, 0.0
      %v1929 = vmax.f32 %v1383, 0.0
      %v1930 = vmax.f32 %v1388, 0.0
      %v1931 = vmax.f32 %v1393, 0.0
      %v1932 = vmax.f32 %v1398, 0.0
      %v1933 = vmax.f32 %v1403, 0.0
      %v1934 = vmax.f32 %v1408, 0.0
      %v1935 = vmax.f32 %v1413, 0.0
      %v1936 = vmax.f32 %v1418, 0.0
      %v1937 = vmax.f32 %v1423, 0.0
      %v1938 = vmax.f32 %v1428, 0.0
      %v1939 = vmax.f32 %v1433, 0.0
      %v1940 = vmax.f32 %v1438, 0.0
      %v1941 = vmax.f32 %v1443, 0.0
      %v1942 = vmax.f32 %v1448, 0.0
      %v1943 = vmax.f32 %v1453, 0.0
      %v1944 = vmax.f32 %v1458, 0.0
      %v1945 = vmax.f32 %v1463, 0.0
      %v1946 = vmax.f32 %v1468, 0.0
      %v1947 = vmax.f32 %v1473, 0.0
      %v1948 = vmax.f32 %v1478, 0.0
      %v1949 = vmax.f32 %v1483, 0.0
      %v1950 = vmax.f32 %v1488, 0.0
      %v1951 = vmax.f32 %v1493, 0.0
      %v1952 = vmax.f32 %v1498, 0.0
      %v1953 = vmax.f32 %v1503, 0.0
      %v1954 = vmax.f32 %v1508, 0.0
      %v1955 = vmax.f32 %v1513, 0.0
      %v1956 = vmax.f32 %v1518, 0.0
      %v1957 = vmax.f32 %v1523, 0.0
      %v1958 = vmax.f32 %v1528, 0.0
      %v1959 = vmax.f32 %v1533, 0.0
      %v1960 = vmax.f32 %v1538, 0.0
      %v1961 = vmax.f32 %v1543, 0.0
      %v1962 = vmax.f32 %v1548, 0.0
      %v1963 = vmax.f32 %v1553, 0.0
      %v1964 = vmax.f32 %v1558, 0.0
      %v1965 = vmax.f32 %v1563, 0.0
      %v1966 = vmax.f32 %v1568, 0.0
      %v1967 = vmax.f32 %v1573, 0.0
      %v1968 = vmax.f32 %v1578, 0.0
      %v1969 = vmax.f32 %v1583, 0.0
      %v1970 = vmax.f32 %v1588, 0.0
      %v1971 = vmax.f32 %v1593, 0.0
      %v1972 = vmax.f32 %v1598, 0.0
      %v1973 = vmax.f32 %v1603, 0.0
      %v1974 = vmax.f32 %v1608, 0.0
      %v1975 = vmax.f32 %v1613, 0.0
      %v1976 = vmax.f32 %v1618, 0.0
      %v1977 = vmax.f32 %v1623, 0.0
      %v1978 = vmax.f32 %v1628, 0.0
      %v1979 = vmax.f32 %v1633, 0.0
      %v1980 = vmax.f32 %v1638, 0.0
      %v1981 = vmax.f32 %v1643, 0.0
      %v1982 = vmax.f32 %v1648, 0.0
      %v1983 = vmax.f32 %v1653, 0.0
      %v1984 = vmax.f32 %v1658, 0.0
      %v1985 = vmax.f32 %v1663, 0.0
      %v1986 = vmax.f32 %v1668, 0.0
      %v1987 = vmax.f32 %v1673, 0.0
      %v1988 = vmax.f32 %v1678, 0.0
      %v1989 = vmax.f32 %v1683, 0.0
      %v1990 = vmax.f32 %v1688, 0.0
      %v1991 = vmax.f32 %v1693, 0.0
      %v1992 = vmax.f32 %v1698, 0.0
      %v1993 = vmax.f32 %v1703, 0.0
      %v1994 = vmax.f32 %v1708, 0.0
      %v1995 = vmax.f32 %v1713, 0.0
      %v1996 = vmax.f32 %v1718, 0.0
      %v1997 = vmax.f32 %v1723, 0.0
      %v1998 = vmax.f32 %v1728, 0.0
      %v1999 = vmax.f32 %v1733, 0.0
      %v2000 = vmax.f32 %v1738, 0.0
      %v2001 = vmax.f32 %v1743, 0.0
      %v2002 = vmax.f32 %v1748, 0.0
      %v2003 = vmax.f32 %v1753, 0.0
      %v2004 = vmax.f32 %v1758, 0.0
      %v2005 = vmax.f32 %v1763, 0.0
      %v2006 = vmax.f32 %v1768, 0.0
      %v2007 = vmax.f32 %v1773, 0.0
      %v2008 = vmax.f32 %v1778, 0.0
      %v2009 = vmax.f32 %v1783, 0.0
      %v2010 = vmax.f32 %v1788, 0.0
      %v2011 = vmax.f32 %v1793, 0.0
      %v2012 = vmax.f32 %v1798, 0.0
      %v2013 = vmax.f32 %v1803, 0.0
      %v2014 = vmax.f32 %v1808, 0.0
      %v2015 = vmax.f32 %v1813, 0.0
      %v2016 = vmax.f32 %v1818, 0.0
      %v2017 = vmax.f32 %v1823, 0.0
      %v2018 = vmax.f32 %v1828, 0.0
      %v2019 = vmax.f32 %v1833, 0.0
      %v2020 = vmax.f32 %v1838, 0.0
      %v2021 = vmax.f32 %v1843, 0.0
      %v2022 = vmax.f32 %v1848, 0.0
      %v2023 = vmax.f32 %v1853, 0.0
      %v2024 = vmax.f32 %v1858, 0.0
      %v2025 = vmax.f32 %v1863, 0.0
      %v2026 = vmax.f32 %v1868, 0.0
      %v2027 = vmax.f32 %v1873, 0.0
      %v2028 = vmax.f32 %v1878, 0.0
      %v2029 = vmax.f32 %v1883, 0.0
      %v2030 = vmax.f32 %v1888, 0.0
      %v2031 = vmax.f32 %v1893, 0.0
      %v2032 = vmax.f32 %v1898, 0.0
      %v2033 = vmax.f32 %v1903, 0.0
      %v2034 = vlaneseq
      %v2035 = vshrl.u32 %v2034, 7
      %v2036 = vsub.s32 0, %v2035
      %v2037 = vrot.slane %v807, %v2036
      %2038 = vmatprep.subr.mxu0 0.0
      %2039 = vmatpush1.msra.mxu0 %v791
      %2040 = vmatprep.subr.mxu0 0.0
      %2041 = vmatpush1.msra.mxu0 %v792
      %2042 = vmatprep.subr.mxu0 0.0
      %2043 = vmatpush1.msra.mxu0 %v793
      %2044 = vmatprep.subr.mxu0 0.0
      %2045 = vmatpush1.msra.mxu0 %v794
      %2046 = vmatprep.subr.mxu0 0.0
      %2047 = vmatpush1.msra.mxu0 %v795
      %2048 = vmatprep.subr.mxu0 0.0
      %2049 = vmatpush1.msra.mxu0 %v796
      %2050 = vmatprep.subr.mxu0 0.0
      %2051 = vmatpush1.msra.mxu0 %v797
      %2052 = vmatprep.subr.mxu0 0.0
      %2053 = vmatpush1.msra.mxu0 %v798
      %2054 = vmatprep.subr.mxu0 0.0
      %2055 = vmatpush1.msra.mxu0 %v799
      %2056 = vmatprep.subr.mxu0 0.0
      %2057 = vmatpush1.msra.mxu0 %v800
      %2058 = vmatprep.subr.mxu0 0.0
      %2059 = vmatpush1.msra.mxu0 %v801
      %2060 = vmatprep.subr.mxu0 0.0
      %2061 = vmatpush1.msra.mxu0 %v802
      %2062 = vmatprep.subr.mxu0 0.0
      %2063 = vmatpush1.msra.mxu0 %v803
      %2064 = vmatprep.subr.mxu0 0.0
      %2065 = vmatpush1.msra.mxu0 %v804
      %2066 = vmatprep.subr.mxu0 0.0
      %2067 = vmatpush1.msra.mxu0 %v805
      %2068 = vmatprep.subr.mxu0 0.0
      %2069 = vmatpush1.msra.mxu0 %v806
      %2070 = vmatprep.subr.mxu0 0.0
      %2071 = vmatpush1.msra.mxu0 0.0
      %2072 = vmatprep.subr.mxu0 0.0
      %2073 = vmatpush1.msra.mxu0 0.0
      %2074 = vmatprep.subr.mxu0 0.0
      %2075 = vmatpush1.msra.mxu0 0.0
      %2076 = vmatprep.subr.mxu0 0.0
      %2077 = vmatpush1.msra.mxu0 0.0
      %2078 = vmatprep.subr.mxu0 0.0
      %2079 = vmatpush1.msra.mxu0 0.0
      %2080 = vmatprep.subr.mxu0 0.0
      %2081 = vmatpush1.msra.mxu0 0.0
      %2082 = vmatprep.subr.mxu0 0.0
      %2083 = vmatpush1.msra.mxu0 0.0
      %2084 = vmatprep.subr.mxu0 0.0
      %2085 = vmatpush1.msra.mxu0 0.0
      %2086 = vmatprep.subr.mxu0 0.0
      %2087 = vmatpush1.msra.mxu0 0.0
      %2088 = vmatprep.subr.mxu0 0.0
      %2089 = vmatpush1.msra.mxu0 0.0
      %2090 = vmatprep.subr.mxu0 0.0
      %2091 = vmatpush1.msra.mxu0 0.0
      %2092 = vmatprep.subr.mxu0 0.0
      %2093 = vmatpush1.msra.mxu0 0.0
      %2094 = vmatprep.subr.mxu0 0.0
      %2095 = vmatpush1.msra.mxu0 0.0
      %2096 = vmatprep.subr.mxu0 0.0
      %2097 = vmatpush1.msra.mxu0 0.0
      %2098 = vmatprep.subr.mxu0 0.0
      %2099 = vmatpush1.msra.mxu0 0.0
      %2100 = vmatprep.subr.mxu0 0.0
      %2101 = vmatpush1.msra.mxu0 0.0
      %2102 = vmatprep.mubr.f32.mxu0 0.0
      %2103 = vmatmul.mubr.f32.gmra.mrb[0].mxu0 %v1906
      %v2104 = vpop.f32.mrb[0].mxu0
      %v2105 = vadd.f32 %v2037, %v2104
      %v2106 = vpop.f32.mrb[0].mxu0
      %2107 = vmatprep.mubr.f32.mxu0 0.0
      %2108 = vmatmul.mubr.f32.gmra.mrb[0].mxu0 %v1907
      %v2109 = vpop.f32.mrb[0].mxu0
      %v2110 = vadd.f32 %v2037, %v2109
      %v2111 = vpop.f32.mrb[0].mxu0
      %2112 = vmatprep.mubr.f32.mxu0 0.0
      %2113 = vmatmul.mubr.f32.gmra.mrb[0].mxu0 %v1908
      %v2114 = vpop.f32.mrb[0].mxu0
      %v2115 = vadd.f32 %v2037, %v2114
      %v2116 = vpop.f32.mrb[0].mxu0
      %2117 = vmatprep.mubr.f32.mxu0 0.0
      %2118 = vmatmul.mubr.f32.gmra.mrb[0].mxu0 %v1909
      %v2119 = vpop.f32.mrb[0].mxu0
      %v2120 = vadd.f32 %v2037, %v2119
      %v2121 = vpop.f32.mrb[0].mxu0
      %2122 = vmatprep.mubr.f32.mxu0 0.0
      %2123 = vmatmul.mubr.f32.gmra.mrb[0].mxu0 %v1910
      %v2124 = vpop.f32.mrb[0].mxu0
      %v2125 = vadd.f32 %v2037, %v2124
      %v2126 = vpop.f32.mrb[0].mxu0
      %2127 = vmatprep.mubr.f32.mxu0 0.0
      %2128 = vmatmul.mubr.f32.gmra.mrb[0].mxu0 %v1911
      %v2129 = vpop.f32.mrb[0].mxu0
      %v2130 = vadd.f32 %v2037, %v2129
      %v2131 = vpop.f32.mrb[0].mxu0
      %2132 = vmatprep.mubr.f32.mxu0 0.0
      %2133 = vmatmul.mubr.f32.gmra.mrb[0].mxu0 %v1912
      %v2134 = vpop.f32.mrb[0].mxu0
      %v2135 = vadd.f32 %v2037, %v2134
      %v2136 = vpop.f32.mrb[0].mxu0
      %2137 = vmatprep.mubr.f32.mxu0 0.0
      %2138 = vmatmul.mubr.f32.gmra.mrb[0].mxu0 %v1913
      %v2139 = vpop.f32.mrb[0].mxu0
      %v2140 = vadd.f32 %v2037, %v2139
      %v2141 = vpop.f32.mrb[0].mxu0
      %2142 = vmatprep.mubr.f32.mxu0 0.0
      %2143 = vmatmul.mubr.f32.gmra.mrb[0].mxu0 %v1914
      %v2144 = vpop.f32.mrb[0].mxu0
      %v2145 = vadd.f32 %v2037, %v2144
      %v2146 = vpop.f32.mrb[0].mxu0
      %2147 = vmatprep.mubr.f32.mxu0 0.0
      %2148 = vmatmul.mubr.f32.gmra.mrb[0].mxu0 %v1915
      %v2149 = vpop.f32.mrb[0].mxu0
      %v2150 = vadd.f32 %v2037, %v2149
      %v2151 = vpop.f32.mrb[0].mxu0
      %2152 = vmatprep.mubr.f32.mxu0 0.0
      %2153 = vmatmul.mubr.f32.gmra.mrb[0].mxu0 %v1916
      %v2154 = vpop.f32.mrb[0].mxu0
      %v2155 = vadd.f32 %v2037, %v2154
      %v2156 = vpop.f32.mrb[0].mxu0
      %2157 = vmatprep.mubr.f32.mxu0 0.0
      %2158 = vmatmul.mubr.f32.gmra.mrb[0].mxu0 %v1917
      %v2159 = vpop.f32.mrb[0].mxu0
      %v2160 = vadd.f32 %v2037, %v2159
      %v2161 = vpop.f32.mrb[0].mxu0
      %2162 = vmatprep.mubr.f32.mxu0 0.0
      %2163 = vmatmul.mubr.f32.gmra.mrb[0].mxu0 %v1918
      %v2164 = vpop.f32.mrb[0].mxu0
      %v2165 = vadd.f32 %v2037, %v2164
      %v2166 = vpop.f32.mrb[0].mxu0
      %2167 = vmatprep.mubr.f32.mxu0 0.0
      %2168 = vmatmul.mubr.f32.gmra.mrb[0].mxu0 %v1919
      %v2169 = vpop.f32.mrb[0].mxu0
      %v2170 = vadd.f32 %v2037, %v2169
      %v2171 = vpop.f32.mrb[0].mxu0
      %2172 = vmatprep.mubr.f32.mxu0 0.0
      %2173 = vmatmul.mubr.f32.gmra.mrb[0].mxu0 %v1920
      %v2174 = vpop.f32.mrb[0].mxu0
      %v2175 = vadd.f32 %v2037, %v2174
      %v2176 = vpop.f32.mrb[0].mxu0
      %2177 = vmatprep.mubr.f32.mxu0 0.0
      %2178 = vmatmul.mubr.f32.gmra.mrb[0].mxu0 %v1921
      %v2179 = vpop.f32.mrb[0].mxu0
      %v2180 = vadd.f32 %v2037, %v2179
      %v2181 = vpop.f32.mrb[0].mxu0
      %2182 = vmatprep.mubr.f32.mxu0 0.0
      %2183 = vmatmul.mubr.f32.gmra.mrb[0].mxu0 %v1922
      %v2184 = vpop.f32.mrb[0].mxu0
      %v2185 = vadd.f32 %v2037, %v2184
      %v2186 = vpop.f32.mrb[0].mxu0
      %2187 = vmatprep.mubr.f32.mxu0 0.0
      %2188 = vmatmul.mubr.f32.gmra.mrb[0].mxu0 %v1923
      %v2189 = vpop.f32.mrb[0].mxu0
      %v2190 = vadd.f32 %v2037, %v2189
      %v2191 = vpop.f32.mrb[0].mxu0
      %2192 = vmatprep.mubr.f32.mxu0 0.0
      %2193 = vmatmul.mubr.f32.gmra.mrb[0].mxu0 %v1924
      %v2194 = vpop.f32.mrb[0].mxu0
      %v2195 = vadd.f32 %v2037, %v2194
      %v2196 = vpop.f32.mrb[0].mxu0
      %2197 = vmatprep.mubr.f32.mxu0 0.0
      %2198 = vmatmul.mubr.f32.gmra.mrb[0].mxu0 %v1925
      %v2199 = vpop.f32.mrb[0].mxu0
      %v2200 = vadd.f32 %v2037, %v2199
      %v2201 = vpop.f32.mrb[0].mxu0
      %2202 = vmatprep.mubr.f32.mxu0 0.0
      %2203 = vmatmul.mubr.f32.gmra.mrb[0].mxu0 %v1926
      %v2204 = vpop.f32.mrb[0].mxu0
      %v2205 = vadd.f32 %v2037, %v2204
      %v2206 = vpop.f32.mrb[0].mxu0
      %2207 = vmatprep.mubr.f32.mxu0 0.0
      %2208 = vmatmul.mubr.f32.gmra.mrb[0].mxu0 %v1927
      %v2209 = vpop.f32.mrb[0].mxu0
      %v2210 = vadd.f32 %v2037, %v2209
      %v2211 = vpop.f32.mrb[0].mxu0
      %2212 = vmatprep.mubr.f32.mxu0 0.0
      %2213 = vmatmul.mubr.f32.gmra.mrb[0].mxu0 %v1928
      %v2214 = vpop.f32.mrb[0].mxu0
      %v2215 = vadd.f32 %v2037, %v2214
      %v2216 = vpop.f32.mrb[0].mxu0
      %2217 = vmatprep.mubr.f32.mxu0 0.0
      %2218 = vmatmul.mubr.f32.gmra.mrb[0].mxu0 %v1929
      %v2219 = vpop.f32.mrb[0].mxu0
      %v2220 = vadd.f32 %v2037, %v2219
      %v2221 = vpop.f32.mrb[0].mxu0
      %2222 = vmatprep.mubr.f32.mxu0 0.0
      %2223 = vmatmul.mubr.f32.gmra.mrb[0].mxu0 %v1930
      %v2224 = vpop.f32.mrb[0].mxu0
      %v2225 = vadd.f32 %v2037, %v2224
      %v2226 = vpop.f32.mrb[0].mxu0
      %2227 = vmatprep.mubr.f32.mxu0 0.0
      %2228 = vmatmul.mubr.f32.gmra.mrb[0].mxu0 %v1931
      %v2229 = vpop.f32.mrb[0].mxu0
      %v2230 = vadd.f32 %v2037, %v2229
      %v2231 = vpop.f32.mrb[0].mxu0
      %2232 = vmatprep.mubr.f32.mxu0 0.0
      %2233 = vmatmul.mubr.f32.gmra.mrb[0].mxu0 %v1932
      %v2234 = vpop.f32.mrb[0].mxu0
      %v2235 = vadd.f32 %v2037, %v2234
      %v2236 = vpop.f32.mrb[0].mxu0
      %2237 = vmatprep.mubr.f32.mxu0 0.0
      %2238 = vmatmul.mubr.f32.gmra.mrb[0].mxu0 %v1933
      %v2239 = vpop.f32.mrb[0].mxu0
      %v2240 = vadd.f32 %v2037, %v2239
      %v2241 = vpop.f32.mrb[0].mxu0
      %2242 = vmatprep.mubr.f32.mxu0 0.0
      %2243 = vmatmul.mubr.f32.gmra.mrb[0].mxu0 %v1934
      %v2244 = vpop.f32.mrb[0].mxu0
      %v2245 = vadd.f32 %v2037, %v2244
      %v2246 = vpop.f32.mrb[0].mxu0
      %2247 = vmatprep.mubr.f32.mxu0 0.0
      %2248 = vmatmul.mubr.f32.gmra.mrb[0].mxu0 %v1935
      %v2249 = vpop.f32.mrb[0].mxu0
      %v2250 = vadd.f32 %v2037, %v2249
      %v2251 = vpop.f32.mrb[0].mxu0
      %2252 = vmatprep.mubr.f32.mxu0 0.0
      %2253 = vmatmul.mubr.f32.gmra.mrb[0].mxu0 %v1936
      %v2254 = vpop.f32.mrb[0].mxu0
      %v2255 = vadd.f32 %v2037, %v2254
      %v2256 = vpop.f32.mrb[0].mxu0
      %2257 = vmatprep.mubr.f32.mxu0 0.0
      %2258 = vmatmul.mubr.f32.gmra.mrb[0].mxu0 %v1937
      %v2259 = vpop.f32.mrb[0].mxu0
      %v2260 = vadd.f32 %v2037, %v2259
      %v2261 = vpop.f32.mrb[0].mxu0
      %2262 = vmatprep.mubr.f32.mxu0 0.0
      %2263 = vmatmul.mubr.f32.gmra.mrb[0].mxu0 %v1938
      %v2264 = vpop.f32.mrb[0].mxu0
      %v2265 = vadd.f32 %v2037, %v2264
      %v2266 = vpop.f32.mrb[0].mxu0
      %2267 = vmatprep.mubr.f32.mxu0 0.0
      %2268 = vmatmul.mubr.f32.gmra.mrb[0].mxu0 %v1939
      %v2269 = vpop.f32.mrb[0].mxu0
      %v2270 = vadd.f32 %v2037, %v2269
      %v2271 = vpop.f32.mrb[0].mxu0
      %2272 = vmatprep.mubr.f32.mxu0 0.0
      %2273 = vmatmul.mubr.f32.gmra.mrb[0].mxu0 %v1940
      %v2274 = vpop.f32.mrb[0].mxu0
      %v2275 = vadd.f32 %v2037, %v2274
      %v2276 = vpop.f32.mrb[0].mxu0
      %2277 = vmatprep.mubr.f32.mxu0 0.0
      %2278 = vmatmul.mubr.f32.gmra.mrb[0].mxu0 %v1941
      %v2279 = vpop.f32.mrb[0].mxu0
      %v2280 = vadd.f32 %v2037, %v2279
      %v2281 = vpop.f32.mrb[0].mxu0
      %2282 = vmatprep.mubr.f32.mxu0 0.0
      %2283 = vmatmul.mubr.f32.gmra.mrb[0].mxu0 %v1942
      %v2284 = vpop.f32.mrb[0].mxu0
      %v2285 = vadd.f32 %v2037, %v2284
      %v2286 = vpop.f32.mrb[0].mxu0
      %2287 = vmatprep.mubr.f32.mxu0 0.0
      %2288 = vmatmul.mubr.f32.gmra.mrb[0].mxu0 %v1943
      %v2289 = vpop.f32.mrb[0].mxu0
      %v2290 = vadd.f32 %v2037, %v2289
      %v2291 = vpop.f32.mrb[0].mxu0
      %2292 = vmatprep.mubr.f32.mxu0 0.0
      %2293 = vmatmul.mubr.f32.gmra.mrb[0].mxu0 %v1944
      %v2294 = vpop.f32.mrb[0].mxu0
      %v2295 = vadd.f32 %v2037, %v2294
      %v2296 = vpop.f32.mrb[0].mxu0
      %2297 = vmatprep.mubr.f32.mxu0 0.0
      %2298 = vmatmul.mubr.f32.gmra.mrb[0].mxu0 %v1945
      %v2299 = vpop.f32.mrb[0].mxu0
      %v2300 = vadd.f32 %v2037, %v2299
      %v2301 = vpop.f32.mrb[0].mxu0
      %2302 = vmatprep.mubr.f32.mxu0 0.0
      %2303 = vmatmul.mubr.f32.gmra.mrb[0].mxu0 %v1946
      %v2304 = vpop.f32.mrb[0].mxu0
      %v2305 = vadd.f32 %v2037, %v2304
      %v2306 = vpop.f32.mrb[0].mxu0
      %2307 = vmatprep.mubr.f32.mxu0 0.0
      %2308 = vmatmul.mubr.f32.gmra.mrb[0].mxu0 %v1947
      %v2309 = vpop.f32.mrb[0].mxu0
      %v2310 = vadd.f32 %v2037, %v2309
      %v2311 = vpop.f32.mrb[0].mxu0
      %2312 = vmatprep.mubr.f32.mxu0 0.0
      %2313 = vmatmul.mubr.f32.gmra.mrb[0].mxu0 %v1948
      %v2314 = vpop.f32.mrb[0].mxu0
      %v2315 = vadd.f32 %v2037, %v2314
      %v2316 = vpop.f32.mrb[0].mxu0
      %2317 = vmatprep.mubr.f32.mxu0 0.0
      %2318 = vmatmul.mubr.f32.gmra.mrb[0].mxu0 %v1949
      %v2319 = vpop.f32.mrb[0].mxu0
      %v2320 = vadd.f32 %v2037, %v2319
      %v2321 = vpop.f32.mrb[0].mxu0
      %2322 = vmatprep.mubr.f32.mxu0 0.0
      %2323 = vmatmul.mubr.f32.gmra.mrb[0].mxu0 %v1950
      %v2324 = vpop.f32.mrb[0].mxu0
      %v2325 = vadd.f32 %v2037, %v2324
      %v2326 = vpop.f32.mrb[0].mxu0
      %2327 = vmatprep.mubr.f32.mxu0 0.0
      %2328 = vmatmul.mubr.f32.gmra.mrb[0].mxu0 %v1951
      %v2329 = vpop.f32.mrb[0].mxu0
      %v2330 = vadd.f32 %v2037, %v2329
      %v2331 = vpop.f32.mrb[0].mxu0
      %2332 = vmatprep.mubr.f32.mxu0 0.0
      %2333 = vmatmul.mubr.f32.gmra.mrb[0].mxu0 %v1952
      %v2334 = vpop.f32.mrb[0].mxu0
      %v2335 = vadd.f32 %v2037, %v2334
      %v2336 = vpop.f32.mrb[0].mxu0
      %2337 = vmatprep.mubr.f32.mxu0 0.0
      %2338 = vmatmul.mubr.f32.gmra.mrb[0].mxu0 %v1953
      %v2339 = vpop.f32.mrb[0].mxu0
      %v2340 = vadd.f32 %v2037, %v2339
      %v2341 = vpop.f32.mrb[0].mxu0
      %2342 = vmatprep.mubr.f32.mxu0 0.0
      %2343 = vmatmul.mubr.f32.gmra.mrb[0].mxu0 %v1954
      %v2344 = vpop.f32.mrb[0].mxu0
      %v2345 = vadd.f32 %v2037, %v2344
      %v2346 = vpop.f32.mrb[0].mxu0
      %2347 = vmatprep.mubr.f32.mxu0 0.0
      %2348 = vmatmul.mubr.f32.gmra.mrb[0].mxu0 %v1955
      %v2349 = vpop.f32.mrb[0].mxu0
      %v2350 = vadd.f32 %v2037, %v2349
      %v2351 = vpop.f32.mrb[0].mxu0
      %2352 = vmatprep.mubr.f32.mxu0 0.0
      %2353 = vmatmul.mubr.f32.gmra.mrb[0].mxu0 %v1956
      %v2354 = vpop.f32.mrb[0].mxu0
      %v2355 = vadd.f32 %v2037, %v2354
      %v2356 = vpop.f32.mrb[0].mxu0
      %2357 = vmatprep.mubr.f32.mxu0 0.0
      %2358 = vmatmul.mubr.f32.gmra.mrb[0].mxu0 %v1957
      %v2359 = vpop.f32.mrb[0].mxu0
      %v2360 = vadd.f32 %v2037, %v2359
      %v2361 = vpop.f32.mrb[0].mxu0
      %2362 = vmatprep.mubr.f32.mxu0 0.0
      %2363 = vmatmul.mubr.f32.gmra.mrb[0].mxu0 %v1958
      %v2364 = vpop.f32.mrb[0].mxu0
      %v2365 = vadd.f32 %v2037, %v2364
      %v2366 = vpop.f32.mrb[0].mxu0
      %2367 = vmatprep.mubr.f32.mxu0 0.0
      %2368 = vmatmul.mubr.f32.gmra.mrb[0].mxu0 %v1959
      %v2369 = vpop.f32.mrb[0].mxu0
      %v2370 = vadd.f32 %v2037, %v2369
      %v2371 = vpop.f32.mrb[0].mxu0
      %2372 = vmatprep.mubr.f32.mxu0 0.0
      %2373 = vmatmul.mubr.f32.gmra.mrb[0].mxu0 %v1960
      %v2374 = vpop.f32.mrb[0].mxu0
      %v2375 = vadd.f32 %v2037, %v2374
      %v2376 = vpop.f32.mrb[0].mxu0
      %2377 = vmatprep.mubr.f32.mxu0 0.0
      %2378 = vmatmul.mubr.f32.gmra.mrb[0].mxu0 %v1961
      %v2379 = vpop.f32.mrb[0].mxu0
      %v2380 = vadd.f32 %v2037, %v2379
      %v2381 = vpop.f32.mrb[0].mxu0
      %2382 = vmatprep.mubr.f32.mxu0 0.0
      %2383 = vmatmul.mubr.f32.gmra.mrb[0].mxu0 %v1962
      %v2384 = vpop.f32.mrb[0].mxu0
      %v2385 = vadd.f32 %v2037, %v2384
      %v2386 = vpop.f32.mrb[0].mxu0
      %2387 = vmatprep.mubr.f32.mxu0 0.0
      %2388 = vmatmul.mubr.f32.gmra.mrb[0].mxu0 %v1963
      %v2389 = vpop.f32.mrb[0].mxu0
      %v2390 = vadd.f32 %v2037, %v2389
      %v2391 = vpop.f32.mrb[0].mxu0
      %2392 = vmatprep.mubr.f32.mxu0 0.0
      %2393 = vmatmul.mubr.f32.gmra.mrb[0].mxu0 %v1964
      %v2394 = vpop.f32.mrb[0].mxu0
      %v2395 = vadd.f32 %v2037, %v2394
      %v2396 = vpop.f32.mrb[0].mxu0
      %2397 = vmatprep.mubr.f32.mxu0 0.0
      %2398 = vmatmul.mubr.f32.gmra.mrb[0].mxu0 %v1965
      %v2399 = vpop.f32.mrb[0].mxu0
      %v2400 = vadd.f32 %v2037, %v2399
      %v2401 = vpop.f32.mrb[0].mxu0
      %2402 = vmatprep.mubr.f32.mxu0 0.0
      %2403 = vmatmul.mubr.f32.gmra.mrb[0].mxu0 %v1966
      %v2404 = vpop.f32.mrb[0].mxu0
      %v2405 = vadd.f32 %v2037, %v2404
      %v2406 = vpop.f32.mrb[0].mxu0
      %2407 = vmatprep.mubr.f32.mxu0 0.0
      %2408 = vmatmul.mubr.f32.gmra.mrb[0].mxu0 %v1967
      %v2409 = vpop.f32.mrb[0].mxu0
      %v2410 = vadd.f32 %v2037, %v2409
      %v2411 = vpop.f32.mrb[0].mxu0
      %2412 = vmatprep.mubr.f32.mxu0 0.0
      %2413 = vmatmul.mubr.f32.gmra.mrb[0].mxu0 %v1968
      %v2414 = vpop.f32.mrb[0].mxu0
      %v2415 = vadd.f32 %v2037, %v2414
      %v2416 = vpop.f32.mrb[0].mxu0
      %2417 = vmatprep.mubr.f32.mxu0 0.0
      %2418 = vmatmul.mubr.f32.gmra.mrb[0].mxu0 %v1969
      %v2419 = vpop.f32.mrb[0].mxu0
      %v2420 = vadd.f32 %v2037, %v2419
      %v2421 = vpop.f32.mrb[0].mxu0
      %2422 = vmatprep.mubr.f32.mxu0 0.0
      %2423 = vmatmul.mubr.f32.gmra.mrb[0].mxu0 %v1970
      %v2424 = vpop.f32.mrb[0].mxu0
      %v2425 = vadd.f32 %v2037, %v2424
      %v2426 = vpop.f32.mrb[0].mxu0
      %2427 = vmatprep.mubr.f32.mxu0 0.0
      %2428 = vmatmul.mubr.f32.gmra.mrb[0].mxu0 %v1971
      %v2429 = vpop.f32.mrb[0].mxu0
      %v2430 = vadd.f32 %v2037, %v2429
      %v2431 = vpop.f32.mrb[0].mxu0
      %2432 = vmatprep.mubr.f32.mxu0 0.0
      %2433 = vmatmul.mubr.f32.gmra.mrb[0].mxu0 %v1972
      %v2434 = vpop.f32.mrb[0].mxu0
      %v2435 = vadd.f32 %v2037, %v2434
      %v2436 = vpop.f32.mrb[0].mxu0
      %2437 = vmatprep.mubr.f32.mxu0 0.0
      %2438 = vmatmul.mubr.f32.gmra.mrb[0].mxu0 %v1973
      %v2439 = vpop.f32.mrb[0].mxu0
      %v2440 = vadd.f32 %v2037, %v2439
      %v2441 = vpop.f32.mrb[0].mxu0
      %2442 = vmatprep.mubr.f32.mxu0 0.0
      %2443 = vmatmul.mubr.f32.gmra.mrb[0].mxu0 %v1974
      %v2444 = vpop.f32.mrb[0].mxu0
      %v2445 = vadd.f32 %v2037, %v2444
      %v2446 = vpop.f32.mrb[0].mxu0
      %2447 = vmatprep.mubr.f32.mxu0 0.0
      %2448 = vmatmul.mubr.f32.gmra.mrb[0].mxu0 %v1975
      %v2449 = vpop.f32.mrb[0].mxu0
      %v2450 = vadd.f32 %v2037, %v2449
      %v2451 = vpop.f32.mrb[0].mxu0
      %2452 = vmatprep.mubr.f32.mxu0 0.0
      %2453 = vmatmul.mubr.f32.gmra.mrb[0].mxu0 %v1976
      %v2454 = vpop.f32.mrb[0].mxu0
      %v2455 = vadd.f32 %v2037, %v2454
      %v2456 = vpop.f32.mrb[0].mxu0
      %2457 = vmatprep.mubr.f32.mxu0 0.0
      %2458 = vmatmul.mubr.f32.gmra.mrb[0].mxu0 %v1977
      %v2459 = vpop.f32.mrb[0].mxu0
      %v2460 = vadd.f32 %v2037, %v2459
      %v2461 = vpop.f32.mrb[0].mxu0
      %2462 = vmatprep.mubr.f32.mxu0 0.0
      %2463 = vmatmul.mubr.f32.gmra.mrb[0].mxu0 %v1978
      %v2464 = vpop.f32.mrb[0].mxu0
      %v2465 = vadd.f32 %v2037, %v2464
      %v2466 = vpop.f32.mrb[0].mxu0
      %2467 = vmatprep.mubr.f32.mxu0 0.0
      %2468 = vmatmul.mubr.f32.gmra.mrb[0].mxu0 %v1979
      %v2469 = vpop.f32.mrb[0].mxu0
      %v2470 = vadd.f32 %v2037, %v2469
      %v2471 = vpop.f32.mrb[0].mxu0
      %2472 = vmatprep.mubr.f32.mxu0 0.0
      %2473 = vmatmul.mubr.f32.gmra.mrb[0].mxu0 %v1980
      %v2474 = vpop.f32.mrb[0].mxu0
      %v2475 = vadd.f32 %v2037, %v2474
      %v2476 = vpop.f32.mrb[0].mxu0
      %2477 = vmatprep.mubr.f32.mxu0 0.0
      %2478 = vmatmul.mubr.f32.gmra.mrb[0].mxu0 %v1981
      %v2479 = vpop.f32.mrb[0].mxu0
      %v2480 = vadd.f32 %v2037, %v2479
      %v2481 = vpop.f32.mrb[0].mxu0
      %2482 = vmatprep.mubr.f32.mxu0 0.0
      %2483 = vmatmul.mubr.f32.gmra.mrb[0].mxu0 %v1982
      %v2484 = vpop.f32.mrb[0].mxu0
      %v2485 = vadd.f32 %v2037, %v2484
      %v2486 = vpop.f32.mrb[0].mxu0
      %2487 = vmatprep.mubr.f32.mxu0 0.0
      %2488 = vmatmul.mubr.f32.gmra.mrb[0].mxu0 %v1983
      %v2489 = vpop.f32.mrb[0].mxu0
      %v2490 = vadd.f32 %v2037, %v2489
      %v2491 = vpop.f32.mrb[0].mxu0
      %2492 = vmatprep.mubr.f32.mxu0 0.0
      %2493 = vmatmul.mubr.f32.gmra.mrb[0].mxu0 %v1984
      %v2494 = vpop.f32.mrb[0].mxu0
      %v2495 = vadd.f32 %v2037, %v2494
      %v2496 = vpop.f32.mrb[0].mxu0
      %2497 = vmatprep.mubr.f32.mxu0 0.0
      %2498 = vmatmul.mubr.f32.gmra.mrb[0].mxu0 %v1985
      %v2499 = vpop.f32.mrb[0].mxu0
      %v2500 = vadd.f32 %v2037, %v2499
      %v2501 = vpop.f32.mrb[0].mxu0
      %2502 = vmatprep.mubr.f32.mxu0 0.0
      %2503 = vmatmul.mubr.f32.gmra.mrb[0].mxu0 %v1986
      %v2504 = vpop.f32.mrb[0].mxu0
      %v2505 = vadd.f32 %v2037, %v2504
      %v2506 = vpop.f32.mrb[0].mxu0
      %2507 = vmatprep.mubr.f32.mxu0 0.0
      %2508 = vmatmul.mubr.f32.gmra.mrb[0].mxu0 %v1987
      %v2509 = vpop.f32.mrb[0].mxu0
      %v2510 = vadd.f32 %v2037, %v2509
      %v2511 = vpop.f32.mrb[0].mxu0
      %2512 = vmatprep.mubr.f32.mxu0 0.0
      %2513 = vmatmul.mubr.f32.gmra.mrb[0].mxu0 %v1988
      %v2514 = vpop.f32.mrb[0].mxu0
      %v2515 = vadd.f32 %v2037, %v2514
      %v2516 = vpop.f32.mrb[0].mxu0
      %2517 = vmatprep.mubr.f32.mxu0 0.0
      %2518 = vmatmul.mubr.f32.gmra.mrb[0].mxu0 %v1989
      %v2519 = vpop.f32.mrb[0].mxu0
      %v2520 = vadd.f32 %v2037, %v2519
      %v2521 = vpop.f32.mrb[0].mxu0
      %2522 = vmatprep.mubr.f32.mxu0 0.0
      %2523 = vmatmul.mubr.f32.gmra.mrb[0].mxu0 %v1990
      %v2524 = vpop.f32.mrb[0].mxu0
      %v2525 = vadd.f32 %v2037, %v2524
      %v2526 = vpop.f32.mrb[0].mxu0
      %2527 = vmatprep.mubr.f32.mxu0 0.0
      %2528 = vmatmul.mubr.f32.gmra.mrb[0].mxu0 %v1991
      %v2529 = vpop.f32.mrb[0].mxu0
      %v2530 = vadd.f32 %v2037, %v2529
      %v2531 = vpop.f32.mrb[0].mxu0
      %2532 = vmatprep.mubr.f32.mxu0 0.0
      %2533 = vmatmul.mubr.f32.gmra.mrb[0].mxu0 %v1992
      %v2534 = vpop.f32.mrb[0].mxu0
      %v2535 = vadd.f32 %v2037, %v2534
      %v2536 = vpop.f32.mrb[0].mxu0
      %2537 = vmatprep.mubr.f32.mxu0 0.0
      %2538 = vmatmul.mubr.f32.gmra.mrb[0].mxu0 %v1993
      %v2539 = vpop.f32.mrb[0].mxu0
      %v2540 = vadd.f32 %v2037, %v2539
      %v2541 = vpop.f32.mrb[0].mxu0
      %2542 = vmatprep.mubr.f32.mxu0 0.0
      %2543 = vmatmul.mubr.f32.gmra.mrb[0].mxu0 %v1994
      %v2544 = vpop.f32.mrb[0].mxu0
      %v2545 = vadd.f32 %v2037, %v2544
      %v2546 = vpop.f32.mrb[0].mxu0
      %2547 = vmatprep.mubr.f32.mxu0 0.0
      %2548 = vmatmul.mubr.f32.gmra.mrb[0].mxu0 %v1995
      %v2549 = vpop.f32.mrb[0].mxu0
      %v2550 = vadd.f32 %v2037, %v2549
      %v2551 = vpop.f32.mrb[0].mxu0
      %2552 = vmatprep.mubr.f32.mxu0 0.0
      %2553 = vmatmul.mubr.f32.gmra.mrb[0].mxu0 %v1996
      %v2554 = vpop.f32.mrb[0].mxu0
      %v2555 = vadd.f32 %v2037, %v2554
      %v2556 = vpop.f32.mrb[0].mxu0
      %2557 = vmatprep.mubr.f32.mxu0 0.0
      %2558 = vmatmul.mubr.f32.gmra.mrb[0].mxu0 %v1997
      %v2559 = vpop.f32.mrb[0].mxu0
      %v2560 = vadd.f32 %v2037, %v2559
      %v2561 = vpop.f32.mrb[0].mxu0
      %2562 = vmatprep.mubr.f32.mxu0 0.0
      %2563 = vmatmul.mubr.f32.gmra.mrb[0].mxu0 %v1998
      %v2564 = vpop.f32.mrb[0].mxu0
      %v2565 = vadd.f32 %v2037, %v2564
      %v2566 = vpop.f32.mrb[0].mxu0
      %2567 = vmatprep.mubr.f32.mxu0 0.0
      %2568 = vmatmul.mubr.f32.gmra.mrb[0].mxu0 %v1999
      %v2569 = vpop.f32.mrb[0].mxu0
      %v2570 = vadd.f32 %v2037, %v2569
      %v2571 = vpop.f32.mrb[0].mxu0
      %2572 = vmatprep.mubr.f32.mxu0 0.0
      %2573 = vmatmul.mubr.f32.gmra.mrb[0].mxu0 %v2000
      %v2574 = vpop.f32.mrb[0].mxu0
      %v2575 = vadd.f32 %v2037, %v2574
      %v2576 = vpop.f32.mrb[0].mxu0
      %2577 = vmatprep.mubr.f32.mxu0 0.0
      %2578 = vmatmul.mubr.f32.gmra.mrb[0].mxu0 %v2001
      %v2579 = vpop.f32.mrb[0].mxu0
      %v2580 = vadd.f32 %v2037, %v2579
      %v2581 = vpop.f32.mrb[0].mxu0
      %2582 = vmatprep.mubr.f32.mxu0 0.0
      %2583 = vmatmul.mubr.f32.gmra.mrb[0].mxu0 %v2002
      %v2584 = vpop.f32.mrb[0].mxu0
      %v2585 = vadd.f32 %v2037, %v2584
      %v2586 = vpop.f32.mrb[0].mxu0
      %2587 = vmatprep.mubr.f32.mxu0 0.0
      %2588 = vmatmul.mubr.f32.gmra.mrb[0].mxu0 %v2003
      %v2589 = vpop.f32.mrb[0].mxu0
      %v2590 = vadd.f32 %v2037, %v2589
      %v2591 = vpop.f32.mrb[0].mxu0
      %2592 = vmatprep.mubr.f32.mxu0 0.0
      %2593 = vmatmul.mubr.f32.gmra.mrb[0].mxu0 %v2004
      %v2594 = vpop.f32.mrb[0].mxu0
      %v2595 = vadd.f32 %v2037, %v2594
      %v2596 = vpop.f32.mrb[0].mxu0
      %2597 = vmatprep.mubr.f32.mxu0 0.0
      %2598 = vmatmul.mubr.f32.gmra.mrb[0].mxu0 %v2005
      %v2599 = vpop.f32.mrb[0].mxu0
      %v2600 = vadd.f32 %v2037, %v2599
      %v2601 = vpop.f32.mrb[0].mxu0
      %2602 = vmatprep.mubr.f32.mxu0 0.0
      %2603 = vmatmul.mubr.f32.gmra.mrb[0].mxu0 %v2006
      %v2604 = vpop.f32.mrb[0].mxu0
      %v2605 = vadd.f32 %v2037, %v2604
      %v2606 = vpop.f32.mrb[0].mxu0
      %2607 = vmatprep.mubr.f32.mxu0 0.0
      %2608 = vmatmul.mubr.f32.gmra.mrb[0].mxu0 %v2007
      %v2609 = vpop.f32.mrb[0].mxu0
      %v2610 = vadd.f32 %v2037, %v2609
      %v2611 = vpop.f32.mrb[0].mxu0
      %2612 = vmatprep.mubr.f32.mxu0 0.0
      %2613 = vmatmul.mubr.f32.gmra.mrb[0].mxu0 %v2008
      %v2614 = vpop.f32.mrb[0].mxu0
      %v2615 = vadd.f32 %v2037, %v2614
      %v2616 = vpop.f32.mrb[0].mxu0
      %2617 = vmatprep.mubr.f32.mxu0 0.0
      %2618 = vmatmul.mubr.f32.gmra.mrb[0].mxu0 %v2009
      %v2619 = vpop.f32.mrb[0].mxu0
      %v2620 = vadd.f32 %v2037, %v2619
      %v2621 = vpop.f32.mrb[0].mxu0
      %2622 = vmatprep.mubr.f32.mxu0 0.0
      %2623 = vmatmul.mubr.f32.gmra.mrb[0].mxu0 %v2010
      %v2624 = vpop.f32.mrb[0].mxu0
      %v2625 = vadd.f32 %v2037, %v2624
      %v2626 = vpop.f32.mrb[0].mxu0
      %2627 = vmatprep.mubr.f32.mxu0 0.0
      %2628 = vmatmul.mubr.f32.gmra.mrb[0].mxu0 %v2011
      %v2629 = vpop.f32.mrb[0].mxu0
      %v2630 = vadd.f32 %v2037, %v2629
      %v2631 = vpop.f32.mrb[0].mxu0
      %2632 = vmatprep.mubr.f32.mxu0 0.0
      %2633 = vmatmul.mubr.f32.gmra.mrb[0].mxu0 %v2012
      %v2634 = vpop.f32.mrb[0].mxu0
      %v2635 = vadd.f32 %v2037, %v2634
      %v2636 = vpop.f32.mrb[0].mxu0
      %2637 = vmatprep.mubr.f32.mxu0 0.0
      %2638 = vmatmul.mubr.f32.gmra.mrb[0].mxu0 %v2013
      %v2639 = vpop.f32.mrb[0].mxu0
      %v2640 = vadd.f32 %v2037, %v2639
      %v2641 = vpop.f32.mrb[0].mxu0
      %2642 = vmatprep.mubr.f32.mxu0 0.0
      %2643 = vmatmul.mubr.f32.gmra.mrb[0].mxu0 %v2014
      %v2644 = vpop.f32.mrb[0].mxu0
      %v2645 = vadd.f32 %v2037, %v2644
      %v2646 = vpop.f32.mrb[0].mxu0
      %2647 = vmatprep.mubr.f32.mxu0 0.0
      %2648 = vmatmul.mubr.f32.gmra.mrb[0].mxu0 %v2015
      %v2649 = vpop.f32.mrb[0].mxu0
      %v2650 = vadd.f32 %v2037, %v2649
      %v2651 = vpop.f32.mrb[0].mxu0
      %2652 = vmatprep.mubr.f32.mxu0 0.0
      %2653 = vmatmul.mubr.f32.gmra.mrb[0].mxu0 %v2016
      %v2654 = vpop.f32.mrb[0].mxu0
      %v2655 = vadd.f32 %v2037, %v2654
      %v2656 = vpop.f32.mrb[0].mxu0
      %2657 = vmatprep.mubr.f32.mxu0 0.0
      %2658 = vmatmul.mubr.f32.gmra.mrb[0].mxu0 %v2017
      %v2659 = vpop.f32.mrb[0].mxu0
      %v2660 = vadd.f32 %v2037, %v2659
      %v2661 = vpop.f32.mrb[0].mxu0
      %2662 = vmatprep.mubr.f32.mxu0 0.0
      %2663 = vmatmul.mubr.f32.gmra.mrb[0].mxu0 %v2018
      %v2664 = vpop.f32.mrb[0].mxu0
      %v2665 = vadd.f32 %v2037, %v2664
      %v2666 = vpop.f32.mrb[0].mxu0
      %2667 = vmatprep.mubr.f32.mxu0 0.0
      %2668 = vmatmul.mubr.f32.gmra.mrb[0].mxu0 %v2019
      %v2669 = vpop.f32.mrb[0].mxu0
      %v2670 = vadd.f32 %v2037, %v2669
      %v2671 = vpop.f32.mrb[0].mxu0
      %2672 = vmatprep.mubr.f32.mxu0 0.0
      %2673 = vmatmul.mubr.f32.gmra.mrb[0].mxu0 %v2020
      %v2674 = vpop.f32.mrb[0].mxu0
      %v2675 = vadd.f32 %v2037, %v2674
      %v2676 = vpop.f32.mrb[0].mxu0
      %2677 = vmatprep.mubr.f32.mxu0 0.0
      %2678 = vmatmul.mubr.f32.gmra.mrb[0].mxu0 %v2021
      %v2679 = vpop.f32.mrb[0].mxu0
      %v2680 = vadd.f32 %v2037, %v2679
      %v2681 = vpop.f32.mrb[0].mxu0
      %2682 = vmatprep.mubr.f32.mxu0 0.0
      %2683 = vmatmul.mubr.f32.gmra.mrb[0].mxu0 %v2022
      %v2684 = vpop.f32.mrb[0].mxu0
      %v2685 = vadd.f32 %v2037, %v2684
      %v2686 = vpop.f32.mrb[0].mxu0
      %2687 = vmatprep.mubr.f32.mxu0 0.0
      %2688 = vmatmul.mubr.f32.gmra.mrb[0].mxu0 %v2023
      %v2689 = vpop.f32.mrb[0].mxu0
      %v2690 = vadd.f32 %v2037, %v2689
      %v2691 = vpop.f32.mrb[0].mxu0
      %2692 = vmatprep.mubr.f32.mxu0 0.0
      %2693 = vmatmul.mubr.f32.gmra.mrb[0].mxu0 %v2024
      %v2694 = vpop.f32.mrb[0].mxu0
      %v2695 = vadd.f32 %v2037, %v2694
      %v2696 = vpop.f32.mrb[0].mxu0
      %2697 = vmatprep.mubr.f32.mxu0 0.0
      %2698 = vmatmul.mubr.f32.gmra.mrb[0].mxu0 %v2025
      %v2699 = vpop.f32.mrb[0].mxu0
      %v2700 = vadd.f32 %v2037, %v2699
      %v2701 = vpop.f32.mrb[0].mxu0
      %2702 = vmatprep.mubr.f32.mxu0 0.0
      %2703 = vmatmul.mubr.f32.gmra.mrb[0].mxu0 %v2026
      %v2704 = vpop.f32.mrb[0].mxu0
      %v2705 = vadd.f32 %v2037, %v2704
      %v2706 = vpop.f32.mrb[0].mxu0
      %2707 = vmatprep.mubr.f32.mxu0 0.0
      %2708 = vmatmul.mubr.f32.gmra.mrb[0].mxu0 %v2027
      %v2709 = vpop.f32.mrb[0].mxu0
      %v2710 = vadd.f32 %v2037, %v2709
      %v2711 = vpop.f32.mrb[0].mxu0
      %2712 = vmatprep.mubr.f32.mxu0 0.0
      %2713 = vmatmul.mubr.f32.gmra.mrb[0].mxu0 %v2028
      %v2714 = vpop.f32.mrb[0].mxu0
      %v2715 = vadd.f32 %v2037, %v2714
      %v2716 = vpop.f32.mrb[0].mxu0
      %2717 = vmatprep.mubr.f32.mxu0 0.0
      %2718 = vmatmul.mubr.f32.gmra.mrb[0].mxu0 %v2029
      %v2719 = vpop.f32.mrb[0].mxu0
      %v2720 = vadd.f32 %v2037, %v2719
      %v2721 = vpop.f32.mrb[0].mxu0
      %2722 = vmatprep.mubr.f32.mxu0 0.0
      %2723 = vmatmul.mubr.f32.gmra.mrb[0].mxu0 %v2030
      %v2724 = vpop.f32.mrb[0].mxu0
      %v2725 = vadd.f32 %v2037, %v2724
      %v2726 = vpop.f32.mrb[0].mxu0
      %2727 = vmatprep.mubr.f32.mxu0 0.0
      %2728 = vmatmul.mubr.f32.gmra.mrb[0].mxu0 %v2031
      %v2729 = vpop.f32.mrb[0].mxu0
      %v2730 = vadd.f32 %v2037, %v2729
      %v2731 = vpop.f32.mrb[0].mxu0
      %2732 = vmatprep.mubr.f32.mxu0 0.0
      %2733 = vmatmul.mubr.f32.gmra.mrb[0].mxu0 %v2032
      %v2734 = vpop.f32.mrb[0].mxu0
      %v2735 = vadd.f32 %v2037, %v2734
      %v2736 = vpop.f32.mrb[0].mxu0
      %2737 = vmatprep.mubr.f32.mxu0 0.0
      %2738 = vmatmul.mubr.f32.gmra.mrb[0].mxu0 %v2033
      %v2739 = vpop.f32.mrb[0].mxu0
      %v2740 = vadd.f32 %v2037, %v2739
      %v2741 = vpop.f32.mrb[0].mxu0
      %2742 = vdwg.mxu0
      %v2743 = vsub.f32 0.0, %v2105
      %v2744 = vsub.f32 0.0, %v2110
      %v2745 = vsub.f32 0.0, %v2115
      %v2746 = vsub.f32 0.0, %v2120
      %v2747 = vsub.f32 0.0, %v2125
      %v2748 = vsub.f32 0.0, %v2130
      %v2749 = vsub.f32 0.0, %v2135
      %v2750 = vsub.f32 0.0, %v2140
      %v2751 = vsub.f32 0.0, %v2145
      %v2752 = vsub.f32 0.0, %v2150
      %v2753 = vsub.f32 0.0, %v2155
      %v2754 = vsub.f32 0.0, %v2160
      %v2755 = vsub.f32 0.0, %v2165
      %v2756 = vsub.f32 0.0, %v2170
      %v2757 = vsub.f32 0.0, %v2175
      %v2758 = vsub.f32 0.0, %v2180
      %v2759 = vsub.f32 0.0, %v2185
      %v2760 = vsub.f32 0.0, %v2190
      %v2761 = vsub.f32 0.0, %v2195
      %v2762 = vsub.f32 0.0, %v2200
      %v2763 = vsub.f32 0.0, %v2205
      %v2764 = vsub.f32 0.0, %v2210
      %v2765 = vsub.f32 0.0, %v2215
      %v2766 = vsub.f32 0.0, %v2220
      %v2767 = vsub.f32 0.0, %v2225
      %v2768 = vsub.f32 0.0, %v2230
      %v2769 = vsub.f32 0.0, %v2235
      %v2770 = vsub.f32 0.0, %v2240
      %v2771 = vsub.f32 0.0, %v2245
      %v2772 = vsub.f32 0.0, %v2250
      %v2773 = vsub.f32 0.0, %v2255
      %v2774 = vsub.f32 0.0, %v2260
      %v2775 = vsub.f32 0.0, %v2265
      %v2776 = vsub.f32 0.0, %v2270
      %v2777 = vsub.f32 0.0, %v2275
      %v2778 = vsub.f32 0.0, %v2280
      %v2779 = vsub.f32 0.0, %v2285
      %v2780 = vsub.f32 0.0, %v2290
      %v2781 = vsub.f32 0.0, %v2295
      %v2782 = vsub.f32 0.0, %v2300
      %v2783 = vsub.f32 0.0, %v2305
      %v2784 = vsub.f32 0.0, %v2310
      %v2785 = vsub.f32 0.0, %v2315
      %v2786 = vsub.f32 0.0, %v2320
      %v2787 = vsub.f32 0.0, %v2325
      %v2788 = vsub.f32 0.0, %v2330
      %v2789 = vsub.f32 0.0, %v2335
      %v2790 = vsub.f32 0.0, %v2340
      %v2791 = vsub.f32 0.0, %v2345
      %v2792 = vsub.f32 0.0, %v2350
      %v2793 = vsub.f32 0.0, %v2355
      %v2794 = vsub.f32 0.0, %v2360
      %v2795 = vsub.f32 0.0, %v2365
      %v2796 = vsub.f32 0.0, %v2370
      %v2797 = vsub.f32 0.0, %v2375
      %v2798 = vsub.f32 0.0, %v2380
      %v2799 = vsub.f32 0.0, %v2385
      %v2800 = vsub.f32 0.0, %v2390
      %v2801 = vsub.f32 0.0, %v2395
      %v2802 = vsub.f32 0.0, %v2400
      %v2803 = vsub.f32 0.0, %v2405
      %v2804 = vsub.f32 0.0, %v2410
      %v2805 = vsub.f32 0.0, %v2415
      %v2806 = vsub.f32 0.0, %v2420
      %v2807 = vsub.f32 0.0, %v2425
      %v2808 = vsub.f32 0.0, %v2430
      %v2809 = vsub.f32 0.0, %v2435
      %v2810 = vsub.f32 0.0, %v2440
      %v2811 = vsub.f32 0.0, %v2445
      %v2812 = vsub.f32 0.0, %v2450
      %v2813 = vsub.f32 0.0, %v2455
      %v2814 = vsub.f32 0.0, %v2460
      %v2815 = vsub.f32 0.0, %v2465
      %v2816 = vsub.f32 0.0, %v2470
      %v2817 = vsub.f32 0.0, %v2475
      %v2818 = vsub.f32 0.0, %v2480
      %v2819 = vsub.f32 0.0, %v2485
      %v2820 = vsub.f32 0.0, %v2490
      %v2821 = vsub.f32 0.0, %v2495
      %v2822 = vsub.f32 0.0, %v2500
      %v2823 = vsub.f32 0.0, %v2505
      %v2824 = vsub.f32 0.0, %v2510
      %v2825 = vsub.f32 0.0, %v2515
      %v2826 = vsub.f32 0.0, %v2520
      %v2827 = vsub.f32 0.0, %v2525
      %v2828 = vsub.f32 0.0, %v2530
      %v2829 = vsub.f32 0.0, %v2535
      %v2830 = vsub.f32 0.0, %v2540
      %v2831 = vsub.f32 0.0, %v2545
      %v2832 = vsub.f32 0.0, %v2550
      %v2833 = vsub.f32 0.0, %v2555
      %v2834 = vsub.f32 0.0, %v2560
      %v2835 = vsub.f32 0.0, %v2565
      %v2836 = vsub.f32 0.0, %v2570
      %v2837 = vsub.f32 0.0, %v2575
      %v2838 = vsub.f32 0.0, %v2580
      %v2839 = vsub.f32 0.0, %v2585
      %v2840 = vsub.f32 0.0, %v2590
      %v2841 = vsub.f32 0.0, %v2595
      %v2842 = vsub.f32 0.0, %v2600
      %v2843 = vsub.f32 0.0, %v2605
      %v2844 = vsub.f32 0.0, %v2610
      %v2845 = vsub.f32 0.0, %v2615
      %v2846 = vsub.f32 0.0, %v2620
      %v2847 = vsub.f32 0.0, %v2625
      %v2848 = vsub.f32 0.0, %v2630
      %v2849 = vsub.f32 0.0, %v2635
      %v2850 = vsub.f32 0.0, %v2640
      %v2851 = vsub.f32 0.0, %v2645
      %v2852 = vsub.f32 0.0, %v2650
      %v2853 = vsub.f32 0.0, %v2655
      %v2854 = vsub.f32 0.0, %v2660
      %v2855 = vsub.f32 0.0, %v2665
      %v2856 = vsub.f32 0.0, %v2670
      %v2857 = vsub.f32 0.0, %v2675
      %v2858 = vsub.f32 0.0, %v2680
      %v2859 = vsub.f32 0.0, %v2685
      %v2860 = vsub.f32 0.0, %v2690
      %v2861 = vsub.f32 0.0, %v2695
      %v2862 = vsub.f32 0.0, %v2700
      %v2863 = vsub.f32 0.0, %v2705
      %v2864 = vsub.f32 0.0, %v2710
      %v2865 = vsub.f32 0.0, %v2715
      %v2866 = vsub.f32 0.0, %v2720
      %v2867 = vsub.f32 0.0, %v2725
      %v2868 = vsub.f32 0.0, %v2730
      %v2869 = vsub.f32 0.0, %v2735
      %v2870 = vsub.f32 0.0, %v2740
      %v2871 = vmul.f32 %v2743, 1.442695
      %v2872 = vpow.pop %v2871
      %v2873 = vmul.f32 %v2744, 1.442695
      %v2874 = vpow.pop %v2873
      %v2875 = vmul.f32 %v2745, 1.442695
      %v2876 = vpow.pop %v2875
      %v2877 = vmul.f32 %v2746, 1.442695
      %v2878 = vpow.pop %v2877
      %v2879 = vmul.f32 %v2747, 1.442695
      %v2880 = vpow.pop %v2879
      %v2881 = vmul.f32 %v2748, 1.442695
      %v2882 = vpow.pop %v2881
      %v2883 = vmul.f32 %v2749, 1.442695
      %v2884 = vpow.pop %v2883
      %v2885 = vmul.f32 %v2750, 1.442695
      %v2886 = vpow.pop %v2885
      %v2887 = vmul.f32 %v2751, 1.442695
      %v2888 = vpow.pop %v2887
      %v2889 = vmul.f32 %v2752, 1.442695
      %v2890 = vpow.pop %v2889
      %v2891 = vmul.f32 %v2753, 1.442695
      %v2892 = vpow.pop %v2891
      %v2893 = vmul.f32 %v2754, 1.442695
      %v2894 = vpow.pop %v2893
      %v2895 = vmul.f32 %v2755, 1.442695
      %v2896 = vpow.pop %v2895
      %v2897 = vmul.f32 %v2756, 1.442695
      %v2898 = vpow.pop %v2897
      %v2899 = vmul.f32 %v2757, 1.442695
      %v2900 = vpow.pop %v2899
      %v2901 = vmul.f32 %v2758, 1.442695
      %v2902 = vpow.pop %v2901
      %v2903 = vmul.f32 %v2759, 1.442695
      %v2904 = vpow.pop %v2903
      %v2905 = vmul.f32 %v2760, 1.442695
      %v2906 = vpow.pop %v2905
      %v2907 = vmul.f32 %v2761, 1.442695
      %v2908 = vpow.pop %v2907
      %v2909 = vmul.f32 %v2762, 1.442695
      %v2910 = vpow.pop %v2909
      %v2911 = vmul.f32 %v2763, 1.442695
      %v2912 = vpow.pop %v2911
      %v2913 = vmul.f32 %v2764, 1.442695
      %v2914 = vpow.pop %v2913
      %v2915 = vmul.f32 %v2765, 1.442695
      %v2916 = vpow.pop %v2915
      %v2917 = vmul.f32 %v2766, 1.442695
      %v2918 = vpow.pop %v2917
      %v2919 = vmul.f32 %v2767, 1.442695
      %v2920 = vpow.pop %v2919
      %v2921 = vmul.f32 %v2768, 1.442695
      %v2922 = vpow.pop %v2921
      %v2923 = vmul.f32 %v2769, 1.442695
      %v2924 = vpow.pop %v2923
      %v2925 = vmul.f32 %v2770, 1.442695
      %v2926 = vpow.pop %v2925
      %v2927 = vmul.f32 %v2771, 1.442695
      %v2928 = vpow.pop %v2927
      %v2929 = vmul.f32 %v2772, 1.442695
      %v2930 = vpow.pop %v2929
      %v2931 = vmul.f32 %v2773, 1.442695
      %v2932 = vpow.pop %v2931
      %v2933 = vmul.f32 %v2774, 1.442695
      %v2934 = vpow.pop %v2933
      %v2935 = vmul.f32 %v2775, 1.442695
      %v2936 = vpow.pop %v2935
      %v2937 = vmul.f32 %v2776, 1.442695
      %v2938 = vpow.pop %v2937
      %v2939 = vmul.f32 %v2777, 1.442695
      %v2940 = vpow.pop %v2939
      %v2941 = vmul.f32 %v2778, 1.442695
      %v2942 = vpow.pop %v2941
      %v2943 = vmul.f32 %v2779, 1.442695
      %v2944 = vpow.pop %v2943
      %v2945 = vmul.f32 %v2780, 1.442695
      %v2946 = vpow.pop %v2945
      %v2947 = vmul.f32 %v2781, 1.442695
      %v2948 = vpow.pop %v2947
      %v2949 = vmul.f32 %v2782, 1.442695
      %v2950 = vpow.pop %v2949
      %v2951 = vmul.f32 %v2783, 1.442695
      %v2952 = vpow.pop %v2951
      %v2953 = vmul.f32 %v2784, 1.442695
      %v2954 = vpow.pop %v2953
      %v2955 = vmul.f32 %v2785, 1.442695
      %v2956 = vpow.pop %v2955
      %v2957 = vmul.f32 %v2786, 1.442695
      %v2958 = vpow.pop %v2957
      %v2959 = vmul.f32 %v2787, 1.442695
      %v2960 = vpow.pop %v2959
      %v2961 = vmul.f32 %v2788, 1.442695
      %v2962 = vpow.pop %v2961
      %v2963 = vmul.f32 %v2789, 1.442695
      %v2964 = vpow.pop %v2963
      %v2965 = vmul.f32 %v2790, 1.442695
      %v2966 = vpow.pop %v2965
      %v2967 = vmul.f32 %v2791, 1.442695
      %v2968 = vpow.pop %v2967
      %v2969 = vmul.f32 %v2792, 1.442695
      %v2970 = vpow.pop %v2969
      %v2971 = vmul.f32 %v2793, 1.442695
      %v2972 = vpow.pop %v2971
      %v2973 = vmul.f32 %v2794, 1.442695
      %v2974 = vpow.pop %v2973
      %v2975 = vmul.f32 %v2795, 1.442695
      %v2976 = vpow.pop %v2975
      %v2977 = vmul.f32 %v2796, 1.442695
      %v2978 = vpow.pop %v2977
      %v2979 = vmul.f32 %v2797, 1.442695
      %v2980 = vpow.pop %v2979
      %v2981 = vmul.f32 %v2798, 1.442695
      %v2982 = vpow.pop %v2981
      %v2983 = vmul.f32 %v2799, 1.442695
      %v2984 = vpow.pop %v2983
      %v2985 = vmul.f32 %v2800, 1.442695
      %v2986 = vpow.pop %v2985
      %v2987 = vmul.f32 %v2801, 1.442695
      %v2988 = vpow.pop %v2987
      %v2989 = vmul.f32 %v2802, 1.442695
      %v2990 = vpow.pop %v2989
      %v2991 = vmul.f32 %v2803, 1.442695
      %v2992 = vpow.pop %v2991
      %v2993 = vmul.f32 %v2804, 1.442695
      %v2994 = vpow.pop %v2993
      %v2995 = vmul.f32 %v2805, 1.442695
      %v2996 = vpow.pop %v2995
      %v2997 = vmul.f32 %v2806, 1.442695
      %v2998 = vpow.pop %v2997
      %v2999 = vmul.f32 %v2807, 1.442695
      %v3000 = vpow.pop %v2999
      %v3001 = vmul.f32 %v2808, 1.442695
      %v3002 = vpow.pop %v3001
      %v3003 = vmul.f32 %v2809, 1.442695
      %v3004 = vpow.pop %v3003
      %v3005 = vmul.f32 %v2810, 1.442695
      %v3006 = vpow.pop %v3005
      %v3007 = vmul.f32 %v2811, 1.442695
      %v3008 = vpow.pop %v3007
      %v3009 = vmul.f32 %v2812, 1.442695
      %v3010 = vpow.pop %v3009
      %v3011 = vmul.f32 %v2813, 1.442695
      %v3012 = vpow.pop %v3011
      %v3013 = vmul.f32 %v2814, 1.442695
      %v3014 = vpow.pop %v3013
      %v3015 = vmul.f32 %v2815, 1.442695
      %v3016 = vpow.pop %v3015
      %v3017 = vmul.f32 %v2816, 1.442695
      %v3018 = vpow.pop %v3017
      %v3019 = vmul.f32 %v2817, 1.442695
      %v3020 = vpow.pop %v3019
      %v3021 = vmul.f32 %v2818, 1.442695
      %v3022 = vpow.pop %v3021
      %v3023 = vmul.f32 %v2819, 1.442695
      %v3024 = vpow.pop %v3023
      %v3025 = vmul.f32 %v2820, 1.442695
      %v3026 = vpow.pop %v3025
      %v3027 = vmul.f32 %v2821, 1.442695
      %v3028 = vpow.pop %v3027
      %v3029 = vmul.f32 %v2822, 1.442695
      %v3030 = vpow.pop %v3029
      %v3031 = vmul.f32 %v2823, 1.442695
      %v3032 = vpow.pop %v3031
      %v3033 = vmul.f32 %v2824, 1.442695
      %v3034 = vpow.pop %v3033
      %v3035 = vmul.f32 %v2825, 1.442695
      %v3036 = vpow.pop %v3035
      %v3037 = vmul.f32 %v2826, 1.442695
      %v3038 = vpow.pop %v3037
      %v3039 = vmul.f32 %v2827, 1.442695
      %v3040 = vpow.pop %v3039
      %v3041 = vmul.f32 %v2828, 1.442695
      %v3042 = vpow.pop %v3041
      %v3043 = vmul.f32 %v2829, 1.442695
      %v3044 = vpow.pop %v3043
      %v3045 = vmul.f32 %v2830, 1.442695
      %v3046 = vpow.pop %v3045
      %v3047 = vmul.f32 %v2831, 1.442695
      %v3048 = vpow.pop %v3047
      %v3049 = vmul.f32 %v2832, 1.442695
      %v3050 = vpow.pop %v3049
      %v3051 = vmul.f32 %v2833, 1.442695
      %v3052 = vpow.pop %v3051
      %v3053 = vmul.f32 %v2834, 1.442695
      %v3054 = vpow.pop %v3053
      %v3055 = vmul.f32 %v2835, 1.442695
      %v3056 = vpow.pop %v3055
      %v3057 = vmul.f32 %v2836, 1.442695
      %v3058 = vpow.pop %v3057
      %v3059 = vmul.f32 %v2837, 1.442695
      %v3060 = vpow.pop %v3059
      %v3061 = vmul.f32 %v2838, 1.442695
      %v3062 = vpow.pop %v3061
      %v3063 = vmul.f32 %v2839, 1.442695
      %v3064 = vpow.pop %v3063
      %v3065 = vmul.f32 %v2840, 1.442695
      %v3066 = vpow.pop %v3065
      %v3067 = vmul.f32 %v2841, 1.442695
      %v3068 = vpow.pop %v3067
      %v3069 = vmul.f32 %v2842, 1.442695
      %v3070 = vpow.pop %v3069
      %v3071 = vmul.f32 %v2843, 1.442695
      %v3072 = vpow.pop %v3071
      %v3073 = vmul.f32 %v2844, 1.442695
      %v3074 = vpow.pop %v3073
      %v3075 = vmul.f32 %v2845, 1.442695
      %v3076 = vpow.pop %v3075
      %v3077 = vmul.f32 %v2846, 1.442695
      %v3078 = vpow.pop %v3077
      %v3079 = vmul.f32 %v2847, 1.442695
      %v3080 = vpow.pop %v3079
      %v3081 = vmul.f32 %v2848, 1.442695
      %v3082 = vpow.pop %v3081
      %v3083 = vmul.f32 %v2849, 1.442695
      %v3084 = vpow.pop %v3083
      %v3085 = vmul.f32 %v2850, 1.442695
      %v3086 = vpow.pop %v3085
      %v3087 = vmul.f32 %v2851, 1.442695
      %v3088 = vpow.pop %v3087
      %v3089 = vmul.f32 %v2852, 1.442695
      %v3090 = vpow.pop %v3089
      %v3091 = vmul.f32 %v2853, 1.442695
      %v3092 = vpow.pop %v3091
      %v3093 = vmul.f32 %v2854, 1.442695
      %v3094 = vpow.pop %v3093
      %v3095 = vmul.f32 %v2855, 1.442695
      %v3096 = vpow.pop %v3095
      %v3097 = vmul.f32 %v2856, 1.442695
      %v3098 = vpow.pop %v3097
      %v3099 = vmul.f32 %v2857, 1.442695
      %v3100 = vpow.pop %v3099
      %v3101 = vmul.f32 %v2858, 1.442695
      %v3102 = vpow.pop %v3101
      %v3103 = vmul.f32 %v2859, 1.442695
      %v3104 = vpow.pop %v3103
      %v3105 = vmul.f32 %v2860, 1.442695
      %v3106 = vpow.pop %v3105
      %v3107 = vmul.f32 %v2861, 1.442695
      %v3108 = vpow.pop %v3107
      %v3109 = vmul.f32 %v2862, 1.442695
      %v3110 = vpow.pop %v3109
      %v3111 = vmul.f32 %v2863, 1.442695
      %v3112 = vpow.pop %v3111
      %v3113 = vmul.f32 %v2864, 1.442695
      %v3114 = vpow.pop %v3113
      %v3115 = vmul.f32 %v2865, 1.442695
      %v3116 = vpow.pop %v3115
      %v3117 = vmul.f32 %v2866, 1.442695
      %v3118 = vpow.pop %v3117
      %v3119 = vmul.f32 %v2867, 1.442695
      %v3120 = vpow.pop %v3119
      %v3121 = vmul.f32 %v2868, 1.442695
      %v3122 = vpow.pop %v3121
      %v3123 = vmul.f32 %v2869, 1.442695
      %v3124 = vpow.pop %v3123
      %v3125 = vmul.f32 %v2870, 1.442695
      %v3126 = vpow.pop %v3125
      %v3127 = vadd.f32 %v2872, 1.0
      %v3128 = vadd.f32 %v2874, 1.0
      %v3129 = vadd.f32 %v2876, 1.0
      %v3130 = vadd.f32 %v2878, 1.0
      %v3131 = vadd.f32 %v2880, 1.0
      %v3132 = vadd.f32 %v2882, 1.0
      %v3133 = vadd.f32 %v2884, 1.0
      %v3134 = vadd.f32 %v2886, 1.0
      %v3135 = vadd.f32 %v2888, 1.0
      %v3136 = vadd.f32 %v2890, 1.0
      %v3137 = vadd.f32 %v2892, 1.0
      %v3138 = vadd.f32 %v2894, 1.0
      %v3139 = vadd.f32 %v2896, 1.0
      %v3140 = vadd.f32 %v2898, 1.0
      %v3141 = vadd.f32 %v2900, 1.0
      %v3142 = vadd.f32 %v2902, 1.0
      %v3143 = vadd.f32 %v2904, 1.0
      %v3144 = vadd.f32 %v2906, 1.0
      %v3145 = vadd.f32 %v2908, 1.0
      %v3146 = vadd.f32 %v2910, 1.0
      %v3147 = vadd.f32 %v2912, 1.0
      %v3148 = vadd.f32 %v2914, 1.0
      %v3149 = vadd.f32 %v2916, 1.0
      %v3150 = vadd.f32 %v2918, 1.0
      %v3151 = vadd.f32 %v2920, 1.0
      %v3152 = vadd.f32 %v2922, 1.0
      %v3153 = vadd.f32 %v2924, 1.0
      %v3154 = vadd.f32 %v2926, 1.0
      %v3155 = vadd.f32 %v2928, 1.0
      %v3156 = vadd.f32 %v2930, 1.0
      %v3157 = vadd.f32 %v2932, 1.0
      %v3158 = vadd.f32 %v2934, 1.0
      %v3159 = vadd.f32 %v2936, 1.0
      %v3160 = vadd.f32 %v2938, 1.0
      %v3161 = vadd.f32 %v2940, 1.0
      %v3162 = vadd.f32 %v2942, 1.0
      %v3163 = vadd.f32 %v2944, 1.0
      %v3164 = vadd.f32 %v2946, 1.0
      %v3165 = vadd.f32 %v2948, 1.0
      %v3166 = vadd.f32 %v2950, 1.0
      %v3167 = vadd.f32 %v2952, 1.0
      %v3168 = vadd.f32 %v2954, 1.0
      %v3169 = vadd.f32 %v2956, 1.0
      %v3170 = vadd.f32 %v2958, 1.0
      %v3171 = vadd.f32 %v2960, 1.0
      %v3172 = vadd.f32 %v2962, 1.0
      %v3173 = vadd.f32 %v2964, 1.0
      %v3174 = vadd.f32 %v2966, 1.0
      %v3175 = vadd.f32 %v2968, 1.0
      %v3176 = vadd.f32 %v2970, 1.0
      %v3177 = vadd.f32 %v2972, 1.0
      %v3178 = vadd.f32 %v2974, 1.0
      %v3179 = vadd.f32 %v2976, 1.0
      %v3180 = vadd.f32 %v2978, 1.0
      %v3181 = vadd.f32 %v2980, 1.0
      %v3182 = vadd.f32 %v2982, 1.0
      %v3183 = vadd.f32 %v2984, 1.0
      %v3184 = vadd.f32 %v2986, 1.0
      %v3185 = vadd.f32 %v2988, 1.0
      %v3186 = vadd.f32 %v2990, 1.0
      %v3187 = vadd.f32 %v2992, 1.0
      %v3188 = vadd.f32 %v2994, 1.0
      %v3189 = vadd.f32 %v2996, 1.0
      %v3190 = vadd.f32 %v2998, 1.0
      %v3191 = vadd.f32 %v3000, 1.0
      %v3192 = vadd.f32 %v3002, 1.0
      %v3193 = vadd.f32 %v3004, 1.0
      %v3194 = vadd.f32 %v3006, 1.0
      %v3195 = vadd.f32 %v3008, 1.0
      %v3196 = vadd.f32 %v3010, 1.0
      %v3197 = vadd.f32 %v3012, 1.0
      %v3198 = vadd.f32 %v3014, 1.0
      %v3199 = vadd.f32 %v3016, 1.0
      %v3200 = vadd.f32 %v3018, 1.0
      %v3201 = vadd.f32 %v3020, 1.0
      %v3202 = vadd.f32 %v3022, 1.0
      %v3203 = vadd.f32 %v3024, 1.0
      %v3204 = vadd.f32 %v3026, 1.0
      %v3205 = vadd.f32 %v3028, 1.0
      %v3206 = vadd.f32 %v3030, 1.0
      %v3207 = vadd.f32 %v3032, 1.0
      %v3208 = vadd.f32 %v3034, 1.0
      %v3209 = vadd.f32 %v3036, 1.0
      %v3210 = vadd.f32 %v3038, 1.0
      %v3211 = vadd.f32 %v3040, 1.0
      %v3212 = vadd.f32 %v3042, 1.0
      %v3213 = vadd.f32 %v3044, 1.0
      %v3214 = vadd.f32 %v3046, 1.0
      %v3215 = vadd.f32 %v3048, 1.0
      %v3216 = vadd.f32 %v3050, 1.0
      %v3217 = vadd.f32 %v3052, 1.0
      %v3218 = vadd.f32 %v3054, 1.0
      %v3219 = vadd.f32 %v3056, 1.0
      %v3220 = vadd.f32 %v3058, 1.0
      %v3221 = vadd.f32 %v3060, 1.0
      %v3222 = vadd.f32 %v3062, 1.0
      %v3223 = vadd.f32 %v3064, 1.0
      %v3224 = vadd.f32 %v3066, 1.0
      %v3225 = vadd.f32 %v3068, 1.0
      %v3226 = vadd.f32 %v3070, 1.0
      %v3227 = vadd.f32 %v3072, 1.0
      %v3228 = vadd.f32 %v3074, 1.0
      %v3229 = vadd.f32 %v3076, 1.0
      %v3230 = vadd.f32 %v3078, 1.0
      %v3231 = vadd.f32 %v3080, 1.0
      %v3232 = vadd.f32 %v3082, 1.0
      %v3233 = vadd.f32 %v3084, 1.0
      %v3234 = vadd.f32 %v3086, 1.0
      %v3235 = vadd.f32 %v3088, 1.0
      %v3236 = vadd.f32 %v3090, 1.0
      %v3237 = vadd.f32 %v3092, 1.0
      %v3238 = vadd.f32 %v3094, 1.0
      %v3239 = vadd.f32 %v3096, 1.0
      %v3240 = vadd.f32 %v3098, 1.0
      %v3241 = vadd.f32 %v3100, 1.0
      %v3242 = vadd.f32 %v3102, 1.0
      %v3243 = vadd.f32 %v3104, 1.0
      %v3244 = vadd.f32 %v3106, 1.0
      %v3245 = vadd.f32 %v3108, 1.0
      %v3246 = vadd.f32 %v3110, 1.0
      %v3247 = vadd.f32 %v3112, 1.0
      %v3248 = vadd.f32 %v3114, 1.0
      %v3249 = vadd.f32 %v3116, 1.0
      %v3250 = vadd.f32 %v3118, 1.0
      %v3251 = vadd.f32 %v3120, 1.0
      %v3252 = vadd.f32 %v3122, 1.0
      %v3253 = vadd.f32 %v3124, 1.0
      %v3254 = vadd.f32 %v3126, 1.0
      %v3255 = vrcp.pop %v3127
      %v3256 = vrcp.pop %v3128
      %v3257 = vrcp.pop %v3129
      %v3258 = vrcp.pop %v3130
      %v3259 = vrcp.pop %v3131
      %v3260 = vrcp.pop %v3132
      %v3261 = vrcp.pop %v3133
      %v3262 = vrcp.pop %v3134
      %v3263 = vrcp.pop %v3135
      %v3264 = vrcp.pop %v3136
      %v3265 = vrcp.pop %v3137
      %v3266 = vrcp.pop %v3138
      %v3267 = vrcp.pop %v3139
      %v3268 = vrcp.pop %v3140
      %v3269 = vrcp.pop %v3141
      %v3270 = vrcp.pop %v3142
      %v3271 = vrcp.pop %v3143
      %v3272 = vrcp.pop %v3144
      %v3273 = vrcp.pop %v3145
      %v3274 = vrcp.pop %v3146
      %v3275 = vrcp.pop %v3147
      %v3276 = vrcp.pop %v3148
      %v3277 = vrcp.pop %v3149
      %v3278 = vrcp.pop %v3150
      %v3279 = vrcp.pop %v3151
      %v3280 = vrcp.pop %v3152
      %v3281 = vrcp.pop %v3153
      %v3282 = vrcp.pop %v3154
      %v3283 = vrcp.pop %v3155
      %v3284 = vrcp.pop %v3156
      %v3285 = vrcp.pop %v3157
      %v3286 = vrcp.pop %v3158
      %v3287 = vrcp.pop %v3159
      %v3288 = vrcp.pop %v3160
      %v3289 = vrcp.pop %v3161
      %v3290 = vrcp.pop %v3162
      %v3291 = vrcp.pop %v3163
      %v3292 = vrcp.pop %v3164
      %v3293 = vrcp.pop %v3165
      %v3294 = vrcp.pop %v3166
      %v3295 = vrcp.pop %v3167
      %v3296 = vrcp.pop %v3168
      %v3297 = vrcp.pop %v3169
      %v3298 = vrcp.pop %v3170
      %v3299 = vrcp.pop %v3171
      %v3300 = vrcp.pop %v3172
      %v3301 = vrcp.pop %v3173
      %v3302 = vrcp.pop %v3174
      %v3303 = vrcp.pop %v3175
      %v3304 = vrcp.pop %v3176
      %v3305 = vrcp.pop %v3177
      %v3306 = vrcp.pop %v3178
      %v3307 = vrcp.pop %v3179
      %v3308 = vrcp.pop %v3180
      %v3309 = vrcp.pop %v3181
      %v3310 = vrcp.pop %v3182
      %v3311 = vrcp.pop %v3183
      %v3312 = vrcp.pop %v3184
      %v3313 = vrcp.pop %v3185
      %v3314 = vrcp.pop %v3186
      %v3315 = vrcp.pop %v3187
      %v3316 = vrcp.pop %v3188
      %v3317 = vrcp.pop %v3189
      %v3318 = vrcp.pop %v3190
      %v3319 = vrcp.pop %v3191
      %v3320 = vrcp.pop %v3192
      %v3321 = vrcp.pop %v3193
      %v3322 = vrcp.pop %v3194
      %v3323 = vrcp.pop %v3195
      %v3324 = vrcp.pop %v3196
      %v3325 = vrcp.pop %v3197
      %v3326 = vrcp.pop %v3198
      %v3327 = vrcp.pop %v3199
      %v3328 = vrcp.pop %v3200
      %v3329 = vrcp.pop %v3201
      %v3330 = vrcp.pop %v3202
      %v3331 = vrcp.pop %v3203
      %v3332 = vrcp.pop %v3204
      %v3333 = vrcp.pop %v3205
      %v3334 = vrcp.pop %v3206
      %v3335 = vrcp.pop %v3207
      %v3336 = vrcp.pop %v3208
      %v3337 = vrcp.pop %v3209
      %v3338 = vrcp.pop %v3210
      %v3339 = vrcp.pop %v3211
      %v3340 = vrcp.pop %v3212
      %v3341 = vrcp.pop %v3213
      %v3342 = vrcp.pop %v3214
      %v3343 = vrcp.pop %v3215
      %v3344 = vrcp.pop %v3216
      %v3345 = vrcp.pop %v3217
      %v3346 = vrcp.pop %v3218
      %v3347 = vrcp.pop %v3219
      %v3348 = vrcp.pop %v3220
      %v3349 = vrcp.pop %v3221
      %v3350 = vrcp.pop %v3222
      %v3351 = vrcp.pop %v3223
      %v3352 = vrcp.pop %v3224
      %v3353 = vrcp.pop %v3225
      %v3354 = vrcp.pop %v3226
      %v3355 = vrcp.pop %v3227
      %v3356 = vrcp.pop %v3228
      %v3357 = vrcp.pop %v3229
      %v3358 = vrcp.pop %v3230
      %v3359 = vrcp.pop %v3231
      %v3360 = vrcp.pop %v3232
      %v3361 = vrcp.pop %v3233
      %v3362 = vrcp.pop %v3234
      %v3363 = vrcp.pop %v3235
      %v3364 = vrcp.pop %v3236
      %v3365 = vrcp.pop %v3237
      %v3366 = vrcp.pop %v3238
      %v3367 = vrcp.pop %v3239
      %v3368 = vrcp.pop %v3240
      %v3369 = vrcp.pop %v3241
      %v3370 = vrcp.pop %v3242
      %v3371 = vrcp.pop %v3243
      %v3372 = vrcp.pop %v3244
      %v3373 = vrcp.pop %v3245
      %v3374 = vrcp.pop %v3246
      %v3375 = vrcp.pop %v3247
      %v3376 = vrcp.pop %v3248
      %v3377 = vrcp.pop %v3249
      %v3378 = vrcp.pop %v3250
      %v3379 = vrcp.pop %v3251
      %v3380 = vrcp.pop %v3252
      %v3381 = vrcp.pop %v3253
      %v3382 = vrcp.pop %v3254
      %vm3383 = vcmask 15360
      %3384 = vst.msk [vmem:[%s145] sm:$0xff] %vm3383, %v3255
      %3385 = vst.msk [vmem:[%s145 + $0x8] sm:$0xff] %vm3383, %v3256
      %3386 = vst.msk [vmem:[%s145 + $0x10] sm:$0xff] %vm3383, %v3257
      %3387 = vst.msk [vmem:[%s145 + $0x18] sm:$0xff] %vm3383, %v3258
      %3388 = vst.msk [vmem:[%s145 + $0x20] sm:$0xff] %vm3383, %v3259
      %3389 = vst.msk [vmem:[%s145 + $0x28] sm:$0xff] %vm3383, %v3260
      %3390 = vst.msk [vmem:[%s145 + $0x30] sm:$0xff] %vm3383, %v3261
      %3391 = vst.msk [vmem:[%s145 + $0x38] sm:$0xff] %vm3383, %v3262
      %3392 = vst.msk [vmem:[%s145 + $0x40] sm:$0xff] %vm3383, %v3263
      %3393 = vst.msk [vmem:[%s145 + $0x48] sm:$0xff] %vm3383, %v3264
      %3394 = vst.msk [vmem:[%s145 + $0x50] sm:$0xff] %vm3383, %v3265
      %3395 = vst.msk [vmem:[%s145 + $0x58] sm:$0xff] %vm3383, %v3266
      %3396 = vst.msk [vmem:[%s145 + $0x60] sm:$0xff] %vm3383, %v3267
      %3397 = vst.msk [vmem:[%s145 + $0x68] sm:$0xff] %vm3383, %v3268
      %3398 = vst.msk [vmem:[%s145 + $0x70] sm:$0xff] %vm3383, %v3269
      %3399 = vst.msk [vmem:[%s145 + $0x78] sm:$0xff] %vm3383, %v3270
      %3400 = vst.msk [vmem:[%s145 + $0x80] sm:$0xff] %vm3383, %v3271
      %3401 = vst.msk [vmem:[%s145 + $0x88] sm:$0xff] %vm3383, %v3272
      %3402 = vst.msk [vmem:[%s145 + $0x90] sm:$0xff] %vm3383, %v3273
      %3403 = vst.msk [vmem:[%s145 + $0x98] sm:$0xff] %vm3383, %v3274
      %3404 = vst.msk [vmem:[%s145 + $0xa0] sm:$0xff] %vm3383, %v3275
      %3405 = vst.msk [vmem:[%s145 + $0xa8] sm:$0xff] %vm3383, %v3276
      %3406 = vst.msk [vmem:[%s145 + $0xb0] sm:$0xff] %vm3383, %v3277
      %3407 = vst.msk [vmem:[%s145 + $0xb8] sm:$0xff] %vm3383, %v3278
      %3408 = vst.msk [vmem:[%s145 + $0xc0] sm:$0xff] %vm3383, %v3279
      %3409 = vst.msk [vmem:[%s145 + $0xc8] sm:$0xff] %vm3383, %v3280
      %3410 = vst.msk [vmem:[%s145 + $0xd0] sm:$0xff] %vm3383, %v3281
      %3411 = vst.msk [vmem:[%s145 + $0xd8] sm:$0xff] %vm3383, %v3282
      %3412 = vst.msk [vmem:[%s145 + $0xe0] sm:$0xff] %vm3383, %v3283
      %3413 = vst.msk [vmem:[%s145 + $0xe8] sm:$0xff] %vm3383, %v3284
      %3414 = vst.msk [vmem:[%s145 + $0xf0] sm:$0xff] %vm3383, %v3285
      %3415 = vst.msk [vmem:[%s145 + $0xf8] sm:$0xff] %vm3383, %v3286
      %3416 = vst.msk [vmem:[%s145 + $0x100] sm:$0xff] %vm3383, %v3287
      %3417 = vst.msk [vmem:[%s145 + $0x108] sm:$0xff] %vm3383, %v3288
      %3418 = vst.msk [vmem:[%s145 + $0x110] sm:$0xff] %vm3383, %v3289
      %3419 = vst.msk [vmem:[%s145 + $0x118] sm:$0xff] %vm3383, %v3290
      %3420 = vst.msk [vmem:[%s145 + $0x120] sm:$0xff] %vm3383, %v3291
      %3421 = vst.msk [vmem:[%s145 + $0x128] sm:$0xff] %vm3383, %v3292
      %3422 = vst.msk [vmem:[%s145 + $0x130] sm:$0xff] %vm3383, %v3293
      %3423 = vst.msk [vmem:[%s145 + $0x138] sm:$0xff] %vm3383, %v3294
      %3424 = vst.msk [vmem:[%s145 + $0x140] sm:$0xff] %vm3383, %v3295
      %3425 = vst.msk [vmem:[%s145 + $0x148] sm:$0xff] %vm3383, %v3296
      %3426 = vst.msk [vmem:[%s145 + $0x150] sm:$0xff] %vm3383, %v3297
      %3427 = vst.msk [vmem:[%s145 + $0x158] sm:$0xff] %vm3383, %v3298
      %3428 = vst.msk [vmem:[%s145 + $0x160] sm:$0xff] %vm3383, %v3299
      %3429 = vst.msk [vmem:[%s145 + $0x168] sm:$0xff] %vm3383, %v3300
      %3430 = vst.msk [vmem:[%s145 + $0x170] sm:$0xff] %vm3383, %v3301
      %3431 = vst.msk [vmem:[%s145 + $0x178] sm:$0xff] %vm3383, %v3302
      %3432 = vst.msk [vmem:[%s145 + $0x180] sm:$0xff] %vm3383, %v3303
      %3433 = vst.msk [vmem:[%s145 + $0x188] sm:$0xff] %vm3383, %v3304
      %3434 = vst.msk [vmem:[%s145 + $0x190] sm:$0xff] %vm3383, %v3305
      %3435 = vst.msk [vmem:[%s145 + $0x198] sm:$0xff] %vm3383, %v3306
      %3436 = vst.msk [vmem:[%s145 + $0x1a0] sm:$0xff] %vm3383, %v3307
      %3437 = vst.msk [vmem:[%s145 + $0x1a8] sm:$0xff] %vm3383, %v3308
      %3438 = vst.msk [vmem:[%s145 + $0x1b0] sm:$0xff] %vm3383, %v3309
      %3439 = vst.msk [vmem:[%s145 + $0x1b8] sm:$0xff] %vm3383, %v3310
      %3440 = vst.msk [vmem:[%s145 + $0x1c0] sm:$0xff] %vm3383, %v3311
      %3441 = vst.msk [vmem:[%s145 + $0x1c8] sm:$0xff] %vm3383, %v3312
      %3442 = vst.msk [vmem:[%s145 + $0x1d0] sm:$0xff] %vm3383, %v3313
      %3443 = vst.msk [vmem:[%s145 + $0x1d8] sm:$0xff] %vm3383, %v3314
      %3444 = vst.msk [vmem:[%s145 + $0x1e0] sm:$0xff] %vm3383, %v3315
      %3445 = vst.msk [vmem:[%s145 + $0x1e8] sm:$0xff] %vm3383, %v3316
      %3446 = vst.msk [vmem:[%s145 + $0x1f0] sm:$0xff] %vm3383, %v3317
      %3447 = vst.msk [vmem:[%s145 + $0x1f8] sm:$0xff] %vm3383, %v3318
      %3448 = vst.msk [vmem:[%s145 + $0x200] sm:$0xff] %vm3383, %v3319
      %3449 = vst.msk [vmem:[%s145 + $0x208] sm:$0xff] %vm3383, %v3320
      %3450 = vst.msk [vmem:[%s145 + $0x210] sm:$0xff] %vm3383, %v3321
      %3451 = vst.msk [vmem:[%s145 + $0x218] sm:$0xff] %vm3383, %v3322
      %3452 = vst.msk [vmem:[%s145 + $0x220] sm:$0xff] %vm3383, %v3323
      %3453 = vst.msk [vmem:[%s145 + $0x228] sm:$0xff] %vm3383, %v3324
      %3454 = vst.msk [vmem:[%s145 + $0x230] sm:$0xff] %vm3383, %v3325
      %3455 = vst.msk [vmem:[%s145 + $0x238] sm:$0xff] %vm3383, %v3326
      %3456 = vst.msk [vmem:[%s145 + $0x240] sm:$0xff] %vm3383, %v3327
      %3457 = vst.msk [vmem:[%s145 + $0x248] sm:$0xff] %vm3383, %v3328
      %3458 = vst.msk [vmem:[%s145 + $0x250] sm:$0xff] %vm3383, %v3329
      %3459 = vst.msk [vmem:[%s145 + $0x258] sm:$0xff] %vm3383, %v3330
      %3460 = vst.msk [vmem:[%s145 + $0x260] sm:$0xff] %vm3383, %v3331
      %3461 = vst.msk [vmem:[%s145 + $0x268] sm:$0xff] %vm3383, %v3332
      %3462 = vst.msk [vmem:[%s145 + $0x270] sm:$0xff] %vm3383, %v3333
      %3463 = vst.msk [vmem:[%s145 + $0x278] sm:$0xff] %vm3383, %v3334
      %3464 = vst.msk [vmem:[%s145 + $0x280] sm:$0xff] %vm3383, %v3335
      %3465 = vst.msk [vmem:[%s145 + $0x288] sm:$0xff] %vm3383, %v3336
      %3466 = vst.msk [vmem:[%s145 + $0x290] sm:$0xff] %vm3383, %v3337
      %3467 = vst.msk [vmem:[%s145 + $0x298] sm:$0xff] %vm3383, %v3338
      %3468 = vst.msk [vmem:[%s145 + $0x2a0] sm:$0xff] %vm3383, %v3339
      %3469 = vst.msk [vmem:[%s145 + $0x2a8] sm:$0xff] %vm3383, %v3340
      %3470 = vst.msk [vmem:[%s145 + $0x2b0] sm:$0xff] %vm3383, %v3341
      %3471 = vst.msk [vmem:[%s145 + $0x2b8] sm:$0xff] %vm3383, %v3342
      %3472 = vst.msk [vmem:[%s145 + $0x2c0] sm:$0xff] %vm3383, %v3343
      %3473 = vst.msk [vmem:[%s145 + $0x2c8] sm:$0xff] %vm3383, %v3344
      %3474 = vst.msk [vmem:[%s145 + $0x2d0] sm:$0xff] %vm3383, %v3345
      %3475 = vst.msk [vmem:[%s145 + $0x2d8] sm:$0xff] %vm3383, %v3346
      %3476 = vst.msk [vmem:[%s145 + $0x2e0] sm:$0xff] %vm3383, %v3347
      %3477 = vst.msk [vmem:[%s145 + $0x2e8] sm:$0xff] %vm3383, %v3348
      %3478 = vst.msk [vmem:[%s145 + $0x2f0] sm:$0xff] %vm3383, %v3349
      %3479 = vst.msk [vmem:[%s145 + $0x2f8] sm:$0xff] %vm3383, %v3350
      %3480 = vst.msk [vmem:[%s145 + $0x300] sm:$0xff] %vm3383, %v3351
      %3481 = vst.msk [vmem:[%s145 + $0x308] sm:$0xff] %vm3383, %v3352
      %3482 = vst.msk [vmem:[%s145 + $0x310] sm:$0xff] %vm3383, %v3353
      %3483 = vst.msk [vmem:[%s145 + $0x318] sm:$0xff] %vm3383, %v3354
      %3484 = vst.msk [vmem:[%s145 + $0x320] sm:$0xff] %vm3383, %v3355
      %3485 = vst.msk [vmem:[%s145 + $0x328] sm:$0xff] %vm3383, %v3356
      %3486 = vst.msk [vmem:[%s145 + $0x330] sm:$0xff] %vm3383, %v3357
      %3487 = vst.msk [vmem:[%s145 + $0x338] sm:$0xff] %vm3383, %v3358
      %3488 = vst.msk [vmem:[%s145 + $0x340] sm:$0xff] %vm3383, %v3359
      %3489 = vst.msk [vmem:[%s145 + $0x348] sm:$0xff] %vm3383, %v3360
      %3490 = vst.msk [vmem:[%s145 + $0x350] sm:$0xff] %vm3383, %v3361
      %3491 = vst.msk [vmem:[%s145 + $0x358] sm:$0xff] %vm3383, %v3362
      %3492 = vst.msk [vmem:[%s145 + $0x360] sm:$0xff] %vm3383, %v3363
      %3493 = vst.msk [vmem:[%s145 + $0x368] sm:$0xff] %vm3383, %v3364
      %3494 = vst.msk [vmem:[%s145 + $0x370] sm:$0xff] %vm3383, %v3365
      %3495 = vst.msk [vmem:[%s145 + $0x378] sm:$0xff] %vm3383, %v3366
      %3496 = vst.msk [vmem:[%s145 + $0x380] sm:$0xff] %vm3383, %v3367
      %3497 = vst.msk [vmem:[%s145 + $0x388] sm:$0xff] %vm3383, %v3368
      %3498 = vst.msk [vmem:[%s145 + $0x390] sm:$0xff] %vm3383, %v3369
      %3499 = vst.msk [vmem:[%s145 + $0x398] sm:$0xff] %vm3383, %v3370
      %3500 = vst.msk [vmem:[%s145 + $0x3a0] sm:$0xff] %vm3383, %v3371
      %3501 = vst.msk [vmem:[%s145 + $0x3a8] sm:$0xff] %vm3383, %v3372
      %3502 = vst.msk [vmem:[%s145 + $0x3b0] sm:$0xff] %vm3383, %v3373
      %3503 = vst.msk [vmem:[%s145 + $0x3b8] sm:$0xff] %vm3383, %v3374
      %3504 = vst.msk [vmem:[%s145 + $0x3c0] sm:$0xff] %vm3383, %v3375
      %3505 = vst.msk [vmem:[%s145 + $0x3c8] sm:$0xff] %vm3383, %v3376
      %3506 = vst.msk [vmem:[%s145 + $0x3d0] sm:$0xff] %vm3383, %v3377
      %3507 = vst.msk [vmem:[%s145 + $0x3d8] sm:$0xff] %vm3383, %v3378
      %3508 = vst.msk [vmem:[%s145 + $0x3e0] sm:$0xff] %vm3383, %v3379
      %3509 = vst.msk [vmem:[%s145 + $0x3e8] sm:$0xff] %vm3383, %v3380
      %3510 = vst.msk [vmem:[%s145 + $0x3f0] sm:$0xff] %vm3383, %v3381
      %3511 = vst.msk [vmem:[%s145 + $0x3f8] sm:$0xff] %vm3383, %v3382
      %s3512 = smul.u32 128, %s13
      %p3513 = scmp.lt.s32.totalorder %s3512, 255
      %s3514 = scalar_select %p3513, %s3512, 255
      %s3515 = smul.addr %s3514, 8
      %s3516 = scalar_lea.vmem %s2, %s3515
      // Predicated region
      $region29: #{_fifa_pallas.1} parent=27 // pred_check
        %p3517 = pneg %p78
      $region30: #{_fifa_pallas.1} parent=27 // pred_check_branch
        %3519 = sbr.rel (%p3517) target = $region32
      $region31: #{_fifa_pallas.1} parent=27 // pred_region
        %s3520 = smul.u32 128, %s13
      $region32: #{_fifa_pallas.1} parent=27 // pred_fallthru
        _
    $region28: #{_fifa_pallas.1} parent=5 // pred_fallthru
      _
    %p3521 = scmp.le.s32.totalorder 2, %s8
    // Predicated region
    $region33: #{_fifa_pallas.1} parent=5 // pred_check
      %p3522 = pneg %p3521
    $region34: #{_fifa_pallas.1} parent=5 // pred_check_branch
      %3524 = sbr.rel (%p3522) target = $region36
    $region35: #{_fifa_pallas.1} parent=5 // pred_region
      %s3525 = ssub.s32 %s8, 2
      // Predicated region
      $region37: #{_fifa_pallas.1} parent=35 // pred_check
        %p3526 = pneg %p84
      $region38: #{_fifa_pallas.1} parent=35 // pred_check_branch
        %3528 = sbr.rel (%p3526) target = $region40
      $region39: #{_fifa_pallas.1} parent=35 // pred_region
        %s3529 = smul.u32 128, %s14
        %p3530 = scmp.lt.s32.totalorder %s3529, 255
        %s3531 = scalar_select %p3530, %s3529, 255
        %s3532 = smul.addr %s3531, 8
        %s3533 = scalar_lea.vmem %s2, %s3532
      $region40: #{_fifa_pallas.1} parent=35 // pred_fallthru
        _
    $region36: #{_fifa_pallas.1} parent=5 // pred_fallthru
      _
  $region6: #{_fifa_pallas.1} parent=0 // loop_footer
    %s12 = sadd.s32 1, %s8
  $region7: #{_fifa_pallas.1} parent=0 // loop_footer_branch
    %7 = sbr.rel target = $region3
  $region8: #{_fifa_pallas.1} parent=0 // loop_exit
    _

</llo_original>
